<compile_context>
chip_gen: v6e
topology: v6e:2x2x1
jax: 0.10.0
libtpu: 0.0.40
codegen_flags: <defaults>
</compile_context>

<pallas_src>
import functools

import jax
import jax.numpy as jnp
from jax.experimental import pallas as pl
from jax.experimental.pallas import tpu as pltpu

EPS_LN = 1e-5


# ----------------------------- small math helpers --------------------------------------
def _sigmoid(x):
    return 1.0 / (1.0 + jnp.exp(-x))


def _inverse_sigmoid(x, eps=1e-5):
    x = jnp.clip(x, 0.0, 1.0)
    x1 = jnp.maximum(x, eps)
    x2 = jnp.maximum(1.0 - x, eps)
    return jnp.log(x1 / x2)


def _layernorm(x, g, b, eps=EPS_LN):
    # one-pass statistics: E[x^2] - E[x]^2 (two independent cross-lane reductions)
    m = jnp.mean(x, axis=-1, keepdims=True)
    m2 = jnp.mean(x * x, axis=-1, keepdims=True)
    v = jnp.maximum(m2 - m * m, 0.0)
    return (x - m) * jax.lax.rsqrt(v + eps) * g + b


def _bdot(a_f32, w_bf16):
    """bf16 matmul with f32 accumulation."""
    return jnp.dot(a_f32.astype(jnp.bfloat16), w_bf16,
                   preferred_element_type=jnp.float32)


# ----------------------------- fused head kernel ----------------------------------------
def _bevformer_head_kernel(
    # inputs
    query_ref, qpos_ref, refinit_ref, bev_ref,
    wa_ref, ba_ref, g1_ref, be1_ref,
    cw2_ref, cb2_ref, g2_ref, be2_ref,
    rw2_ref, rb2_ref,
    cwc_ref, w3_ref, bo_ref,
    # output (single lane-dense fused stream: cls logits + refined boxes)
    out_ref,
    *, scale, pc_range, box_off):
  D = query_ref.shape[-1]
  L = wa_ref.shape[0]
  CP = out_ref.shape[-1]
  pc0, pc1, pc2, pc3, pc4, pc5 = pc_range

  qp = qpos_ref[...]                                           # (Q, D) f32
  x = query_ref[...]                                           # (Q, D) f32 residual stream
  ref = refinit_ref[...]                                       # (Q, CP) f32 (lanes box_off,+1,+4)
  kv = bev_ref[0]                                              # (HW, D) bf16, batch-resident

  # lane masks / per-lane affine constants for the box epilogue (hoisted out of the loop)
  lane = jax.lax.broadcasted_iota(jnp.int32, (1, CP), 1)
  is_x = lane == box_off
  is_y = lane == box_off + 1
  is_z = lane == box_off + 4
  mask_sig = is_x | is_y | is_z
  one = jnp.float32(1.0)
  zero = jnp.float32(0.0)
  scale_vec = jnp.where(is_x, jnp.float32(pc3 - pc0),
               jnp.where(is_y, jnp.float32(pc4 - pc1),
                jnp.where(is_z, jnp.float32(pc5 - pc2), one)))
  off_vec = jnp.where(is_x, jnp.float32(pc0),
             jnp.where(is_y, jnp.float32(pc1),
              jnp.where(is_z, jnp.float32(pc2), zero)))

  for l in range(L):                                           # static unroll; weights resident
    # ---- cross-attention of queries over BEV features (stand-in decoder layer) -------
    # TODO(synk): `self.transformer` is constructor-injected and undefined in the
    # reference; this is a minimal BEVFormer-style layer (cross-attn + residual +
    # iterative box refinement), without self-attn / Q,K,V,out projections / FFN.
    q = (x + qp).astype(jnp.bfloat16)
    s = jax.lax.dot_general(q, kv, (((1,), (1,)), ((), ())),   # q @ kv^T, no transpose copy
                            preferred_element_type=jnp.float32) * scale      # (Q, HW)
    m = jnp.max(s, axis=-1, keepdims=True)
    e = jnp.exp(s - m)
    p = e * pl.reciprocal(jnp.sum(e, axis=-1, keepdims=True), approx=True)
    x = x + jnp.dot(p.astype(jnp.bfloat16), kv, preferred_element_type=jnp.float32)

    # ---- fused first Linear of cls+reg branches: x @ [cls_w1 | reg_w1]  (N = 2D) -----
    ha = _bdot(x, wa_ref[l]) + ba_ref[l]                       # (Q, 2D)
    hc = ha[:, :D]                                             # cls stream
    hr = jnp.maximum(ha[:, D:], 0.0)                           # reg stream (ReLU)

    # cls branch: LN -> ReLU -> Linear -> LN -> ReLU
    hc = jnp.maximum(_layernorm(hc, g1_ref[l], be1_ref[l]), 0.0)
    hc = _bdot(hc, cw2_ref[l]) + cb2_ref[l]
    hc = jnp.maximum(_layernorm(hc, g2_ref[l], be2_ref[l]), 0.0)

    # reg branch: Linear -> ReLU
    hr = jnp.maximum(_bdot(hr, rw2_ref[l]) + rb2_ref[l], 0.0)

    # fused head: cls logits in lanes [0, NC), raw reg deltas in lanes [box_off, box_off+6)
    fused = _bdot(hc, cwc_ref[l]) + _bdot(hr, w3_ref[l]) + bo_ref[l]   # (Q, CP)

    # ---- lane-masked reference update + coordinate refinement ------------------------
    # ref holds sigmoid-space reference at lanes {box_off, box_off+1, box_off+4}.
    inv_gated = jnp.where(mask_sig, _inverse_sigmoid(ref), zero)
    summed = fused + inv_gated
    sig = _sigmoid(summed)
    val = jnp.where(mask_sig, sig, fused)                      # cls + raw reg pass through
    ref = val                                                  # inter_references[l] carry
    out_ref[l, 0] = val * scale_vec + off_vec                  # single lane-dense store


# ----------------------------- head forward ---------------------------------------------
def bevformer_head_forward(params, bev_feats, *, pc_range, num_classes):
    B, HW, D = bev_feats.shape
    qe = params["query_embedding"]                             # (Q, 2D)
    Q = qe.shape[0]
    (cw1, cb1, cg1, cbe1, cw2, cb2, cg2, cbe2, cwc, cbc) = params["cls"]
    (rw1, rb1, rw2, rb2, rw3, rb3) = params["reg"]
    L = cw1.shape[0]
    NC = num_classes + 1
    CP = 128                                                   # lane-dense fused output width
    box_off = max(8, ((NC + 7) // 8) * 8)
    assert box_off + 6 <= CP  # TODO(synk): widen CP (multiple of 128) for very large NC

    query_pos = qe[:, :D].astype(jnp.float32)                  # (Q, D) — NOT broadcast to B
    query = qe[:, D:].astype(jnp.float32)                      # (Q, D)
    bev = bev_feats.astype(jnp.bfloat16)

    # reference_points Linear + sigmoid hoisted out of the kernel (identical for every
    # batch); result placed at lanes {box_off, box_off+1, box_off+4} of a (Q, 128) tile.
    rp = jax.nn.sigmoid(query_pos @ params["ref_w"] + params["ref_b"])      # (Q, 3)
    ref_init = jnp.zeros((Q, CP), jnp.float32)
    ref_init = ref_init.at[:, box_off:box_off + 2].set(rp[:, 0:2])
    ref_init = ref_init.at[:, box_off + 4:box_off + 5].set(rp[:, 2:3])

    # weight packing: fuse cls_w1|reg_w1 (N=2D fills v6e/v7x MXU), lane-pad the heads so
    # class logits and box deltas land in disjoint lanes of one 128-wide output tile.
    wa = jnp.concatenate([cw1, rw1], axis=-1).astype(jnp.bfloat16)          # (L, D, 2D)
    ba = jnp.concatenate([cb1, rb1], axis=-1).astype(jnp.float32)           # (L, 1, 2D)
    wc_pad = jnp.zeros((L, D, CP), jnp.float32).at[:, :, :NC].set(cwc).astype(jnp.bfloat16)
    w3_pad = jnp.zeros((L, D, CP), jnp.float32
                       ).at[:, :, box_off:box_off + 6].set(rw3).astype(jnp.bfloat16)
    bo = jnp.zeros((L, 1, CP), jnp.float32)
    bo = bo.at[:, :, :NC].set(cbc)
    bo = bo.at[:, :, box_off:box_off + 6].set(rb3)

    kern = functools.partial(
        _bevformer_head_kernel,
        scale=1.0 / float(D) ** 0.5,
        pc_range=tuple(float(v) for v in pc_range),
        box_off=box_off)

    shared2 = lambda b: (0, 0)            # batch-invariant 2-D inputs
    shared3 = lambda b: (0, 0, 0)         # layer-stacked weights, DMA'd once (index fixed)
    grid_spec = pltpu.PrefetchScalarGridSpec(
        num_scalar_prefetch=0,
        grid=(B,),                        # one batch per grid step -> one per TC on v7x
        in_specs=[
            pl.BlockSpec((Q, D), shared2),                    # query
            pl.BlockSpec((Q, D), shared2),                    # query_pos
            pl.BlockSpec((Q, CP), shared2),                   # init reference (lane-aligned)
            pl.BlockSpec((1, HW, D), lambda b: (b, 0, 0)),    # bev feats (KV)
            pl.BlockSpec((L, D, 2 * D), shared3),             # fused cls_w1|reg_w1
            pl.BlockSpec((L, 1, 2 * D), shared3),             # fused b1
            pl.BlockSpec((L, 1, D), shared3),                 # cls ln1 gamma
            pl.BlockSpec((L, 1, D), shared3),                 # cls ln1 beta
            pl.BlockSpec((L, D, D), shared3),                 # cls w2
            pl.BlockSpec((L, 1, D), shared3),                 # cls b2
            pl.BlockSpec((L, 1, D), shared3),                 # cls ln2 gamma
            pl.BlockSpec((L, 1, D), shared3),                 # cls ln2 beta
            pl.BlockSpec((L, D, D), shared3),                 # reg w2
            pl.BlockSpec((L, 1, D), shared3),                 # reg b2
            pl.BlockSpec((L, D, CP), shared3),                # cls head weight (lane-padded)
            pl.BlockSpec((L, D, CP), shared3),                # reg head weight (lane-padded)
            pl.BlockSpec((L, 1, CP), shared3),                # fused head bias
        ],
        out_specs=pl.BlockSpec((L, 1, Q, CP), lambda b: (0, b, 0, 0)),
        scratch_shapes=[],
    )

    fused = pl.pallas_call(
        kern,
        grid_spec=grid_spec,
        out_shape=jax.ShapeDtypeStruct((L, B, Q, CP), jnp.float32),
        compiler_params=pltpu.CompilerParams(
            dimension_semantics=("parallel",)),
    )(query, query_pos, ref_init, bev,
      wa, ba, cg1, cbe1,
      cw2.astype(jnp.bfloat16), cb2, cg2, cbe2,
      rw2.astype(jnp.bfloat16), rb2,
      wc_pad, w3_pad, bo)

    cls_scores = fused[..., :NC]                               # slice the fused lanes back out
    bbox_preds = fused[..., box_off:box_off + 6]
    return {
        "pred_logits": cls_scores[-1],
        "pred_boxes": bbox_preds[-1],
        "aux_outputs": [
            {"pred_logits": c, "pred_boxes": b}
            for c, b in zip(cls_scores[:-1], bbox_preds[:-1])
        ],
    }


# ----------------------------- deterministic parameter init -----------------------------
def init_params(key, *, embed_dims, num_query, num_classes, num_layers):
    D, L = embed_dims, num_layers
    NC = num_classes + 1
    ks = jax.random.split(key, 8)
    s = 1.0 / (D ** 0.5)
    w = lambda k, shape: jax.random.normal(k, shape, jnp.float32) * s
    return {
        "query_embedding": jax.random.normal(ks[0], (num_query, 2 * D), jnp.float32),
        # xavier-uniform-ish reference_points weight, zero bias (matches init_weights)
        "ref_w": jax.random.uniform(ks[1], (D, 3), jnp.float32, -s, s),
        "ref_b": jnp.zeros((1, 3), jnp.float32),
        "cls": (
            w(ks[2], (L, D, D)), jnp.zeros((L, 1, D), jnp.float32),
            jnp.ones((L, 1, D), jnp.float32), jnp.zeros((L, 1, D), jnp.float32),
            w(ks[3], (L, D, D)), jnp.zeros((L, 1, D), jnp.float32),
            jnp.ones((L, 1, D), jnp.float32), jnp.zeros((L, 1, D), jnp.float32),
            w(ks[4], (L, D, NC)), jnp.zeros((L, 1, NC), jnp.float32),
        ),
        "reg": (
            w(ks[5], (L, D, D)), jnp.zeros((L, 1, D), jnp.float32),
            w(ks[6], (L, D, D)), jnp.zeros((L, 1, D), jnp.float32),
            w(ks[7], (L, D, 6)), jnp.zeros((L, 1, 6), jnp.float32),
        ),
    }


if __name__ == "__main__":
    # small demo shapes: batch=2, embed_dims=128 (module default), 32 queries,
    # flattened 8x8 BEV grid, 4 classes, 3 decoder layers.
    B, D, Q, HW = 2, 128, 32, 64
    num_classes, num_layers = 4, 3
    pc_range = (-51.2, -51.2, -5.0, 51.2, 51.2, 3.0)

    key = jax.random.PRNGKey(0)
    kp, kx = jax.random.split(key)
    params = init_params(kp, embed_dims=D, num_query=Q,
                         num_classes=num_classes, num_layers=num_layers)
    bev_feats = jax.random.normal(kx, (B, HW, D), jnp.float32)

    fwd = jax.jit(functools.partial(bevformer_head_forward,
                                    pc_range=pc_range, num_classes=num_classes))
    out = fwd(params, bev_feats)
    jax.block_until_ready(out["pred_logits"])
    jax.block_until_ready(out["pred_boxes"])

    assert out["pred_logits"].shape == (B, Q, num_classes + 1)
    assert out["pred_boxes"].shape == (B, Q, 6)
    assert len(out["aux_outputs"]) == num_layers - 1
    assert bool(jnp.all(jnp.isfinite(out["pred_logits"])))
    assert bool(jnp.all(jnp.isfinite(out["pred_boxes"])))
    print("KERNEL_OK")
</pallas_src>

<mosaic_0001>
module attributes {stable_mosaic.version = 11 : i64} {
  func.func @_bevformer_head_kernel(%arg0: i32, %arg1: memref<32x128xf32, #tpu.memory_space<vmem>>, %arg2: memref<32x128xf32, #tpu.memory_space<vmem>>, %arg3: memref<32x128xf32, #tpu.memory_space<vmem>>, %arg4: memref<1x64x128xbf16, #tpu.memory_space<vmem>>, %arg5: memref<3x128x256xbf16, #tpu.memory_space<vmem>>, %arg6: memref<3x1x256xf32, #tpu.memory_space<vmem>>, %arg7: memref<3x1x128xf32, #tpu.memory_space<vmem>>, %arg8: memref<3x1x128xf32, #tpu.memory_space<vmem>>, %arg9: memref<3x128x128xbf16, #tpu.memory_space<vmem>>, %arg10: memref<3x1x128xf32, #tpu.memory_space<vmem>>, %arg11: memref<3x1x128xf32, #tpu.memory_space<vmem>>, %arg12: memref<3x1x128xf32, #tpu.memory_space<vmem>>, %arg13: memref<3x128x128xbf16, #tpu.memory_space<vmem>>, %arg14: memref<3x1x128xf32, #tpu.memory_space<vmem>>, %arg15: memref<3x128x128xbf16, #tpu.memory_space<vmem>>, %arg16: memref<3x128x128xbf16, #tpu.memory_space<vmem>>, %arg17: memref<3x1x128xf32, #tpu.memory_space<vmem>>, %arg18: memref<3x1x32x128xf32, #tpu.memory_space<vmem>>) attributes {dimension_semantics = [#tpu.dimension_semantics<parallel>], iteration_bounds = array<i64: 2>, scalar_prefetch = 0 : i64, scratch_operands = 0 : i64, tpu.core_type = #tpu.core_type<tc>, window_params = [{pipeline_mode = #tpu.pipeline_mode<synchronous>, transform_indices = @transform_0, window_bounds = array<i64: 32, 128>}, {pipeline_mode = #tpu.pipeline_mode<synchronous>, transform_indices = @transform_1, window_bounds = array<i64: 32, 128>}, {pipeline_mode = #tpu.pipeline_mode<synchronous>, transform_indices = @transform_2, window_bounds = array<i64: 32, 128>}, {transform_indices = @transform_3, window_bounds = array<i64: 1, 64, 128>}, {pipeline_mode = #tpu.pipeline_mode<synchronous>, transform_indices = @transform_4, window_bounds = array<i64: 3, 128, 256>}, {pipeline_mode = #tpu.pipeline_mode<synchronous>, transform_indices = @transform_5, window_bounds = array<i64: 3, 1, 256>}, {pipeline_mode = #tpu.pipeline_mode<synchronous>, transform_indices = @transform_6, window_bounds = array<i64: 3, 1, 128>}, {pipeline_mode = #tpu.pipeline_mode<synchronous>, transform_indices = @transform_7, window_bounds = array<i64: 3, 1, 128>}, {pipeline_mode = #tpu.pipeline_mode<synchronous>, transform_indices = @transform_8, window_bounds = array<i64: 3, 128, 128>}, {pipeline_mode = #tpu.pipeline_mode<synchronous>, transform_indices = @transform_9, window_bounds = array<i64: 3, 1, 128>}, {pipeline_mode = #tpu.pipeline_mode<synchronous>, transform_indices = @transform_10, window_bounds = array<i64: 3, 1, 128>}, {pipeline_mode = #tpu.pipeline_mode<synchronous>, transform_indices = @transform_11, window_bounds = array<i64: 3, 1, 128>}, {pipeline_mode = #tpu.pipeline_mode<synchronous>, transform_indices = @transform_12, window_bounds = array<i64: 3, 128, 128>}, {pipeline_mode = #tpu.pipeline_mode<synchronous>, transform_indices = @transform_13, window_bounds = array<i64: 3, 1, 128>}, {pipeline_mode = #tpu.pipeline_mode<synchronous>, transform_indices = @transform_14, window_bounds = array<i64: 3, 128, 128>}, {pipeline_mode = #tpu.pipeline_mode<synchronous>, transform_indices = @transform_15, window_bounds = array<i64: 3, 128, 128>}, {pipeline_mode = #tpu.pipeline_mode<synchronous>, transform_indices = @transform_16, window_bounds = array<i64: 3, 1, 128>}, {transform_indices = @transform_17, window_bounds = array<i64: 3, 1, 32, 128>}]} {
    %c0 = arith.constant 0 : index
    %c0_0 = arith.constant 0 : index
    %0 = vector.load %arg2[%c0, %c0_0] : memref<32x128xf32, #tpu.memory_space<vmem>>, vector<32x128xf32>
    %c0_1 = arith.constant 0 : index
    %c0_2 = arith.constant 0 : index
    %1 = vector.load %arg1[%c0_1, %c0_2] : memref<32x128xf32, #tpu.memory_space<vmem>>, vector<32x128xf32>
    %c0_3 = arith.constant 0 : index
    %c0_4 = arith.constant 0 : index
    %2 = vector.load %arg3[%c0_3, %c0_4] : memref<32x128xf32, #tpu.memory_space<vmem>>, vector<32x128xf32>
    %c0_5 = arith.constant 0 : index
    %c0_6 = arith.constant 0 : index
    %c0_7 = arith.constant 0 : index
    %3 = vector.load %arg4[%c0_5, %c0_6, %c0_7] : memref<1x64x128xbf16, #tpu.memory_space<vmem>>, vector<1x64x128xbf16>
    %4 = vector.shape_cast %3 : vector<1x64x128xbf16> to vector<64x128xbf16>
    %5 = tpu.iota {dimensions = array<i32: 1>} : vector<1x128xi32>
    %c8_i32 = arith.constant 8 : i32
    %6 = vector.broadcast %c8_i32 : i32 to vector<1x128xi32>
    %7 = arith.cmpi eq, %5, %6 : vector<1x128xi32>
    %c9_i32 = arith.constant 9 : i32
    %8 = vector.broadcast %c9_i32 : i32 to vector<1x128xi32>
    %9 = arith.cmpi eq, %5, %8 : vector<1x128xi32>
    %c12_i32 = arith.constant 12 : i32
    %10 = vector.broadcast %c12_i32 : i32 to vector<1x128xi32>
    %11 = arith.cmpi eq, %5, %10 : vector<1x128xi32>
    %12 = arith.ori %7, %9 : vector<1x128xi1>
    %13 = arith.ori %12, %11 : vector<1x128xi1>
    %cst = arith.constant 8.000000e+00 : f32
    %cst_8 = arith.constant 1.000000e+00 : f32
    %14 = vector.broadcast %cst : f32 to vector<1x128xf32>
    %15 = vector.broadcast %cst_8 : f32 to vector<1x128xf32>
    %16 = arith.select %11, %14, %15 : vector<1x128xi1>, vector<1x128xf32>
    %cst_9 = arith.constant 1.024000e+02 : f32
    %17 = vector.broadcast %cst_9 : f32 to vector<1x128xf32>
    %18 = arith.select %9, %17, %16 : vector<1x128xi1>, vector<1x128xf32>
    %cst_10 = arith.constant 1.024000e+02 : f32
    %19 = vector.broadcast %cst_10 : f32 to vector<1x128xf32>
    %20 = arith.select %7, %19, %18 : vector<1x128xi1>, vector<1x128xf32>
    %cst_11 = arith.constant -5.000000e+00 : f32
    %cst_12 = arith.constant 0.000000e+00 : f32
    %21 = vector.broadcast %cst_11 : f32 to vector<1x128xf32>
    %22 = vector.broadcast %cst_12 : f32 to vector<1x128xf32>
    %23 = arith.select %11, %21, %22 : vector<1x128xi1>, vector<1x128xf32>
    %cst_13 = arith.constant -5.120000e+01 : f32
    %24 = vector.broadcast %cst_13 : f32 to vector<1x128xf32>
    %25 = arith.select %9, %24, %23 : vector<1x128xi1>, vector<1x128xf32>
    %cst_14 = arith.constant -5.120000e+01 : f32
    %26 = vector.broadcast %cst_14 : f32 to vector<1x128xf32>
    %27 = arith.select %7, %26, %25 : vector<1x128xi1>, vector<1x128xf32>
    %28 = arith.addf %1, %0 : vector<32x128xf32>
    %29 = arith.truncf %28 : vector<32x128xf32> to vector<32x128xbf16>
    %cst_15 = arith.constant dense<0.000000e+00> : vector<32x64xf32>
    %30 = tpu.matmul %29, %4, %cst_15 {dimension_numbers = #tpu.dot_dimension_numbers<[1], [1], [0], [0], [0, 0, 1, 0], [], []>} : vector<32x128xbf16>, vector<64x128xbf16>, vector<32x64xf32> -> vector<32x64xf32>
    %cst_16 = arith.constant 0.0883883461 : f32
    %31 = vector.broadcast %cst_16 : f32 to vector<32x64xf32>
    %32 = arith.mulf %30, %31 : vector<32x64xf32>
    %cst_17 = arith.constant dense<0xFF800000> : vector<32xf32>
    %33 = vector.multi_reduction <maximumf>, %32, %cst_17 [1] : vector<32x64xf32> to vector<32xf32>
    %34 = vector.shape_cast %33 : vector<32xf32> to vector<32x1xf32>
    %35 = vector.broadcast %34 : vector<32x1xf32> to vector<32x64xf32>
    %36 = arith.subf %32, %35 : vector<32x64xf32>
    %37 = math.exp %36 : vector<32x64xf32>
    %cst_18 = arith.constant dense<0.000000e+00> : vector<32xf32>
    %38 = vector.multi_reduction <add>, %37, %cst_18 [1] : vector<32x64xf32> to vector<32xf32>
    %39 = vector.shape_cast %38 : vector<32xf32> to vector<32x1xf32>
    %40 = tpu.reciprocal %39 {approx = true} : vector<32x1xf32> -> vector<32x1xf32>
    %41 = vector.broadcast %40 : vector<32x1xf32> to vector<32x64xf32>
    %42 = arith.mulf %37, %41 : vector<32x64xf32>
    %43 = arith.truncf %42 : vector<32x64xf32> to vector<32x64xbf16>
    %cst_19 = arith.constant dense<0.000000e+00> : vector<32x128xf32>
    %44 = tpu.matmul %43, %4, %cst_19 {dimension_numbers = #tpu.dot_dimension_numbers<[1], [0], [0], [1], [0, 0, 1, 1], [], []>} : vector<32x64xbf16>, vector<64x128xbf16>, vector<32x128xf32> -> vector<32x128xf32>
    %45 = arith.addf %1, %44 : vector<32x128xf32>
    %c0_20 = arith.constant 0 : index
    %c0_21 = arith.constant 0 : index
    %c0_22 = arith.constant 0 : index
    %46 = vector.load %arg5[%c0_20, %c0_21, %c0_22] : memref<3x128x256xbf16, #tpu.memory_space<vmem>>, vector<1x128x256xbf16>
    %47 = vector.shape_cast %46 : vector<1x128x256xbf16> to vector<128x256xbf16>
    %48 = arith.truncf %45 : vector<32x128xf32> to vector<32x128xbf16>
    %cst_23 = arith.constant dense<0.000000e+00> : vector<32x256xf32>
    %49 = tpu.matmul %48, %47, %cst_23 {dimension_numbers = #tpu.dot_dimension_numbers<[1], [0], [0], [1], [0, 0, 1, 1], [], []>} : vector<32x128xbf16>, vector<128x256xbf16>, vector<32x256xf32> -> vector<32x256xf32>
    %c0_24 = arith.constant 0 : index
    %c0_25 = arith.constant 0 : index
    %c0_26 = arith.constant 0 : index
    %50 = vector.load %arg6[%c0_24, %c0_25, %c0_26] : memref<3x1x256xf32, #tpu.memory_space<vmem>>, vector<1x1x256xf32>
    %51 = vector.shape_cast %50 : vector<1x1x256xf32> to vector<1x256xf32>
    %52 = vector.broadcast %51 : vector<1x256xf32> to vector<32x256xf32>
    %53 = arith.addf %49, %52 : vector<32x256xf32>
    %54 = vector.extract_strided_slice %53 {offsets = [0, 0], sizes = [32, 128], strides = [1, 1]} : vector<32x256xf32> to vector<32x128xf32>
    %55 = vector.extract_strided_slice %53 {offsets = [0, 128], sizes = [32, 128], strides = [1, 1]} : vector<32x256xf32> to vector<32x128xf32>
    %cst_27 = arith.constant 0.000000e+00 : f32
    %56 = vector.broadcast %cst_27 : f32 to vector<32x128xf32>
    %57 = arith.maximumf %55, %56 : vector<32x128xf32>
    %c0_28 = arith.constant 0 : index
    %c0_29 = arith.constant 0 : index
    %c0_30 = arith.constant 0 : index
    %58 = vector.load %arg7[%c0_28, %c0_29, %c0_30] : memref<3x1x128xf32, #tpu.memory_space<vmem>>, vector<1x1x128xf32>
    %59 = vector.shape_cast %58 : vector<1x1x128xf32> to vector<1x128xf32>
    %c0_31 = arith.constant 0 : index
    %c0_32 = arith.constant 0 : index
    %c0_33 = arith.constant 0 : index
    %60 = vector.load %arg8[%c0_31, %c0_32, %c0_33] : memref<3x1x128xf32, #tpu.memory_space<vmem>>, vector<1x1x128xf32>
    %61 = vector.shape_cast %60 : vector<1x1x128xf32> to vector<1x128xf32>
    %cst_34 = arith.constant dense<0.000000e+00> : vector<32xf32>
    %62 = vector.multi_reduction <add>, %54, %cst_34 [1] : vector<32x128xf32> to vector<32xf32>
    %63 = vector.shape_cast %62 : vector<32xf32> to vector<32x1xf32>
    %cst_35 = arith.constant 1.280000e+02 : f32
    %64 = vector.broadcast %cst_35 : f32 to vector<32x1xf32>
    %65 = arith.divf %63, %64 : vector<32x1xf32>
    %66 = arith.mulf %54, %54 : vector<32x128xf32>
    %cst_36 = arith.constant dense<0.000000e+00> : vector<32xf32>
    %67 = vector.multi_reduction <add>, %66, %cst_36 [1] : vector<32x128xf32> to vector<32xf32>
    %68 = vector.shape_cast %67 : vector<32xf32> to vector<32x1xf32>
    %cst_37 = arith.constant 1.280000e+02 : f32
    %69 = vector.broadcast %cst_37 : f32 to vector<32x1xf32>
    %70 = arith.divf %68, %69 : vector<32x1xf32>
    %71 = arith.mulf %65, %65 : vector<32x1xf32>
    %72 = arith.subf %70, %71 : vector<32x1xf32>
    %cst_38 = arith.constant 0.000000e+00 : f32
    %73 = vector.broadcast %cst_38 : f32 to vector<32x1xf32>
    %74 = arith.maximumf %72, %73 : vector<32x1xf32>
    %75 = vector.broadcast %65 : vector<32x1xf32> to vector<32x128xf32>
    %76 = arith.subf %54, %75 : vector<32x128xf32>
    %cst_39 = arith.constant 9.99999974E-6 : f32
    %77 = vector.broadcast %cst_39 : f32 to vector<32x1xf32>
    %78 = arith.addf %74, %77 : vector<32x1xf32>
    %79 = math.rsqrt %78 : vector<32x1xf32>
    %80 = vector.broadcast %79 : vector<32x1xf32> to vector<32x128xf32>
    %81 = arith.mulf %76, %80 : vector<32x128xf32>
    %82 = vector.broadcast %59 : vector<1x128xf32> to vector<32x128xf32>
    %83 = arith.mulf %81, %82 : vector<32x128xf32>
    %84 = vector.broadcast %61 : vector<1x128xf32> to vector<32x128xf32>
    %85 = arith.addf %83, %84 : vector<32x128xf32>
    %cst_40 = arith.constant 0.000000e+00 : f32
    %86 = vector.broadcast %cst_40 : f32 to vector<32x128xf32>
    %87 = arith.maximumf %85, %86 : vector<32x128xf32>
    %c0_41 = arith.constant 0 : index
    %c0_42 = arith.constant 0 : index
    %c0_43 = arith.constant 0 : index
    %88 = vector.load %arg9[%c0_41, %c0_42, %c0_43] : memref<3x128x128xbf16, #tpu.memory_space<vmem>>, vector<1x128x128xbf16>
    %89 = vector.shape_cast %88 : vector<1x128x128xbf16> to vector<128x128xbf16>
    %90 = arith.truncf %87 : vector<32x128xf32> to vector<32x128xbf16>
    %cst_44 = arith.constant dense<0.000000e+00> : vector<32x128xf32>
    %91 = tpu.matmul %90, %89, %cst_44 {dimension_numbers = #tpu.dot_dimension_numbers<[1], [0], [0], [1], [0, 0, 1, 1], [], []>} : vector<32x128xbf16>, vector<128x128xbf16>, vector<32x128xf32> -> vector<32x128xf32>
    %c0_45 = arith.constant 0 : index
    %c0_46 = arith.constant 0 : index
    %c0_47 = arith.constant 0 : index
    %92 = vector.load %arg10[%c0_45, %c0_46, %c0_47] : memref<3x1x128xf32, #tpu.memory_space<vmem>>, vector<1x1x128xf32>
    %93 = vector.shape_cast %92 : vector<1x1x128xf32> to vector<1x128xf32>
    %94 = vector.broadcast %93 : vector<1x128xf32> to vector<32x128xf32>
    %95 = arith.addf %91, %94 : vector<32x128xf32>
    %c0_48 = arith.constant 0 : index
    %c0_49 = arith.constant 0 : index
    %c0_50 = arith.constant 0 : index
    %96 = vector.load %arg11[%c0_48, %c0_49, %c0_50] : memref<3x1x128xf32, #tpu.memory_space<vmem>>, vector<1x1x128xf32>
    %97 = vector.shape_cast %96 : vector<1x1x128xf32> to vector<1x128xf32>
    %c0_51 = arith.constant 0 : index
    %c0_52 = arith.constant 0 : index
    %c0_53 = arith.constant 0 : index
    %98 = vector.load %arg12[%c0_51, %c0_52, %c0_53] : memref<3x1x128xf32, #tpu.memory_space<vmem>>, vector<1x1x128xf32>
    %99 = vector.shape_cast %98 : vector<1x1x128xf32> to vector<1x128xf32>
    %cst_54 = arith.constant dense<0.000000e+00> : vector<32xf32>
    %100 = vector.multi_reduction <add>, %95, %cst_54 [1] : vector<32x128xf32> to vector<32xf32>
    %101 = vector.shape_cast %100 : vector<32xf32> to vector<32x1xf32>
    %cst_55 = arith.constant 1.280000e+02 : f32
    %102 = vector.broadcast %cst_55 : f32 to vector<32x1xf32>
    %103 = arith.divf %101, %102 : vector<32x1xf32>
    %104 = arith.mulf %95, %95 : vector<32x128xf32>
    %cst_56 = arith.constant dense<0.000000e+00> : vector<32xf32>
    %105 = vector.multi_reduction <add>, %104, %cst_56 [1] : vector<32x128xf32> to vector<32xf32>
    %106 = vector.shape_cast %105 : vector<32xf32> to vector<32x1xf32>
    %cst_57 = arith.constant 1.280000e+02 : f32
    %107 = vector.broadcast %cst_57 : f32 to vector<32x1xf32>
    %108 = arith.divf %106, %107 : vector<32x1xf32>
    %109 = arith.mulf %103, %103 : vector<32x1xf32>
    %110 = arith.subf %108, %109 : vector<32x1xf32>
    %cst_58 = arith.constant 0.000000e+00 : f32
    %111 = vector.broadcast %cst_58 : f32 to vector<32x1xf32>
    %112 = arith.maximumf %110, %111 : vector<32x1xf32>
    %113 = vector.broadcast %103 : vector<32x1xf32> to vector<32x128xf32>
    %114 = arith.subf %95, %113 : vector<32x128xf32>
    %cst_59 = arith.constant 9.99999974E-6 : f32
    %115 = vector.broadcast %cst_59 : f32 to vector<32x1xf32>
    %116 = arith.addf %112, %115 : vector<32x1xf32>
    %117 = math.rsqrt %116 : vector<32x1xf32>
    %118 = vector.broadcast %117 : vector<32x1xf32> to vector<32x128xf32>
    %119 = arith.mulf %114, %118 : vector<32x128xf32>
    %120 = vector.broadcast %97 : vector<1x128xf32> to vector<32x128xf32>
    %121 = arith.mulf %119, %120 : vector<32x128xf32>
    %122 = vector.broadcast %99 : vector<1x128xf32> to vector<32x128xf32>
    %123 = arith.addf %121, %122 : vector<32x128xf32>
    %cst_60 = arith.constant 0.000000e+00 : f32
    %124 = vector.broadcast %cst_60 : f32 to vector<32x128xf32>
    %125 = arith.maximumf %123, %124 : vector<32x128xf32>
    %c0_61 = arith.constant 0 : index
    %c0_62 = arith.constant 0 : index
    %c0_63 = arith.constant 0 : index
    %126 = vector.load %arg13[%c0_61, %c0_62, %c0_63] : memref<3x128x128xbf16, #tpu.memory_space<vmem>>, vector<1x128x128xbf16>
    %127 = vector.shape_cast %126 : vector<1x128x128xbf16> to vector<128x128xbf16>
    %128 = arith.truncf %57 : vector<32x128xf32> to vector<32x128xbf16>
    %cst_64 = arith.constant dense<0.000000e+00> : vector<32x128xf32>
    %129 = tpu.matmul %128, %127, %cst_64 {dimension_numbers = #tpu.dot_dimension_numbers<[1], [0], [0], [1], [0, 0, 1, 1], [], []>} : vector<32x128xbf16>, vector<128x128xbf16>, vector<32x128xf32> -> vector<32x128xf32>
    %c0_65 = arith.constant 0 : index
    %c0_66 = arith.constant 0 : index
    %c0_67 = arith.constant 0 : index
    %130 = vector.load %arg14[%c0_65, %c0_66, %c0_67] : memref<3x1x128xf32, #tpu.memory_space<vmem>>, vector<1x1x128xf32>
    %131 = vector.shape_cast %130 : vector<1x1x128xf32> to vector<1x128xf32>
    %132 = vector.broadcast %131 : vector<1x128xf32> to vector<32x128xf32>
    %133 = arith.addf %129, %132 : vector<32x128xf32>
    %cst_68 = arith.constant 0.000000e+00 : f32
    %134 = vector.broadcast %cst_68 : f32 to vector<32x128xf32>
    %135 = arith.maximumf %133, %134 : vector<32x128xf32>
    %c0_69 = arith.constant 0 : index
    %c0_70 = arith.constant 0 : index
    %c0_71 = arith.constant 0 : index
    %136 = vector.load %arg15[%c0_69, %c0_70, %c0_71] : memref<3x128x128xbf16, #tpu.memory_space<vmem>>, vector<1x128x128xbf16>
    %137 = vector.shape_cast %136 : vector<1x128x128xbf16> to vector<128x128xbf16>
    %138 = arith.truncf %125 : vector<32x128xf32> to vector<32x128xbf16>
    %cst_72 = arith.constant dense<0.000000e+00> : vector<32x128xf32>
    %139 = tpu.matmul %138, %137, %cst_72 {dimension_numbers = #tpu.dot_dimension_numbers<[1], [0], [0], [1], [0, 0, 1, 1], [], []>} : vector<32x128xbf16>, vector<128x128xbf16>, vector<32x128xf32> -> vector<32x128xf32>
    %c0_73 = arith.constant 0 : index
    %c0_74 = arith.constant 0 : index
    %c0_75 = arith.constant 0 : index
    %140 = vector.load %arg16[%c0_73, %c0_74, %c0_75] : memref<3x128x128xbf16, #tpu.memory_space<vmem>>, vector<1x128x128xbf16>
    %141 = vector.shape_cast %140 : vector<1x128x128xbf16> to vector<128x128xbf16>
    %142 = arith.truncf %135 : vector<32x128xf32> to vector<32x128xbf16>
    %cst_76 = arith.constant dense<0.000000e+00> : vector<32x128xf32>
    %143 = tpu.matmul %142, %141, %cst_76 {dimension_numbers = #tpu.dot_dimension_numbers<[1], [0], [0], [1], [0, 0, 1, 1], [], []>} : vector<32x128xbf16>, vector<128x128xbf16>, vector<32x128xf32> -> vector<32x128xf32>
    %144 = arith.addf %139, %143 : vector<32x128xf32>
    %c0_77 = arith.constant 0 : index
    %c0_78 = arith.constant 0 : index
    %c0_79 = arith.constant 0 : index
    %145 = vector.load %arg17[%c0_77, %c0_78, %c0_79] : memref<3x1x128xf32, #tpu.memory_space<vmem>>, vector<1x1x128xf32>
    %146 = vector.shape_cast %145 : vector<1x1x128xf32> to vector<1x128xf32>
    %147 = vector.broadcast %146 : vector<1x128xf32> to vector<32x128xf32>
    %148 = arith.addf %144, %147 : vector<32x128xf32>
    %cst_80 = arith.constant 0.000000e+00 : f32
    %cst_81 = arith.constant 1.000000e+00 : f32
    %149 = vector.broadcast %cst_80 : f32 to vector<32x128xf32>
    %150 = arith.maximumf %149, %2 : vector<32x128xf32>
    %151 = vector.broadcast %cst_81 : f32 to vector<32x128xf32>
    %152 = arith.minimumf %151, %150 : vector<32x128xf32>
    %cst_82 = arith.constant 9.99999974E-6 : f32
    %153 = vector.broadcast %cst_82 : f32 to vector<32x128xf32>
    %154 = arith.maximumf %152, %153 : vector<32x128xf32>
    %cst_83 = arith.constant 1.000000e+00 : f32
    %155 = vector.broadcast %cst_83 : f32 to vector<32x128xf32>
    %156 = arith.subf %155, %152 : vector<32x128xf32>
    %cst_84 = arith.constant 9.99999974E-6 : f32
    %157 = vector.broadcast %cst_84 : f32 to vector<32x128xf32>
    %158 = arith.maximumf %156, %157 : vector<32x128xf32>
    %159 = arith.divf %154, %158 : vector<32x128xf32>
    %160 = math.log %159 : vector<32x128xf32>
    %cst_85 = arith.constant 0.000000e+00 : f32
    %161 = vector.shape_cast %13 : vector<1x128xi1> to vector<1x128xi1>
    %162 = vector.broadcast %161 : vector<1x128xi1> to vector<32x128xi1>
    %163 = vector.broadcast %cst_85 : f32 to vector<32x128xf32>
    %164 = arith.select %162, %160, %163 : vector<32x128xi1>, vector<32x128xf32>
    %165 = arith.addf %148, %164 : vector<32x128xf32>
    %cst_86 = arith.constant 0.000000e+00 : f32
    %166 = vector.broadcast %cst_86 : f32 to vector<32x128xf32>
    %167 = arith.subf %166, %165 : vector<32x128xf32>
    %168 = math.exp %167 : vector<32x128xf32>
    %cst_87 = arith.constant 1.000000e+00 : f32
    %169 = vector.broadcast %cst_87 : f32 to vector<32x128xf32>
    %170 = arith.addf %169, %168 : vector<32x128xf32>
    %cst_88 = arith.constant 1.000000e+00 : f32
    %171 = vector.broadcast %cst_88 : f32 to vector<32x128xf32>
    %172 = arith.divf %171, %170 : vector<32x128xf32>
    %173 = vector.shape_cast %13 : vector<1x128xi1> to vector<1x128xi1>
    %174 = vector.broadcast %173 : vector<1x128xi1> to vector<32x128xi1>
    %175 = arith.select %174, %172, %148 : vector<32x128xi1>, vector<32x128xf32>
    %176 = vector.broadcast %20 : vector<1x128xf32> to vector<32x128xf32>
    %177 = arith.mulf %175, %176 : vector<32x128xf32>
    %178 = vector.broadcast %27 : vector<1x128xf32> to vector<32x128xf32>
    %179 = arith.addf %177, %178 : vector<32x128xf32>
    %c0_89 = arith.constant 0 : index
    %c0_90 = arith.constant 0 : index
    %c0_91 = arith.constant 0 : index
    %c0_92 = arith.constant 0 : index
    %180 = vector.load %arg18[%c0_89, %c0_90, %c0_91, %c0_92] : memref<3x1x32x128xf32, #tpu.memory_space<vmem>>, vector<1x1x32x128xf32>
    %181 = vector.shape_cast %180 : vector<1x1x32x128xf32> to vector<32x128xf32>
    %182 = vector.shape_cast %179 : vector<32x128xf32> to vector<1x1x32x128xf32>
    tpu.vector_store %arg18[%c0_89, %c0_90, %c0_91, %c0_92], %182 {strides = array<i32>} : memref<3x1x32x128xf32, #tpu.memory_space<vmem>>, vector<1x1x32x128xf32>,
    %183 = arith.addf %45, %0 : vector<32x128xf32>
    %184 = arith.truncf %183 : vector<32x128xf32> to vector<32x128xbf16>
    %cst_93 = arith.constant dense<0.000000e+00> : vector<32x64xf32>
    %185 = tpu.matmul %184, %4, %cst_93 {dimension_numbers = #tpu.dot_dimension_numbers<[1], [1], [0], [0], [0, 0, 1, 0], [], []>} : vector<32x128xbf16>, vector<64x128xbf16>, vector<32x64xf32> -> vector<32x64xf32>
    %cst_94 = arith.constant 0.0883883461 : f32
    %186 = vector.broadcast %cst_94 : f32 to vector<32x64xf32>
    %187 = arith.mulf %185, %186 : vector<32x64xf32>
    %cst_95 = arith.constant dense<0xFF800000> : vector<32xf32>
    %188 = vector.multi_reduction <maximumf>, %187, %cst_95 [1] : vector<32x64xf32> to vector<32xf32>
    %189 = vector.shape_cast %188 : vector<32xf32> to vector<32x1xf32>
    %190 = vector.broadcast %189 : vector<32x1xf32> to vector<32x64xf32>
    %191 = arith.subf %187, %190 : vector<32x64xf32>
    %192 = math.exp %191 : vector<32x64xf32>
    %cst_96 = arith.constant dense<0.000000e+00> : vector<32xf32>
    %193 = vector.multi_reduction <add>, %192, %cst_96 [1] : vector<32x64xf32> to vector<32xf32>
    %194 = vector.shape_cast %193 : vector<32xf32> to vector<32x1xf32>
    %195 = tpu.reciprocal %194 {approx = true} : vector<32x1xf32> -> vector<32x1xf32>
    %196 = vector.broadcast %195 : vector<32x1xf32> to vector<32x64xf32>
    %197 = arith.mulf %192, %196 : vector<32x64xf32>
    %198 = arith.truncf %197 : vector<32x64xf32> to vector<32x64xbf16>
    %cst_97 = arith.constant dense<0.000000e+00> : vector<32x128xf32>
    %199 = tpu.matmul %198, %4, %cst_97 {dimension_numbers = #tpu.dot_dimension_numbers<[1], [0], [0], [1], [0, 0, 1, 1], [], []>} : vector<32x64xbf16>, vector<64x128xbf16>, vector<32x128xf32> -> vector<32x128xf32>
    %200 = arith.addf %45, %199 : vector<32x128xf32>
    %c1 = arith.constant 1 : index
    %c0_98 = arith.constant 0 : index
    %c0_99 = arith.constant 0 : index
    %201 = vector.load %arg5[%c1, %c0_98, %c0_99] : memref<3x128x256xbf16, #tpu.memory_space<vmem>>, vector<1x128x256xbf16>
    %202 = vector.shape_cast %201 : vector<1x128x256xbf16> to vector<128x256xbf16>
    %203 = arith.truncf %200 : vector<32x128xf32> to vector<32x128xbf16>
    %cst_100 = arith.constant dense<0.000000e+00> : vector<32x256xf32>
    %204 = tpu.matmul %203, %202, %cst_100 {dimension_numbers = #tpu.dot_dimension_numbers<[1], [0], [0], [1], [0, 0, 1, 1], [], []>} : vector<32x128xbf16>, vector<128x256xbf16>, vector<32x256xf32> -> vector<32x256xf32>
    %c1_101 = arith.constant 1 : index
    %c0_102 = arith.constant 0 : index
    %c0_103 = arith.constant 0 : index
    %205 = vector.load %arg6[%c1_101, %c0_102, %c0_103] : memref<3x1x256xf32, #tpu.memory_space<vmem>>, vector<1x1x256xf32>
    %206 = vector.shape_cast %205 : vector<1x1x256xf32> to vector<1x256xf32>
    %207 = vector.broadcast %206 : vector<1x256xf32> to vector<32x256xf32>
    %208 = arith.addf %204, %207 : vector<32x256xf32>
    %209 = vector.extract_strided_slice %208 {offsets = [0, 0], sizes = [32, 128], strides = [1, 1]} : vector<32x256xf32> to vector<32x128xf32>
    %210 = vector.extract_strided_slice %208 {offsets = [0, 128], sizes = [32, 128], strides = [1, 1]} : vector<32x256xf32> to vector<32x128xf32>
    %cst_104 = arith.constant 0.000000e+00 : f32
    %211 = vector.broadcast %cst_104 : f32 to vector<32x128xf32>
    %212 = arith.maximumf %210, %211 : vector<32x128xf32>
    %c1_105 = arith.constant 1 : index
    %c0_106 = arith.constant 0 : index
    %c0_107 = arith.constant 0 : index
    %213 = vector.load %arg7[%c1_105, %c0_106, %c0_107] : memref<3x1x128xf32, #tpu.memory_space<vmem>>, vector<1x1x128xf32>
    %214 = vector.shape_cast %213 : vector<1x1x128xf32> to vector<1x128xf32>
    %c1_108 = arith.constant 1 : index
    %c0_109 = arith.constant 0 : index
    %c0_110 = arith.constant 0 : index
    %215 = vector.load %arg8[%c1_108, %c0_109, %c0_110] : memref<3x1x128xf32, #tpu.memory_space<vmem>>, vector<1x1x128xf32>
    %216 = vector.shape_cast %215 : vector<1x1x128xf32> to vector<1x128xf32>
    %cst_111 = arith.constant dense<0.000000e+00> : vector<32xf32>
    %217 = vector.multi_reduction <add>, %209, %cst_111 [1] : vector<32x128xf32> to vector<32xf32>
    %218 = vector.shape_cast %217 : vector<32xf32> to vector<32x1xf32>
    %cst_112 = arith.constant 1.280000e+02 : f32
    %219 = vector.broadcast %cst_112 : f32 to vector<32x1xf32>
    %220 = arith.divf %218, %219 : vector<32x1xf32>
    %221 = arith.mulf %209, %209 : vector<32x128xf32>
    %cst_113 = arith.constant dense<0.000000e+00> : vector<32xf32>
    %222 = vector.multi_reduction <add>, %221, %cst_113 [1] : vector<32x128xf32> to vector<32xf32>
    %223 = vector.shape_cast %222 : vector<32xf32> to vector<32x1xf32>
    %cst_114 = arith.constant 1.280000e+02 : f32
    %224 = vector.broadcast %cst_114 : f32 to vector<32x1xf32>
    %225 = arith.divf %223, %224 : vector<32x1xf32>
    %226 = arith.mulf %220, %220 : vector<32x1xf32>
    %227 = arith.subf %225, %226 : vector<32x1xf32>
    %cst_115 = arith.constant 0.000000e+00 : f32
    %228 = vector.broadcast %cst_115 : f32 to vector<32x1xf32>
    %229 = arith.maximumf %227, %228 : vector<32x1xf32>
    %230 = vector.broadcast %220 : vector<32x1xf32> to vector<32x128xf32>
    %231 = arith.subf %209, %230 : vector<32x128xf32>
    %cst_116 = arith.constant 9.99999974E-6 : f32
    %232 = vector.broadcast %cst_116 : f32 to vector<32x1xf32>
    %233 = arith.addf %229, %232 : vector<32x1xf32>
    %234 = math.rsqrt %233 : vector<32x1xf32>
    %235 = vector.broadcast %234 : vector<32x1xf32> to vector<32x128xf32>
    %236 = arith.mulf %231, %235 : vector<32x128xf32>
    %237 = vector.broadcast %214 : vector<1x128xf32> to vector<32x128xf32>
    %238 = arith.mulf %236, %237 : vector<32x128xf32>
    %239 = vector.broadcast %216 : vector<1x128xf32> to vector<32x128xf32>
    %240 = arith.addf %238, %239 : vector<32x128xf32>
    %cst_117 = arith.constant 0.000000e+00 : f32
    %241 = vector.broadcast %cst_117 : f32 to vector<32x128xf32>
    %242 = arith.maximumf %240, %241 : vector<32x128xf32>
    %c1_118 = arith.constant 1 : index
    %c0_119 = arith.constant 0 : index
    %c0_120 = arith.constant 0 : index
    %243 = vector.load %arg9[%c1_118, %c0_119, %c0_120] : memref<3x128x128xbf16, #tpu.memory_space<vmem>>, vector<1x128x128xbf16>
    %244 = vector.shape_cast %243 : vector<1x128x128xbf16> to vector<128x128xbf16>
    %245 = arith.truncf %242 : vector<32x128xf32> to vector<32x128xbf16>
    %cst_121 = arith.constant dense<0.000000e+00> : vector<32x128xf32>
    %246 = tpu.matmul %245, %244, %cst_121 {dimension_numbers = #tpu.dot_dimension_numbers<[1], [0], [0], [1], [0, 0, 1, 1], [], []>} : vector<32x128xbf16>, vector<128x128xbf16>, vector<32x128xf32> -> vector<32x128xf32>
    %c1_122 = arith.constant 1 : index
    %c0_123 = arith.constant 0 : index
    %c0_124 = arith.constant 0 : index
    %247 = vector.load %arg10[%c1_122, %c0_123, %c0_124] : memref<3x1x128xf32, #tpu.memory_space<vmem>>, vector<1x1x128xf32>
    %248 = vector.shape_cast %247 : vector<1x1x128xf32> to vector<1x128xf32>
    %249 = vector.broadcast %248 : vector<1x128xf32> to vector<32x128xf32>
    %250 = arith.addf %246, %249 : vector<32x128xf32>
    %c1_125 = arith.constant 1 : index
    %c0_126 = arith.constant 0 : index
    %c0_127 = arith.constant 0 : index
    %251 = vector.load %arg11[%c1_125, %c0_126, %c0_127] : memref<3x1x128xf32, #tpu.memory_space<vmem>>, vector<1x1x128xf32>
    %252 = vector.shape_cast %251 : vector<1x1x128xf32> to vector<1x128xf32>
    %c1_128 = arith.constant 1 : index
    %c0_129 = arith.constant 0 : index
    %c0_130 = arith.constant 0 : index
    %253 = vector.load %arg12[%c1_128, %c0_129, %c0_130] : memref<3x1x128xf32, #tpu.memory_space<vmem>>, vector<1x1x128xf32>
    %254 = vector.shape_cast %253 : vector<1x1x128xf32> to vector<1x128xf32>
    %cst_131 = arith.constant dense<0.000000e+00> : vector<32xf32>
    %255 = vector.multi_reduction <add>, %250, %cst_131 [1] : vector<32x128xf32> to vector<32xf32>
    %256 = vector.shape_cast %255 : vector<32xf32> to vector<32x1xf32>
    %cst_132 = arith.constant 1.280000e+02 : f32
    %257 = vector.broadcast %cst_132 : f32 to vector<32x1xf32>
    %258 = arith.divf %256, %257 : vector<32x1xf32>
    %259 = arith.mulf %250, %250 : vector<32x128xf32>
    %cst_133 = arith.constant dense<0.000000e+00> : vector<32xf32>
    %260 = vector.multi_reduction <add>, %259, %cst_133 [1] : vector<32x128xf32> to vector<32xf32>
    %261 = vector.shape_cast %260 : vector<32xf32> to vector<32x1xf32>
    %cst_134 = arith.constant 1.280000e+02 : f32
    %262 = vector.broadcast %cst_134 : f32 to vector<32x1xf32>
    %263 = arith.divf %261, %262 : vector<32x1xf32>
    %264 = arith.mulf %258, %258 : vector<32x1xf32>
    %265 = arith.subf %263, %264 : vector<32x1xf32>
    %cst_135 = arith.constant 0.000000e+00 : f32
    %266 = vector.broadcast %cst_135 : f32 to vector<32x1xf32>
    %267 = arith.maximumf %265, %266 : vector<32x1xf32>
    %268 = vector.broadcast %258 : vector<32x1xf32> to vector<32x128xf32>
    %269 = arith.subf %250, %268 : vector<32x128xf32>
    %cst_136 = arith.constant 9.99999974E-6 : f32
    %270 = vector.broadcast %cst_136 : f32 to vector<32x1xf32>
    %271 = arith.addf %267, %270 : vector<32x1xf32>
    %272 = math.rsqrt %271 : vector<32x1xf32>
    %273 = vector.broadcast %272 : vector<32x1xf32> to vector<32x128xf32>
    %274 = arith.mulf %269, %273 : vector<32x128xf32>
    %275 = vector.broadcast %252 : vector<1x128xf32> to vector<32x128xf32>
    %276 = arith.mulf %274, %275 : vector<32x128xf32>
    %277 = vector.broadcast %254 : vector<1x128xf32> to vector<32x128xf32>
    %278 = arith.addf %276, %277 : vector<32x128xf32>
    %cst_137 = arith.constant 0.000000e+00 : f32
    %279 = vector.broadcast %cst_137 : f32 to vector<32x128xf32>
    %280 = arith.maximumf %278, %279 : vector<32x128xf32>
    %c1_138 = arith.constant 1 : index
    %c0_139 = arith.constant 0 : index
    %c0_140 = arith.constant 0 : index
    %281 = vector.load %arg13[%c1_138, %c0_139, %c0_140] : memref<3x128x128xbf16, #tpu.memory_space<vmem>>, vector<1x128x128xbf16>
    %282 = vector.shape_cast %281 : vector<1x128x128xbf16> to vector<128x128xbf16>
    %283 = arith.truncf %212 : vector<32x128xf32> to vector<32x128xbf16>
    %cst_141 = arith.constant dense<0.000000e+00> : vector<32x128xf32>
    %284 = tpu.matmul %283, %282, %cst_141 {dimension_numbers = #tpu.dot_dimension_numbers<[1], [0], [0], [1], [0, 0, 1, 1], [], []>} : vector<32x128xbf16>, vector<128x128xbf16>, vector<32x128xf32> -> vector<32x128xf32>
    %c1_142 = arith.constant 1 : index
    %c0_143 = arith.constant 0 : index
    %c0_144 = arith.constant 0 : index
    %285 = vector.load %arg14[%c1_142, %c0_143, %c0_144] : memref<3x1x128xf32, #tpu.memory_space<vmem>>, vector<1x1x128xf32>
    %286 = vector.shape_cast %285 : vector<1x1x128xf32> to vector<1x128xf32>
    %287 = vector.broadcast %286 : vector<1x128xf32> to vector<32x128xf32>
    %288 = arith.addf %284, %287 : vector<32x128xf32>
    %cst_145 = arith.constant 0.000000e+00 : f32
    %289 = vector.broadcast %cst_145 : f32 to vector<32x128xf32>
    %290 = arith.maximumf %288, %289 : vector<32x128xf32>
    %c1_146 = arith.constant 1 : index
    %c0_147 = arith.constant 0 : index
    %c0_148 = arith.constant 0 : index
    %291 = vector.load %arg15[%c1_146, %c0_147, %c0_148] : memref<3x128x128xbf16, #tpu.memory_space<vmem>>, vector<1x128x128xbf16>
    %292 = vector.shape_cast %291 : vector<1x128x128xbf16> to vector<128x128xbf16>
    %293 = arith.truncf %280 : vector<32x128xf32> to vector<32x128xbf16>
    %cst_149 = arith.constant dense<0.000000e+00> : vector<32x128xf32>
    %294 = tpu.matmul %293, %292, %cst_149 {dimension_numbers = #tpu.dot_dimension_numbers<[1], [0], [0], [1], [0, 0, 1, 1], [], []>} : vector<32x128xbf16>, vector<128x128xbf16>, vector<32x128xf32> -> vector<32x128xf32>
    %c1_150 = arith.constant 1 : index
    %c0_151 = arith.constant 0 : index
    %c0_152 = arith.constant 0 : index
    %295 = vector.load %arg16[%c1_150, %c0_151, %c0_152] : memref<3x128x128xbf16, #tpu.memory_space<vmem>>, vector<1x128x128xbf16>
    %296 = vector.shape_cast %295 : vector<1x128x128xbf16> to vector<128x128xbf16>
    %297 = arith.truncf %290 : vector<32x128xf32> to vector<32x128xbf16>
    %cst_153 = arith.constant dense<0.000000e+00> : vector<32x128xf32>
    %298 = tpu.matmul %297, %296, %cst_153 {dimension_numbers = #tpu.dot_dimension_numbers<[1], [0], [0], [1], [0, 0, 1, 1], [], []>} : vector<32x128xbf16>, vector<128x128xbf16>, vector<32x128xf32> -> vector<32x128xf32>
    %299 = arith.addf %294, %298 : vector<32x128xf32>
    %c1_154 = arith.constant 1 : index
    %c0_155 = arith.constant 0 : index
    %c0_156 = arith.constant 0 : index
    %300 = vector.load %arg17[%c1_154, %c0_155, %c0_156] : memref<3x1x128xf32, #tpu.memory_space<vmem>>, vector<1x1x128xf32>
    %301 = vector.shape_cast %300 : vector<1x1x128xf32> to vector<1x128xf32>
    %302 = vector.broadcast %301 : vector<1x128xf32> to vector<32x128xf32>
    %303 = arith.addf %299, %302 : vector<32x128xf32>
    %cst_157 = arith.constant 0.000000e+00 : f32
    %cst_158 = arith.constant 1.000000e+00 : f32
    %304 = vector.broadcast %cst_157 : f32 to vector<32x128xf32>
    %305 = arith.maximumf %304, %175 : vector<32x128xf32>
    %306 = vector.broadcast %cst_158 : f32 to vector<32x128xf32>
    %307 = arith.minimumf %306, %305 : vector<32x128xf32>
    %cst_159 = arith.constant 9.99999974E-6 : f32
    %308 = vector.broadcast %cst_159 : f32 to vector<32x128xf32>
    %309 = arith.maximumf %307, %308 : vector<32x128xf32>
    %cst_160 = arith.constant 1.000000e+00 : f32
    %310 = vector.broadcast %cst_160 : f32 to vector<32x128xf32>
    %311 = arith.subf %310, %307 : vector<32x128xf32>
    %cst_161 = arith.constant 9.99999974E-6 : f32
    %312 = vector.broadcast %cst_161 : f32 to vector<32x128xf32>
    %313 = arith.maximumf %311, %312 : vector<32x128xf32>
    %314 = arith.divf %309, %313 : vector<32x128xf32>
    %315 = math.log %314 : vector<32x128xf32>
    %cst_162 = arith.constant 0.000000e+00 : f32
    %316 = vector.shape_cast %13 : vector<1x128xi1> to vector<1x128xi1>
    %317 = vector.broadcast %316 : vector<1x128xi1> to vector<32x128xi1>
    %318 = vector.broadcast %cst_162 : f32 to vector<32x128xf32>
    %319 = arith.select %317, %315, %318 : vector<32x128xi1>, vector<32x128xf32>
    %320 = arith.addf %303, %319 : vector<32x128xf32>
    %cst_163 = arith.constant 0.000000e+00 : f32
    %321 = vector.broadcast %cst_163 : f32 to vector<32x128xf32>
    %322 = arith.subf %321, %320 : vector<32x128xf32>
    %323 = math.exp %322 : vector<32x128xf32>
    %cst_164 = arith.constant 1.000000e+00 : f32
    %324 = vector.broadcast %cst_164 : f32 to vector<32x128xf32>
    %325 = arith.addf %324, %323 : vector<32x128xf32>
    %cst_165 = arith.constant 1.000000e+00 : f32
    %326 = vector.broadcast %cst_165 : f32 to vector<32x128xf32>
    %327 = arith.divf %326, %325 : vector<32x128xf32>
    %328 = vector.shape_cast %13 : vector<1x128xi1> to vector<1x128xi1>
    %329 = vector.broadcast %328 : vector<1x128xi1> to vector<32x128xi1>
    %330 = arith.select %329, %327, %303 : vector<32x128xi1>, vector<32x128xf32>
    %331 = vector.broadcast %20 : vector<1x128xf32> to vector<32x128xf32>
    %332 = arith.mulf %330, %331 : vector<32x128xf32>
    %333 = vector.broadcast %27 : vector<1x128xf32> to vector<32x128xf32>
    %334 = arith.addf %332, %333 : vector<32x128xf32>
    %c1_166 = arith.constant 1 : index
    %c0_167 = arith.constant 0 : index
    %c0_168 = arith.constant 0 : index
    %c0_169 = arith.constant 0 : index
    %335 = vector.load %arg18[%c1_166, %c0_167, %c0_168, %c0_169] : memref<3x1x32x128xf32, #tpu.memory_space<vmem>>, vector<1x1x32x128xf32>
    %336 = vector.shape_cast %335 : vector<1x1x32x128xf32> to vector<32x128xf32>
    %337 = vector.shape_cast %334 : vector<32x128xf32> to vector<1x1x32x128xf32>
    tpu.vector_store %arg18[%c1_166, %c0_167, %c0_168, %c0_169], %337 {strides = array<i32>} : memref<3x1x32x128xf32, #tpu.memory_space<vmem>>, vector<1x1x32x128xf32>,
    %338 = arith.addf %200, %0 : vector<32x128xf32>
    %339 = arith.truncf %338 : vector<32x128xf32> to vector<32x128xbf16>
    %cst_170 = arith.constant dense<0.000000e+00> : vector<32x64xf32>
    %340 = tpu.matmul %339, %4, %cst_170 {dimension_numbers = #tpu.dot_dimension_numbers<[1], [1], [0], [0], [0, 0, 1, 0], [], []>} : vector<32x128xbf16>, vector<64x128xbf16>, vector<32x64xf32> -> vector<32x64xf32>
    %cst_171 = arith.constant 0.0883883461 : f32
    %341 = vector.broadcast %cst_171 : f32 to vector<32x64xf32>
    %342 = arith.mulf %340, %341 : vector<32x64xf32>
    %cst_172 = arith.constant dense<0xFF800000> : vector<32xf32>
    %343 = vector.multi_reduction <maximumf>, %342, %cst_172 [1] : vector<32x64xf32> to vector<32xf32>
    %344 = vector.shape_cast %343 : vector<32xf32> to vector<32x1xf32>
    %345 = vector.broadcast %344 : vector<32x1xf32> to vector<32x64xf32>
    %346 = arith.subf %342, %345 : vector<32x64xf32>
    %347 = math.exp %346 : vector<32x64xf32>
    %cst_173 = arith.constant dense<0.000000e+00> : vector<32xf32>
    %348 = vector.multi_reduction <add>, %347, %cst_173 [1] : vector<32x64xf32> to vector<32xf32>
    %349 = vector.shape_cast %348 : vector<32xf32> to vector<32x1xf32>
    %350 = tpu.reciprocal %349 {approx = true} : vector<32x1xf32> -> vector<32x1xf32>
    %351 = vector.broadcast %350 : vector<32x1xf32> to vector<32x64xf32>
    %352 = arith.mulf %347, %351 : vector<32x64xf32>
    %353 = arith.truncf %352 : vector<32x64xf32> to vector<32x64xbf16>
    %cst_174 = arith.constant dense<0.000000e+00> : vector<32x128xf32>
    %354 = tpu.matmul %353, %4, %cst_174 {dimension_numbers = #tpu.dot_dimension_numbers<[1], [0], [0], [1], [0, 0, 1, 1], [], []>} : vector<32x64xbf16>, vector<64x128xbf16>, vector<32x128xf32> -> vector<32x128xf32>
    %355 = arith.addf %200, %354 : vector<32x128xf32>
    %c2 = arith.constant 2 : index
    %c0_175 = arith.constant 0 : index
    %c0_176 = arith.constant 0 : index
    %356 = vector.load %arg5[%c2, %c0_175, %c0_176] : memref<3x128x256xbf16, #tpu.memory_space<vmem>>, vector<1x128x256xbf16>
    %357 = vector.shape_cast %356 : vector<1x128x256xbf16> to vector<128x256xbf16>
    %358 = arith.truncf %355 : vector<32x128xf32> to vector<32x128xbf16>
    %cst_177 = arith.constant dense<0.000000e+00> : vector<32x256xf32>
    %359 = tpu.matmul %358, %357, %cst_177 {dimension_numbers = #tpu.dot_dimension_numbers<[1], [0], [0], [1], [0, 0, 1, 1], [], []>} : vector<32x128xbf16>, vector<128x256xbf16>, vector<32x256xf32> -> vector<32x256xf32>
    %c2_178 = arith.constant 2 : index
    %c0_179 = arith.constant 0 : index
    %c0_180 = arith.constant 0 : index
    %360 = vector.load %arg6[%c2_178, %c0_179, %c0_180] : memref<3x1x256xf32, #tpu.memory_space<vmem>>, vector<1x1x256xf32>
    %361 = vector.shape_cast %360 : vector<1x1x256xf32> to vector<1x256xf32>
    %362 = vector.broadcast %361 : vector<1x256xf32> to vector<32x256xf32>
    %363 = arith.addf %359, %362 : vector<32x256xf32>
    %364 = vector.extract_strided_slice %363 {offsets = [0, 0], sizes = [32, 128], strides = [1, 1]} : vector<32x256xf32> to vector<32x128xf32>
    %365 = vector.extract_strided_slice %363 {offsets = [0, 128], sizes = [32, 128], strides = [1, 1]} : vector<32x256xf32> to vector<32x128xf32>
    %cst_181 = arith.constant 0.000000e+00 : f32
    %366 = vector.broadcast %cst_181 : f32 to vector<32x128xf32>
    %367 = arith.maximumf %365, %366 : vector<32x128xf32>
    %c2_182 = arith.constant 2 : index
    %c0_183 = arith.constant 0 : index
    %c0_184 = arith.constant 0 : index
    %368 = vector.load %arg7[%c2_182, %c0_183, %c0_184] : memref<3x1x128xf32, #tpu.memory_space<vmem>>, vector<1x1x128xf32>
    %369 = vector.shape_cast %368 : vector<1x1x128xf32> to vector<1x128xf32>
    %c2_185 = arith.constant 2 : index
    %c0_186 = arith.constant 0 : index
    %c0_187 = arith.constant 0 : index
    %370 = vector.load %arg8[%c2_185, %c0_186, %c0_187] : memref<3x1x128xf32, #tpu.memory_space<vmem>>, vector<1x1x128xf32>
    %371 = vector.shape_cast %370 : vector<1x1x128xf32> to vector<1x128xf32>
    %cst_188 = arith.constant dense<0.000000e+00> : vector<32xf32>
    %372 = vector.multi_reduction <add>, %364, %cst_188 [1] : vector<32x128xf32> to vector<32xf32>
    %373 = vector.shape_cast %372 : vector<32xf32> to vector<32x1xf32>
    %cst_189 = arith.constant 1.280000e+02 : f32
    %374 = vector.broadcast %cst_189 : f32 to vector<32x1xf32>
    %375 = arith.divf %373, %374 : vector<32x1xf32>
    %376 = arith.mulf %364, %364 : vector<32x128xf32>
    %cst_190 = arith.constant dense<0.000000e+00> : vector<32xf32>
    %377 = vector.multi_reduction <add>, %376, %cst_190 [1] : vector<32x128xf32> to vector<32xf32>
    %378 = vector.shape_cast %377 : vector<32xf32> to vector<32x1xf32>
    %cst_191 = arith.constant 1.280000e+02 : f32
    %379 = vector.broadcast %cst_191 : f32 to vector<32x1xf32>
    %380 = arith.divf %378, %379 : vector<32x1xf32>
    %381 = arith.mulf %375, %375 : vector<32x1xf32>
    %382 = arith.subf %380, %381 : vector<32x1xf32>
    %cst_192 = arith.constant 0.000000e+00 : f32
    %383 = vector.broadcast %cst_192 : f32 to vector<32x1xf32>
    %384 = arith.maximumf %382, %383 : vector<32x1xf32>
    %385 = vector.broadcast %375 : vector<32x1xf32> to vector<32x128xf32>
    %386 = arith.subf %364, %385 : vector<32x128xf32>
    %cst_193 = arith.constant 9.99999974E-6 : f32
    %387 = vector.broadcast %cst_193 : f32 to vector<32x1xf32>
    %388 = arith.addf %384, %387 : vector<32x1xf32>
    %389 = math.rsqrt %388 : vector<32x1xf32>
    %390 = vector.broadcast %389 : vector<32x1xf32> to vector<32x128xf32>
    %391 = arith.mulf %386, %390 : vector<32x128xf32>
    %392 = vector.broadcast %369 : vector<1x128xf32> to vector<32x128xf32>
    %393 = arith.mulf %391, %392 : vector<32x128xf32>
    %394 = vector.broadcast %371 : vector<1x128xf32> to vector<32x128xf32>
    %395 = arith.addf %393, %394 : vector<32x128xf32>
    %cst_194 = arith.constant 0.000000e+00 : f32
    %396 = vector.broadcast %cst_194 : f32 to vector<32x128xf32>
    %397 = arith.maximumf %395, %396 : vector<32x128xf32>
    %c2_195 = arith.constant 2 : index
    %c0_196 = arith.constant 0 : index
    %c0_197 = arith.constant 0 : index
    %398 = vector.load %arg9[%c2_195, %c0_196, %c0_197] : memref<3x128x128xbf16, #tpu.memory_space<vmem>>, vector<1x128x128xbf16>
    %399 = vector.shape_cast %398 : vector<1x128x128xbf16> to vector<128x128xbf16>
    %400 = arith.truncf %397 : vector<32x128xf32> to vector<32x128xbf16>
    %cst_198 = arith.constant dense<0.000000e+00> : vector<32x128xf32>
    %401 = tpu.matmul %400, %399, %cst_198 {dimension_numbers = #tpu.dot_dimension_numbers<[1], [0], [0], [1], [0, 0, 1, 1], [], []>} : vector<32x128xbf16>, vector<128x128xbf16>, vector<32x128xf32> -> vector<32x128xf32>
    %c2_199 = arith.constant 2 : index
    %c0_200 = arith.constant 0 : index
    %c0_201 = arith.constant 0 : index
    %402 = vector.load %arg10[%c2_199, %c0_200, %c0_201] : memref<3x1x128xf32, #tpu.memory_space<vmem>>, vector<1x1x128xf32>
    %403 = vector.shape_cast %402 : vector<1x1x128xf32> to vector<1x128xf32>
    %404 = vector.broadcast %403 : vector<1x128xf32> to vector<32x128xf32>
    %405 = arith.addf %401, %404 : vector<32x128xf32>
    %c2_202 = arith.constant 2 : index
    %c0_203 = arith.constant 0 : index
    %c0_204 = arith.constant 0 : index
    %406 = vector.load %arg11[%c2_202, %c0_203, %c0_204] : memref<3x1x128xf32, #tpu.memory_space<vmem>>, vector<1x1x128xf32>
    %407 = vector.shape_cast %406 : vector<1x1x128xf32> to vector<1x128xf32>
    %c2_205 = arith.constant 2 : index
    %c0_206 = arith.constant 0 : index
    %c0_207 = arith.constant 0 : index
    %408 = vector.load %arg12[%c2_205, %c0_206, %c0_207] : memref<3x1x128xf32, #tpu.memory_space<vmem>>, vector<1x1x128xf32>
    %409 = vector.shape_cast %408 : vector<1x1x128xf32> to vector<1x128xf32>
    %cst_208 = arith.constant dense<0.000000e+00> : vector<32xf32>
    %410 = vector.multi_reduction <add>, %405, %cst_208 [1] : vector<32x128xf32> to vector<32xf32>
    %411 = vector.shape_cast %410 : vector<32xf32> to vector<32x1xf32>
    %cst_209 = arith.constant 1.280000e+02 : f32
    %412 = vector.broadcast %cst_209 : f32 to vector<32x1xf32>
    %413 = arith.divf %411, %412 : vector<32x1xf32>
    %414 = arith.mulf %405, %405 : vector<32x128xf32>
    %cst_210 = arith.constant dense<0.000000e+00> : vector<32xf32>
    %415 = vector.multi_reduction <add>, %414, %cst_210 [1] : vector<32x128xf32> to vector<32xf32>
    %416 = vector.shape_cast %415 : vector<32xf32> to vector<32x1xf32>
    %cst_211 = arith.constant 1.280000e+02 : f32
    %417 = vector.broadcast %cst_211 : f32 to vector<32x1xf32>
    %418 = arith.divf %416, %417 : vector<32x1xf32>
    %419 = arith.mulf %413, %413 : vector<32x1xf32>
    %420 = arith.subf %418, %419 : vector<32x1xf32>
    %cst_212 = arith.constant 0.000000e+00 : f32
    %421 = vector.broadcast %cst_212 : f32 to vector<32x1xf32>
    %422 = arith.maximumf %420, %421 : vector<32x1xf32>
    %423 = vector.broadcast %413 : vector<32x1xf32> to vector<32x128xf32>
    %424 = arith.subf %405, %423 : vector<32x128xf32>
    %cst_213 = arith.constant 9.99999974E-6 : f32
    %425 = vector.broadcast %cst_213 : f32 to vector<32x1xf32>
    %426 = arith.addf %422, %425 : vector<32x1xf32>
    %427 = math.rsqrt %426 : vector<32x1xf32>
    %428 = vector.broadcast %427 : vector<32x1xf32> to vector<32x128xf32>
    %429 = arith.mulf %424, %428 : vector<32x128xf32>
    %430 = vector.broadcast %407 : vector<1x128xf32> to vector<32x128xf32>
    %431 = arith.mulf %429, %430 : vector<32x128xf32>
    %432 = vector.broadcast %409 : vector<1x128xf32> to vector<32x128xf32>
    %433 = arith.addf %431, %432 : vector<32x128xf32>
    %cst_214 = arith.constant 0.000000e+00 : f32
    %434 = vector.broadcast %cst_214 : f32 to vector<32x128xf32>
    %435 = arith.maximumf %433, %434 : vector<32x128xf32>
    %c2_215 = arith.constant 2 : index
    %c0_216 = arith.constant 0 : index
    %c0_217 = arith.constant 0 : index
    %436 = vector.load %arg13[%c2_215, %c0_216, %c0_217] : memref<3x128x128xbf16, #tpu.memory_space<vmem>>, vector<1x128x128xbf16>
    %437 = vector.shape_cast %436 : vector<1x128x128xbf16> to vector<128x128xbf16>
    %438 = arith.truncf %367 : vector<32x128xf32> to vector<32x128xbf16>
    %cst_218 = arith.constant dense<0.000000e+00> : vector<32x128xf32>
    %439 = tpu.matmul %438, %437, %cst_218 {dimension_numbers = #tpu.dot_dimension_numbers<[1], [0], [0], [1], [0, 0, 1, 1], [], []>} : vector<32x128xbf16>, vector<128x128xbf16>, vector<32x128xf32> -> vector<32x128xf32>
    %c2_219 = arith.constant 2 : index
    %c0_220 = arith.constant 0 : index
    %c0_221 = arith.constant 0 : index
    %440 = vector.load %arg14[%c2_219, %c0_220, %c0_221] : memref<3x1x128xf32, #tpu.memory_space<vmem>>, vector<1x1x128xf32>
    %441 = vector.shape_cast %440 : vector<1x1x128xf32> to vector<1x128xf32>
    %442 = vector.broadcast %441 : vector<1x128xf32> to vector<32x128xf32>
    %443 = arith.addf %439, %442 : vector<32x128xf32>
    %cst_222 = arith.constant 0.000000e+00 : f32
    %444 = vector.broadcast %cst_222 : f32 to vector<32x128xf32>
    %445 = arith.maximumf %443, %444 : vector<32x128xf32>
    %c2_223 = arith.constant 2 : index
    %c0_224 = arith.constant 0 : index
    %c0_225 = arith.constant 0 : index
    %446 = vector.load %arg15[%c2_223, %c0_224, %c0_225] : memref<3x128x128xbf16, #tpu.memory_space<vmem>>, vector<1x128x128xbf16>
    %447 = vector.shape_cast %446 : vector<1x128x128xbf16> to vector<128x128xbf16>
    %448 = arith.truncf %435 : vector<32x128xf32> to vector<32x128xbf16>
    %cst_226 = arith.constant dense<0.000000e+00> : vector<32x128xf32>
    %449 = tpu.matmul %448, %447, %cst_226 {dimension_numbers = #tpu.dot_dimension_numbers<[1], [0], [0], [1], [0, 0, 1, 1], [], []>} : vector<32x128xbf16>, vector<128x128xbf16>, vector<32x128xf32> -> vector<32x128xf32>
    %c2_227 = arith.constant 2 : index
    %c0_228 = arith.constant 0 : index
    %c0_229 = arith.constant 0 : index
    %450 = vector.load %arg16[%c2_227, %c0_228, %c0_229] : memref<3x128x128xbf16, #tpu.memory_space<vmem>>, vector<1x128x128xbf16>
    %451 = vector.shape_cast %450 : vector<1x128x128xbf16> to vector<128x128xbf16>
    %452 = arith.truncf %445 : vector<32x128xf32> to vector<32x128xbf16>
    %cst_230 = arith.constant dense<0.000000e+00> : vector<32x128xf32>
    %453 = tpu.matmul %452, %451, %cst_230 {dimension_numbers = #tpu.dot_dimension_numbers<[1], [0], [0], [1], [0, 0, 1, 1], [], []>} : vector<32x128xbf16>, vector<128x128xbf16>, vector<32x128xf32> -> vector<32x128xf32>
    %454 = arith.addf %449, %453 : vector<32x128xf32>
    %c2_231 = arith.constant 2 : index
    %c0_232 = arith.constant 0 : index
    %c0_233 = arith.constant 0 : index
    %455 = vector.load %arg17[%c2_231, %c0_232, %c0_233] : memref<3x1x128xf32, #tpu.memory_space<vmem>>, vector<1x1x128xf32>
    %456 = vector.shape_cast %455 : vector<1x1x128xf32> to vector<1x128xf32>
    %457 = vector.broadcast %456 : vector<1x128xf32> to vector<32x128xf32>
    %458 = arith.addf %454, %457 : vector<32x128xf32>
    %cst_234 = arith.constant 0.000000e+00 : f32
    %cst_235 = arith.constant 1.000000e+00 : f32
    %459 = vector.broadcast %cst_234 : f32 to vector<32x128xf32>
    %460 = arith.maximumf %459, %330 : vector<32x128xf32>
    %461 = vector.broadcast %cst_235 : f32 to vector<32x128xf32>
    %462 = arith.minimumf %461, %460 : vector<32x128xf32>
    %cst_236 = arith.constant 9.99999974E-6 : f32
    %463 = vector.broadcast %cst_236 : f32 to vector<32x128xf32>
    %464 = arith.maximumf %462, %463 : vector<32x128xf32>
    %cst_237 = arith.constant 1.000000e+00 : f32
    %465 = vector.broadcast %cst_237 : f32 to vector<32x128xf32>
    %466 = arith.subf %465, %462 : vector<32x128xf32>
    %cst_238 = arith.constant 9.99999974E-6 : f32
    %467 = vector.broadcast %cst_238 : f32 to vector<32x128xf32>
    %468 = arith.maximumf %466, %467 : vector<32x128xf32>
    %469 = arith.divf %464, %468 : vector<32x128xf32>
    %470 = math.log %469 : vector<32x128xf32>
    %cst_239 = arith.constant 0.000000e+00 : f32
    %471 = vector.shape_cast %13 : vector<1x128xi1> to vector<1x128xi1>
    %472 = vector.broadcast %471 : vector<1x128xi1> to vector<32x128xi1>
    %473 = vector.broadcast %cst_239 : f32 to vector<32x128xf32>
    %474 = arith.select %472, %470, %473 : vector<32x128xi1>, vector<32x128xf32>
    %475 = arith.addf %458, %474 : vector<32x128xf32>
    %cst_240 = arith.constant 0.000000e+00 : f32
    %476 = vector.broadcast %cst_240 : f32 to vector<32x128xf32>
    %477 = arith.subf %476, %475 : vector<32x128xf32>
    %478 = math.exp %477 : vector<32x128xf32>
    %cst_241 = arith.constant 1.000000e+00 : f32
    %479 = vector.broadcast %cst_241 : f32 to vector<32x128xf32>
    %480 = arith.addf %479, %478 : vector<32x128xf32>
    %cst_242 = arith.constant 1.000000e+00 : f32
    %481 = vector.broadcast %cst_242 : f32 to vector<32x128xf32>
    %482 = arith.divf %481, %480 : vector<32x128xf32>
    %483 = vector.shape_cast %13 : vector<1x128xi1> to vector<1x128xi1>
    %484 = vector.broadcast %483 : vector<1x128xi1> to vector<32x128xi1>
    %485 = arith.select %484, %482, %458 : vector<32x128xi1>, vector<32x128xf32>
    %486 = vector.broadcast %20 : vector<1x128xf32> to vector<32x128xf32>
    %487 = arith.mulf %485, %486 : vector<32x128xf32>
    %488 = vector.broadcast %27 : vector<1x128xf32> to vector<32x128xf32>
    %489 = arith.addf %487, %488 : vector<32x128xf32>
    %c2_243 = arith.constant 2 : index
    %c0_244 = arith.constant 0 : index
    %c0_245 = arith.constant 0 : index
    %c0_246 = arith.constant 0 : index
    %490 = vector.load %arg18[%c2_243, %c0_244, %c0_245, %c0_246] : memref<3x1x32x128xf32, #tpu.memory_space<vmem>>, vector<1x1x32x128xf32>
    %491 = vector.shape_cast %490 : vector<1x1x32x128xf32> to vector<32x128xf32>
    %492 = vector.shape_cast %489 : vector<32x128xf32> to vector<1x1x32x128xf32>
    tpu.vector_store %arg18[%c2_243, %c0_244, %c0_245, %c0_246], %492 {strides = array<i32>} : memref<3x1x32x128xf32, #tpu.memory_space<vmem>>, vector<1x1x32x128xf32>,
    return
  }
  func.func @transform_0(%arg0: i32) -> (i32, i32) {
    %c0_i32 = arith.constant 0 : i32
    %c0_i32_0 = arith.constant 0 : i32
    %c0_i32_1 = arith.constant 0 : i32
    return %c0_i32, %c0_i32_0 : i32, i32
  }
  func.func @transform_1(%arg0: i32) -> (i32, i32) {
    %c0_i32 = arith.constant 0 : i32
    %c0_i32_0 = arith.constant 0 : i32
    %c0_i32_1 = arith.constant 0 : i32
    return %c0_i32, %c0_i32_0 : i32, i32
  }
  func.func @transform_2(%arg0: i32) -> (i32, i32) {
    %c0_i32 = arith.constant 0 : i32
    %c0_i32_0 = arith.constant 0 : i32
    %c0_i32_1 = arith.constant 0 : i32
    return %c0_i32, %c0_i32_0 : i32, i32
  }
  func.func @transform_3(%arg0: i32) -> (i32, i32, i32) {
    %c0_i32 = arith.constant 0 : i32
    %c0_i32_0 = arith.constant 0 : i32
    %c0_i32_1 = arith.constant 0 : i32
    return %arg0, %c0_i32, %c0_i32_0 : i32, i32, i32
  }
  func.func @transform_4(%arg0: i32) -> (i32, i32, i32) {
    %c0_i32 = arith.constant 0 : i32
    %c0_i32_0 = arith.constant 0 : i32
    %c0_i32_1 = arith.constant 0 : i32
    %c0_i32_2 = arith.constant 0 : i32
    return %c0_i32, %c0_i32_0, %c0_i32_1 : i32, i32, i32
  }
  func.func @transform_5(%arg0: i32) -> (i32, i32, i32) {
    %c0_i32 = arith.constant 0 : i32
    %c0_i32_0 = arith.constant 0 : i32
    %c0_i32_1 = arith.constant 0 : i32
    %c0_i32_2 = arith.constant 0 : i32
    return %c0_i32, %c0_i32_0, %c0_i32_1 : i32, i32, i32
  }
  func.func @transform_6(%arg0: i32) -> (i32, i32, i32) {
    %c0_i32 = arith.constant 0 : i32
    %c0_i32_0 = arith.constant 0 : i32
    %c0_i32_1 = arith.constant 0 : i32
    %c0_i32_2 = arith.constant 0 : i32
    return %c0_i32, %c0_i32_0, %c0_i32_1 : i32, i32, i32
  }
  func.func @transform_7(%arg0: i32) -> (i32, i32, i32) {
    %c0_i32 = arith.constant 0 : i32
    %c0_i32_0 = arith.constant 0 : i32
    %c0_i32_1 = arith.constant 0 : i32
    %c0_i32_2 = arith.constant 0 : i32
    return %c0_i32, %c0_i32_0, %c0_i32_1 : i32, i32, i32
  }
  func.func @transform_8(%arg0: i32) -> (i32, i32, i32) {
    %c0_i32 = arith.constant 0 : i32
    %c0_i32_0 = arith.constant 0 : i32
    %c0_i32_1 = arith.constant 0 : i32
    %c0_i32_2 = arith.constant 0 : i32
    return %c0_i32, %c0_i32_0, %c0_i32_1 : i32, i32, i32
  }
  func.func @transform_9(%arg0: i32) -> (i32, i32, i32) {
    %c0_i32 = arith.constant 0 : i32
    %c0_i32_0 = arith.constant 0 : i32
    %c0_i32_1 = arith.constant 0 : i32
    %c0_i32_2 = arith.constant 0 : i32
    return %c0_i32, %c0_i32_0, %c0_i32_1 : i32, i32, i32
  }
  func.func @transform_10(%arg0: i32) -> (i32, i32, i32) {
    %c0_i32 = arith.constant 0 : i32
    %c0_i32_0 = arith.constant 0 : i32
    %c0_i32_1 = arith.constant 0 : i32
    %c0_i32_2 = arith.constant 0 : i32
    return %c0_i32, %c0_i32_0, %c0_i32_1 : i32, i32, i32
  }
  func.func @transform_11(%arg0: i32) -> (i32, i32, i32) {
    %c0_i32 = arith.constant 0 : i32
    %c0_i32_0 = arith.constant 0 : i32
    %c0_i32_1 = arith.constant 0 : i32
    %c0_i32_2 = arith.constant 0 : i32
    return %c0_i32, %c0_i32_0, %c0_i32_1 : i32, i32, i32
  }
  func.func @transform_12(%arg0: i32) -> (i32, i32, i32) {
    %c0_i32 = arith.constant 0 : i32
    %c0_i32_0 = arith.constant 0 : i32
    %c0_i32_1 = arith.constant 0 : i32
    %c0_i32_2 = arith.constant 0 : i32
    return %c0_i32, %c0_i32_0, %c0_i32_1 : i32, i32, i32
  }
  func.func @transform_13(%arg0: i32) -> (i32, i32, i32) {
    %c0_i32 = arith.constant 0 : i32
    %c0_i32_0 = arith.constant 0 : i32
    %c0_i32_1 = arith.constant 0 : i32
    %c0_i32_2 = arith.constant 0 : i32
    return %c0_i32, %c0_i32_0, %c0_i32_1 : i32, i32, i32
  }
  func.func @transform_14(%arg0: i32) -> (i32, i32, i32) {
    %c0_i32 = arith.constant 0 : i32
    %c0_i32_0 = arith.constant 0 : i32
    %c0_i32_1 = arith.constant 0 : i32
    %c0_i32_2 = arith.constant 0 : i32
    return %c0_i32, %c0_i32_0, %c0_i32_1 : i32, i32, i32
  }
  func.func @transform_15(%arg0: i32) -> (i32, i32, i32) {
    %c0_i32 = arith.constant 0 : i32
    %c0_i32_0 = arith.constant 0 : i32
    %c0_i32_1 = arith.constant 0 : i32
    %c0_i32_2 = arith.constant 0 : i32
    return %c0_i32, %c0_i32_0, %c0_i32_1 : i32, i32, i32
  }
  func.func @transform_16(%arg0: i32) -> (i32, i32, i32) {
    %c0_i32 = arith.constant 0 : i32
    %c0_i32_0 = arith.constant 0 : i32
    %c0_i32_1 = arith.constant 0 : i32
    %c0_i32_2 = arith.constant 0 : i32
    return %c0_i32, %c0_i32_0, %c0_i32_1 : i32, i32, i32
  }
  func.func @transform_17(%arg0: i32) -> (i32, i32, i32, i32) {
    %c0_i32 = arith.constant 0 : i32
    %c0_i32_0 = arith.constant 0 : i32
    %c0_i32_1 = arith.constant 0 : i32
    %c0_i32_2 = arith.constant 0 : i32
    return %c0_i32, %arg0, %c0_i32_0, %c0_i32_1 : i32, i32, i32, i32
  }
}

</mosaic_0001>

<llo_original>
// kernel: bevformer_head_forward.1
$region0: #{bevformer_head_forward.1}
  #allocation0 [shape = 'u32[]', space=smem, size = 0x4, offset = 0x4, fixed_abs, tag = 'smem constant byte address 0x4 - core index']
  #allocation1 [shape = 'u32[144,128]{1,0:T(1,128)}', space=vmem, size = 0x12000, scoped, tag = 'internal scratch']
  %s0 = inlined_call_operand.vmem [shape: f32[32,128], index: 0, kind: input, shape index: {}]
  %s1 = inlined_call_operand.vmem [shape: f32[32,128], index: 1, kind: input, shape index: {}]
  %s2 = inlined_call_operand.vmem [shape: f32[32,128], index: 2, kind: input, shape index: {}]
  %s3 = inlined_call_operand.vmem [shape: bf16[2,64,128], index: 3, kind: input, shape index: {}]
  %s4 = inlined_call_operand.vmem [shape: bf16[3,128,256], index: 4, kind: input, shape index: {}]
  %s5 = inlined_call_operand.vmem [shape: f32[3,1,256], index: 5, kind: input, shape index: {}]
  %s6 = inlined_call_operand.vmem [shape: f32[3,1,128], index: 6, kind: input, shape index: {}]
  %s7 = inlined_call_operand.vmem [shape: f32[3,1,128], index: 7, kind: input, shape index: {}]
  %s8 = inlined_call_operand.vmem [shape: bf16[3,128,128], index: 8, kind: input, shape index: {}]
  %s9 = inlined_call_operand.vmem [shape: f32[3,1,128], index: 9, kind: input, shape index: {}]
  %s10 = inlined_call_operand.vmem [shape: f32[3,1,128], index: 10, kind: input, shape index: {}]
  %s11 = inlined_call_operand.vmem [shape: f32[3,1,128], index: 11, kind: input, shape index: {}]
  %s12 = inlined_call_operand.vmem [shape: bf16[3,128,128], index: 12, kind: input, shape index: {}]
  %s13 = inlined_call_operand.vmem [shape: f32[3,1,128], index: 13, kind: input, shape index: {}]
  %s14 = inlined_call_operand.vmem [shape: bf16[3,128,128], index: 14, kind: input, shape index: {}]
  %s15 = inlined_call_operand.vmem [shape: bf16[3,128,128], index: 15, kind: input, shape index: {}]
  %s16 = inlined_call_operand.vmem [shape: f32[3,1,128], index: 16, kind: input, shape index: {}]
  %s17 = inlined_call_operand.vmem [shape: f32[3,2,32,128], index: 17, kind: output, shape index: {}]
  %s18 = sld [smem:[#allocation0]]
  $region135: #{bevformer_head_forward.1} parent=0
    _
  %s20 = ssub.s32 1, %s18
  %s21 = scalar_select 0, %s20, %s18
  $region1: #{bevformer_head_forward.1} parent=0
    #allocation2 [shape = 'u8[98304]{0}', space=vmem, size = 0x18000, scoped, tag = 'output window, operand 0']
    loop: start=0, step=1, limit=4
    $region2: #{bevformer_head_forward.1} parent=1 // loop_pre_header
      _
    $region3: #{bevformer_head_forward.1} parent=1 // loop_header
      %s23 = sphi 0, %s27
      %p24 = scmp.ge.s32.totalorder %s23, 4
      %s31 = sphi 0, %s31
      %s33 = sphi 0, %s31
      %s34 = sphi 0, %s33
      %s48 = sphi 0, %s34
      %s52 = sphi 0, %s52
      %s54 = sphi 0, %s52
      %s55 = sphi 0, %s54
      %s69 = sphi 0, %s55
      %s73 = sphi 0, %s73
      %s75 = sphi 0, %s73
      %s76 = sphi 0, %s75
      %s90 = sphi 0, %s76
      %s96 = sphi 0, %s98
      %s99 = sphi 0, %s96
      %s100 = sphi 0, %s99
      %s116 = sphi 0, %s100
      %s120 = sphi 0, %s120
      %s122 = sphi 0, %s120
      %s123 = sphi 0, %s122
      %s137 = sphi 0, %s123
      %s141 = sphi 0, %s141
      %s143 = sphi 0, %s141
      %s144 = sphi 0, %s143
      %s158 = sphi 0, %s144
      %s162 = sphi 0, %s162
      %s164 = sphi 0, %s162
      %s165 = sphi 0, %s164
      %s179 = sphi 0, %s165
      %s183 = sphi 0, %s183
      %s185 = sphi 0, %s183
      %s186 = sphi 0, %s185
      %s200 = sphi 0, %s186
      %s204 = sphi 0, %s204
      %s206 = sphi 0, %s204
      %s207 = sphi 0, %s206
      %s221 = sphi 0, %s207
      %s225 = sphi 0, %s225
      %s227 = sphi 0, %s225
      %s228 = sphi 0, %s227
      %s242 = sphi 0, %s228
      %s246 = sphi 0, %s246
      %s248 = sphi 0, %s246
      %s249 = sphi 0, %s248
      %s263 = sphi 0, %s249
      %s267 = sphi 0, %s267
      %s269 = sphi 0, %s267
      %s270 = sphi 0, %s269
      %s284 = sphi 0, %s270
      %s288 = sphi 0, %s288
      %s290 = sphi 0, %s288
      %s291 = sphi 0, %s290
      %s305 = sphi 0, %s291
      %s309 = sphi 0, %s309
      %s311 = sphi 0, %s309
      %s312 = sphi 0, %s311
      %s326 = sphi 0, %s312
      %s330 = sphi 0, %s330
      %s332 = sphi 0, %s330
      %s333 = sphi 0, %s332
      %s347 = sphi 0, %s333
      %s351 = sphi 0, %s351
      %s353 = sphi 0, %s351
      %s354 = sphi 0, %s353
      %s368 = sphi 0, %s354
      %s372 = sphi 0, %s372
      %s374 = sphi 0, %s372
      %s375 = sphi 0, %s374
      %s389 = sphi 0, %s375
      %s395 = sphi 0, %s397
      %s398 = sphi 0, %s395
      %s399 = sphi 0, %s398
      %s415 = sphi 0, %s399
    $region4: #{bevformer_head_forward.1} parent=1 // loop_header_branch
      %26 = sbr.rel (%p24) target = $region8
    $region5: #{bevformer_head_forward.1} parent=1 // loop_body
      %s28 = ssub.s32 %s23, 1
      %s29 = ssub.s32 %s23, 2
      %s30 = sadd.s32 %s23, 1
      %s32 = sadd.s32 %s31, 1
      %p35 = scmp.eq.s32.totalorder %s23, 1
      %p36 = scmp.ne.s32.totalorder %s31, %s33
      %p37 = scmp.eq.s32.totalorder %s23, 0
      %p38 = por %p36, %p37
      %p39 = scmp.ne.s32.totalorder %s31, %s33
      %p40 = scmp.eq.s32.totalorder %s28, 1
      %p41 = por %p39, %p40
      %p42 = scmp.ne.s32.totalorder %s33, %s34
      %p43 = scmp.eq.s32.totalorder %s28, 0
      %p44 = por %p42, %p43
      %p45 = scmp.ne.s32.totalorder %s33, %s34
      %p46 = scmp.eq.s32.totalorder %s29, 1
      %p47 = por %p45, %p46
      %p49 = scmp.ne.s32.totalorder %s34, %s48
      %p50 = scmp.eq.s32.totalorder %s29, 0
      %p51 = por %p49, %p50
      %s53 = sadd.s32 %s52, 1
      %p56 = scmp.eq.s32.totalorder %s23, 1
      %p57 = scmp.ne.s32.totalorder %s52, %s54
      %p58 = scmp.eq.s32.totalorder %s23, 0
      %p59 = por %p57, %p58
      %p60 = scmp.ne.s32.totalorder %s52, %s54
      %p61 = scmp.eq.s32.totalorder %s28, 1
      %p62 = por %p60, %p61
      %p63 = scmp.ne.s32.totalorder %s54, %s55
      %p64 = scmp.eq.s32.totalorder %s28, 0
      %p65 = por %p63, %p64
      %p66 = scmp.ne.s32.totalorder %s54, %s55
      %p67 = scmp.eq.s32.totalorder %s29, 1
      %p68 = por %p66, %p67
      %p70 = scmp.ne.s32.totalorder %s55, %s69
      %p71 = scmp.eq.s32.totalorder %s29, 0
      %p72 = por %p70, %p71
      %s74 = sadd.s32 %s73, 1
      %p77 = scmp.eq.s32.totalorder %s23, 1
      %p78 = scmp.ne.s32.totalorder %s73, %s75
      %p79 = scmp.eq.s32.totalorder %s23, 0
      %p80 = por %p78, %p79
      %p81 = scmp.ne.s32.totalorder %s73, %s75
      %p82 = scmp.eq.s32.totalorder %s28, 1
      %p83 = por %p81, %p82
      %p84 = scmp.ne.s32.totalorder %s75, %s76
      %p85 = scmp.eq.s32.totalorder %s28, 0
      %p86 = por %p84, %p85
      %p87 = scmp.ne.s32.totalorder %s75, %s76
      %p88 = scmp.eq.s32.totalorder %s29, 1
      %p89 = por %p87, %p88
      %p91 = scmp.ne.s32.totalorder %s76, %s90
      %p92 = scmp.eq.s32.totalorder %s29, 0
      %p93 = por %p91, %p92
      %s94 = ssub.s32 %s23, %s30
      %p95 = scmp.eq.s32.totalorder %s94, 0
      %s97 = sadd.s32 %s96, 1
      %s98 = scalar_select %p95, %s96, %s97
      %p101 = pneg %p95
      %p102 = scmp.eq.s32.totalorder %s23, 1
      %p103 = por %p101, %p102
      %p104 = scmp.ne.s32.totalorder %s96, %s99
      %p105 = scmp.eq.s32.totalorder %s23, 0
      %p106 = por %p104, %p105
      %p107 = scmp.ne.s32.totalorder %s96, %s99
      %p108 = scmp.eq.s32.totalorder %s28, 1
      %p109 = por %p107, %p108
      %p110 = scmp.ne.s32.totalorder %s99, %s100
      %p111 = scmp.eq.s32.totalorder %s28, 0
      %p112 = por %p110, %p111
      %p113 = scmp.ne.s32.totalorder %s99, %s100
      %p114 = scmp.eq.s32.totalorder %s29, 1
      %p115 = por %p113, %p114
      %p117 = scmp.ne.s32.totalorder %s100, %s116
      %p118 = scmp.eq.s32.totalorder %s29, 0
      %p119 = por %p117, %p118
      %s121 = sadd.s32 %s120, 1
      %p124 = scmp.eq.s32.totalorder %s23, 1
      %p125 = scmp.ne.s32.totalorder %s120, %s122
      %p126 = scmp.eq.s32.totalorder %s23, 0
      %p127 = por %p125, %p126
      %p128 = scmp.ne.s32.totalorder %s120, %s122
      %p129 = scmp.eq.s32.totalorder %s28, 1
      %p130 = por %p128, %p129
      %p131 = scmp.ne.s32.totalorder %s122, %s123
      %p132 = scmp.eq.s32.totalorder %s28, 0
      %p133 = por %p131, %p132
      %p134 = scmp.ne.s32.totalorder %s122, %s123
      %p135 = scmp.eq.s32.totalorder %s29, 1
      %p136 = por %p134, %p135
      %p138 = scmp.ne.s32.totalorder %s123, %s137
      %p139 = scmp.eq.s32.totalorder %s29, 0
      %p140 = por %p138, %p139
      %s142 = sadd.s32 %s141, 1
      %p145 = scmp.eq.s32.totalorder %s23, 1
      %p146 = scmp.ne.s32.totalorder %s141, %s143
      %p147 = scmp.eq.s32.totalorder %s23, 0
      %p148 = por %p146, %p147
      %p149 = scmp.ne.s32.totalorder %s141, %s143
      %p150 = scmp.eq.s32.totalorder %s28, 1
      %p151 = por %p149, %p150
      %p152 = scmp.ne.s32.totalorder %s143, %s144
      %p153 = scmp.eq.s32.totalorder %s28, 0
      %p154 = por %p152, %p153
      %p155 = scmp.ne.s32.totalorder %s143, %s144
      %p156 = scmp.eq.s32.totalorder %s29, 1
      %p157 = por %p155, %p156
      %p159 = scmp.ne.s32.totalorder %s144, %s158
      %p160 = scmp.eq.s32.totalorder %s29, 0
      %p161 = por %p159, %p160
      %s163 = sadd.s32 %s162, 1
      %p166 = scmp.eq.s32.totalorder %s23, 1
      %p167 = scmp.ne.s32.totalorder %s162, %s164
      %p168 = scmp.eq.s32.totalorder %s23, 0
      %p169 = por %p167, %p168
      %p170 = scmp.ne.s32.totalorder %s162, %s164
      %p171 = scmp.eq.s32.totalorder %s28, 1
      %p172 = por %p170, %p171
      %p173 = scmp.ne.s32.totalorder %s164, %s165
      %p174 = scmp.eq.s32.totalorder %s28, 0
      %p175 = por %p173, %p174
      %p176 = scmp.ne.s32.totalorder %s164, %s165
      %p177 = scmp.eq.s32.totalorder %s29, 1
      %p178 = por %p176, %p177
      %p180 = scmp.ne.s32.totalorder %s165, %s179
      %p181 = scmp.eq.s32.totalorder %s29, 0
      %p182 = por %p180, %p181
      %s184 = sadd.s32 %s183, 1
      %p187 = scmp.eq.s32.totalorder %s23, 1
      %p188 = scmp.ne.s32.totalorder %s183, %s185
      %p189 = scmp.eq.s32.totalorder %s23, 0
      %p190 = por %p188, %p189
      %p191 = scmp.ne.s32.totalorder %s183, %s185
      %p192 = scmp.eq.s32.totalorder %s28, 1
      %p193 = por %p191, %p192
      %p194 = scmp.ne.s32.totalorder %s185, %s186
      %p195 = scmp.eq.s32.totalorder %s28, 0
      %p196 = por %p194, %p195
      %p197 = scmp.ne.s32.totalorder %s185, %s186
      %p198 = scmp.eq.s32.totalorder %s29, 1
      %p199 = por %p197, %p198
      %p201 = scmp.ne.s32.totalorder %s186, %s200
      %p202 = scmp.eq.s32.totalorder %s29, 0
      %p203 = por %p201, %p202
      %s205 = sadd.s32 %s204, 1
      %p208 = scmp.eq.s32.totalorder %s23, 1
      %p209 = scmp.ne.s32.totalorder %s204, %s206
      %p210 = scmp.eq.s32.totalorder %s23, 0
      %p211 = por %p209, %p210
      %p212 = scmp.ne.s32.totalorder %s204, %s206
      %p213 = scmp.eq.s32.totalorder %s28, 1
      %p214 = por %p212, %p213
      %p215 = scmp.ne.s32.totalorder %s206, %s207
      %p216 = scmp.eq.s32.totalorder %s28, 0
      %p217 = por %p215, %p216
      %p218 = scmp.ne.s32.totalorder %s206, %s207
      %p219 = scmp.eq.s32.totalorder %s29, 1
      %p220 = por %p218, %p219
      %p222 = scmp.ne.s32.totalorder %s207, %s221
      %p223 = scmp.eq.s32.totalorder %s29, 0
      %p224 = por %p222, %p223
      %s226 = sadd.s32 %s225, 1
      %p229 = scmp.eq.s32.totalorder %s23, 1
      %p230 = scmp.ne.s32.totalorder %s225, %s227
      %p231 = scmp.eq.s32.totalorder %s23, 0
      %p232 = por %p230, %p231
      %p233 = scmp.ne.s32.totalorder %s225, %s227
      %p234 = scmp.eq.s32.totalorder %s28, 1
      %p235 = por %p233, %p234
      %p236 = scmp.ne.s32.totalorder %s227, %s228
      %p237 = scmp.eq.s32.totalorder %s28, 0
      %p238 = por %p236, %p237
      %p239 = scmp.ne.s32.totalorder %s227, %s228
      %p240 = scmp.eq.s32.totalorder %s29, 1
      %p241 = por %p239, %p240
      %p243 = scmp.ne.s32.totalorder %s228, %s242
      %p244 = scmp.eq.s32.totalorder %s29, 0
      %p245 = por %p243, %p244
      %s247 = sadd.s32 %s246, 1
      %p250 = scmp.eq.s32.totalorder %s23, 1
      %p251 = scmp.ne.s32.totalorder %s246, %s248
      %p252 = scmp.eq.s32.totalorder %s23, 0
      %p253 = por %p251, %p252
      %p254 = scmp.ne.s32.totalorder %s246, %s248
      %p255 = scmp.eq.s32.totalorder %s28, 1
      %p256 = por %p254, %p255
      %p257 = scmp.ne.s32.totalorder %s248, %s249
      %p258 = scmp.eq.s32.totalorder %s28, 0
      %p259 = por %p257, %p258
      %p260 = scmp.ne.s32.totalorder %s248, %s249
      %p261 = scmp.eq.s32.totalorder %s29, 1
      %p262 = por %p260, %p261
      %p264 = scmp.ne.s32.totalorder %s249, %s263
      %p265 = scmp.eq.s32.totalorder %s29, 0
      %p266 = por %p264, %p265
      %s268 = sadd.s32 %s267, 1
      %p271 = scmp.eq.s32.totalorder %s23, 1
      %p272 = scmp.ne.s32.totalorder %s267, %s269
      %p273 = scmp.eq.s32.totalorder %s23, 0
      %p274 = por %p272, %p273
      %p275 = scmp.ne.s32.totalorder %s267, %s269
      %p276 = scmp.eq.s32.totalorder %s28, 1
      %p277 = por %p275, %p276
      %p278 = scmp.ne.s32.totalorder %s269, %s270
      %p279 = scmp.eq.s32.totalorder %s28, 0
      %p280 = por %p278, %p279
      %p281 = scmp.ne.s32.totalorder %s269, %s270
      %p282 = scmp.eq.s32.totalorder %s29, 1
      %p283 = por %p281, %p282
      %p285 = scmp.ne.s32.totalorder %s270, %s284
      %p286 = scmp.eq.s32.totalorder %s29, 0
      %p287 = por %p285, %p286
      %s289 = sadd.s32 %s288, 1
      %p292 = scmp.eq.s32.totalorder %s23, 1
      %p293 = scmp.ne.s32.totalorder %s288, %s290
      %p294 = scmp.eq.s32.totalorder %s23, 0
      %p295 = por %p293, %p294
      %p296 = scmp.ne.s32.totalorder %s288, %s290
      %p297 = scmp.eq.s32.totalorder %s28, 1
      %p298 = por %p296, %p297
      %p299 = scmp.ne.s32.totalorder %s290, %s291
      %p300 = scmp.eq.s32.totalorder %s28, 0
      %p301 = por %p299, %p300
      %p302 = scmp.ne.s32.totalorder %s290, %s291
      %p303 = scmp.eq.s32.totalorder %s29, 1
      %p304 = por %p302, %p303
      %p306 = scmp.ne.s32.totalorder %s291, %s305
      %p307 = scmp.eq.s32.totalorder %s29, 0
      %p308 = por %p306, %p307
      %s310 = sadd.s32 %s309, 1
      %p313 = scmp.eq.s32.totalorder %s23, 1
      %p314 = scmp.ne.s32.totalorder %s309, %s311
      %p315 = scmp.eq.s32.totalorder %s23, 0
      %p316 = por %p314, %p315
      %p317 = scmp.ne.s32.totalorder %s309, %s311
      %p318 = scmp.eq.s32.totalorder %s28, 1
      %p319 = por %p317, %p318
      %p320 = scmp.ne.s32.totalorder %s311, %s312
      %p321 = scmp.eq.s32.totalorder %s28, 0
      %p322 = por %p320, %p321
      %p323 = scmp.ne.s32.totalorder %s311, %s312
      %p324 = scmp.eq.s32.totalorder %s29, 1
      %p325 = por %p323, %p324
      %p327 = scmp.ne.s32.totalorder %s312, %s326
      %p328 = scmp.eq.s32.totalorder %s29, 0
      %p329 = por %p327, %p328
      %s331 = sadd.s32 %s330, 1
      %p334 = scmp.eq.s32.totalorder %s23, 1
      %p335 = scmp.ne.s32.totalorder %s330, %s332
      %p336 = scmp.eq.s32.totalorder %s23, 0
      %p337 = por %p335, %p336
      %p338 = scmp.ne.s32.totalorder %s330, %s332
      %p339 = scmp.eq.s32.totalorder %s28, 1
      %p340 = por %p338, %p339
      %p341 = scmp.ne.s32.totalorder %s332, %s333
      %p342 = scmp.eq.s32.totalorder %s28, 0
      %p343 = por %p341, %p342
      %p344 = scmp.ne.s32.totalorder %s332, %s333
      %p345 = scmp.eq.s32.totalorder %s29, 1
      %p346 = por %p344, %p345
      %p348 = scmp.ne.s32.totalorder %s333, %s347
      %p349 = scmp.eq.s32.totalorder %s29, 0
      %p350 = por %p348, %p349
      %s352 = sadd.s32 %s351, 1
      %p355 = scmp.eq.s32.totalorder %s23, 1
      %p356 = scmp.ne.s32.totalorder %s351, %s353
      %p357 = scmp.eq.s32.totalorder %s23, 0
      %p358 = por %p356, %p357
      %p359 = scmp.ne.s32.totalorder %s351, %s353
      %p360 = scmp.eq.s32.totalorder %s28, 1
      %p361 = por %p359, %p360
      %p362 = scmp.ne.s32.totalorder %s353, %s354
      %p363 = scmp.eq.s32.totalorder %s28, 0
      %p364 = por %p362, %p363
      %p365 = scmp.ne.s32.totalorder %s353, %s354
      %p366 = scmp.eq.s32.totalorder %s29, 1
      %p367 = por %p365, %p366
      %p369 = scmp.ne.s32.totalorder %s354, %s368
      %p370 = scmp.eq.s32.totalorder %s29, 0
      %p371 = por %p369, %p370
      %s373 = sadd.s32 %s372, 1
      %p376 = scmp.eq.s32.totalorder %s23, 1
      %p377 = scmp.ne.s32.totalorder %s372, %s374
      %p378 = scmp.eq.s32.totalorder %s23, 0
      %p379 = por %p377, %p378
      %p380 = scmp.ne.s32.totalorder %s372, %s374
      %p381 = scmp.eq.s32.totalorder %s28, 1
      %p382 = por %p380, %p381
      %p383 = scmp.ne.s32.totalorder %s374, %s375
      %p384 = scmp.eq.s32.totalorder %s28, 0
      %p385 = por %p383, %p384
      %p386 = scmp.ne.s32.totalorder %s374, %s375
      %p387 = scmp.eq.s32.totalorder %s29, 1
      %p388 = por %p386, %p387
      %p390 = scmp.ne.s32.totalorder %s375, %s389
      %p391 = scmp.eq.s32.totalorder %s29, 0
      %p392 = por %p390, %p391
      %s393 = ssub.s32 %s23, %s30
      %p394 = scmp.eq.s32.totalorder %s393, 0
      %s396 = sadd.s32 %s395, 1
      %s397 = scalar_select %p394, %s395, %s396
      %p400 = pneg %p394
      %p401 = scmp.eq.s32.totalorder %s23, 1
      %p402 = por %p400, %p401
      %p403 = scmp.ne.s32.totalorder %s395, %s398
      %p404 = scmp.eq.s32.totalorder %s23, 0
      %p405 = por %p403, %p404
      %p406 = scmp.ne.s32.totalorder %s395, %s398
      %p407 = scmp.eq.s32.totalorder %s28, 1
      %p408 = por %p406, %p407
      %p409 = scmp.ne.s32.totalorder %s398, %s399
      %p410 = scmp.eq.s32.totalorder %s28, 0
      %p411 = por %p409, %p410
      %p412 = scmp.ne.s32.totalorder %s398, %s399
      %p413 = scmp.eq.s32.totalorder %s29, 1
      %p414 = por %p412, %p413
      %p416 = scmp.ne.s32.totalorder %s399, %s415
      %p417 = scmp.eq.s32.totalorder %s29, 0
      %p418 = por %p416, %p417
      %p419 = scmp.le.s32.totalorder 1, %s23
      %p420 = scmp.lt.s32.totalorder %s23, 3
      %p421 = pnand %p419, %p420
      %p422 = pneg %p421
      // Predicated region
      $region9: #{bevformer_head_forward.1} parent=5 // pred_check
        _
      $region10: #{bevformer_head_forward.1} parent=5 // pred_check_branch
        %424 = sbr.rel (%p421) target = $region12
      $region11: #{bevformer_head_forward.1} parent=5 // pred_region
        %s425 = ssub.s32 %s23, 1
        // Predicated region
        $region13: #{bevformer_head_forward.1} parent=11 // pred_check
          %p426 = pneg %p44
        $region14: #{bevformer_head_forward.1} parent=11 // pred_check_branch
          %428 = sbr.rel (%p426) target = $region16
        $region15: #{bevformer_head_forward.1} parent=11 // pred_region
          _
        $region16: #{bevformer_head_forward.1} parent=11 // pred_fallthru
          _
        // Predicated region
        $region17: #{bevformer_head_forward.1} parent=11 // pred_check
          %p429 = pneg %p65
        $region18: #{bevformer_head_forward.1} parent=11 // pred_check_branch
          %431 = sbr.rel (%p429) target = $region20
        $region19: #{bevformer_head_forward.1} parent=11 // pred_region
          _
        $region20: #{bevformer_head_forward.1} parent=11 // pred_fallthru
          _
        // Predicated region
        $region21: #{bevformer_head_forward.1} parent=11 // pred_check
          %p432 = pneg %p86
        $region22: #{bevformer_head_forward.1} parent=11 // pred_check_branch
          %434 = sbr.rel (%p432) target = $region24
        $region23: #{bevformer_head_forward.1} parent=11 // pred_region
          _
        $region24: #{bevformer_head_forward.1} parent=11 // pred_fallthru
          _
        // Predicated region
        $region25: #{bevformer_head_forward.1} parent=11 // pred_check
          %p435 = pneg %p133
        $region26: #{bevformer_head_forward.1} parent=11 // pred_check_branch
          %437 = sbr.rel (%p435) target = $region28
        $region27: #{bevformer_head_forward.1} parent=11 // pred_region
          _
        $region28: #{bevformer_head_forward.1} parent=11 // pred_fallthru
          _
        // Predicated region
        $region29: #{bevformer_head_forward.1} parent=11 // pred_check
          %p438 = pneg %p154
        $region30: #{bevformer_head_forward.1} parent=11 // pred_check_branch
          %440 = sbr.rel (%p438) target = $region32
        $region31: #{bevformer_head_forward.1} parent=11 // pred_region
          _
        $region32: #{bevformer_head_forward.1} parent=11 // pred_fallthru
          _
        // Predicated region
        $region33: #{bevformer_head_forward.1} parent=11 // pred_check
          %p441 = pneg %p175
        $region34: #{bevformer_head_forward.1} parent=11 // pred_check_branch
          %443 = sbr.rel (%p441) target = $region36
        $region35: #{bevformer_head_forward.1} parent=11 // pred_region
          _
        $region36: #{bevformer_head_forward.1} parent=11 // pred_fallthru
          _
        // Predicated region
        $region37: #{bevformer_head_forward.1} parent=11 // pred_check
          %p444 = pneg %p196
        $region38: #{bevformer_head_forward.1} parent=11 // pred_check_branch
          %446 = sbr.rel (%p444) target = $region40
        $region39: #{bevformer_head_forward.1} parent=11 // pred_region
          _
        $region40: #{bevformer_head_forward.1} parent=11 // pred_fallthru
          _
        // Predicated region
        $region41: #{bevformer_head_forward.1} parent=11 // pred_check
          %p447 = pneg %p217
        $region42: #{bevformer_head_forward.1} parent=11 // pred_check_branch
          %449 = sbr.rel (%p447) target = $region44
        $region43: #{bevformer_head_forward.1} parent=11 // pred_region
          _
        $region44: #{bevformer_head_forward.1} parent=11 // pred_fallthru
          _
        // Predicated region
        $region45: #{bevformer_head_forward.1} parent=11 // pred_check
          %p450 = pneg %p238
        $region46: #{bevformer_head_forward.1} parent=11 // pred_check_branch
          %452 = sbr.rel (%p450) target = $region48
        $region47: #{bevformer_head_forward.1} parent=11 // pred_region
          _
        $region48: #{bevformer_head_forward.1} parent=11 // pred_fallthru
          _
        // Predicated region
        $region49: #{bevformer_head_forward.1} parent=11 // pred_check
          %p453 = pneg %p259
        $region50: #{bevformer_head_forward.1} parent=11 // pred_check_branch
          %455 = sbr.rel (%p453) target = $region52
        $region51: #{bevformer_head_forward.1} parent=11 // pred_region
          _
        $region52: #{bevformer_head_forward.1} parent=11 // pred_fallthru
          _
        // Predicated region
        $region53: #{bevformer_head_forward.1} parent=11 // pred_check
          %p456 = pneg %p280
        $region54: #{bevformer_head_forward.1} parent=11 // pred_check_branch
          %458 = sbr.rel (%p456) target = $region56
        $region55: #{bevformer_head_forward.1} parent=11 // pred_region
          _
        $region56: #{bevformer_head_forward.1} parent=11 // pred_fallthru
          _
        // Predicated region
        $region57: #{bevformer_head_forward.1} parent=11 // pred_check
          %p459 = pneg %p301
        $region58: #{bevformer_head_forward.1} parent=11 // pred_check_branch
          %461 = sbr.rel (%p459) target = $region60
        $region59: #{bevformer_head_forward.1} parent=11 // pred_region
          _
        $region60: #{bevformer_head_forward.1} parent=11 // pred_fallthru
          _
        // Predicated region
        $region61: #{bevformer_head_forward.1} parent=11 // pred_check
          %p462 = pneg %p322
        $region62: #{bevformer_head_forward.1} parent=11 // pred_check_branch
          %464 = sbr.rel (%p462) target = $region64
        $region63: #{bevformer_head_forward.1} parent=11 // pred_region
          _
        $region64: #{bevformer_head_forward.1} parent=11 // pred_fallthru
          _
        // Predicated region
        $region65: #{bevformer_head_forward.1} parent=11 // pred_check
          %p465 = pneg %p343
        $region66: #{bevformer_head_forward.1} parent=11 // pred_check_branch
          %467 = sbr.rel (%p465) target = $region68
        $region67: #{bevformer_head_forward.1} parent=11 // pred_region
          _
        $region68: #{bevformer_head_forward.1} parent=11 // pred_fallthru
          _
        // Predicated region
        $region69: #{bevformer_head_forward.1} parent=11 // pred_check
          %p468 = pneg %p364
        $region70: #{bevformer_head_forward.1} parent=11 // pred_check_branch
          %470 = sbr.rel (%p468) target = $region72
        $region71: #{bevformer_head_forward.1} parent=11 // pred_region
          _
        $region72: #{bevformer_head_forward.1} parent=11 // pred_fallthru
          _
        // Predicated region
        $region73: #{bevformer_head_forward.1} parent=11 // pred_check
          %p471 = pneg %p385
        $region74: #{bevformer_head_forward.1} parent=11 // pred_check_branch
          %473 = sbr.rel (%p471) target = $region76
        $region75: #{bevformer_head_forward.1} parent=11 // pred_region
          _
        $region76: #{bevformer_head_forward.1} parent=11 // pred_fallthru
          _
      $region12: #{bevformer_head_forward.1} parent=5 // pred_fallthru
        _
      %p474 = scmp.lt.s32.totalorder %s23, 2
      // Predicated region
      $region77: #{bevformer_head_forward.1} parent=5 // pred_check
        %p475 = pneg %p474
      $region78: #{bevformer_head_forward.1} parent=5 // pred_check_branch
        %477 = sbr.rel (%p475) target = $region80
      $region79: #{bevformer_head_forward.1} parent=5 // pred_region
        // Predicated region
        $region81: #{bevformer_head_forward.1} parent=79 // pred_check
          %p478 = pneg %p106
        $region82: #{bevformer_head_forward.1} parent=79 // pred_check_branch
          %480 = sbr.rel (%p478) target = $region84
        $region83: #{bevformer_head_forward.1} parent=79 // pred_region
          %p481 = scmp.lt.s32.totalorder %s23, 1
          %s482 = scalar_select %p481, %s23, 1
          %s483 = smul.addr %s482, 8
          %s484 = smul.addr %s483, 4
          %s485 = scalar_lea.vmem %s3, %s484
        $region84: #{bevformer_head_forward.1} parent=79 // pred_fallthru
          _
      $region80: #{bevformer_head_forward.1} parent=5 // pred_fallthru
        _
      %p486 = scmp.le.s32.totalorder 1, %s23
      %p487 = scmp.lt.s32.totalorder %s23, 3
      %p488 = pnand %p486, %p487
      %p489 = pneg %p488
      // Predicated region
      $region85: #{bevformer_head_forward.1} parent=5 // pred_check
        _
      $region86: #{bevformer_head_forward.1} parent=5 // pred_check_branch
        %491 = sbr.rel (%p488) target = $region88
      $region87: #{bevformer_head_forward.1} parent=5 // pred_region
        %s492 = ssub.s32 %s23, 1
        %p493 = pneg %p44
        %p494 = pneg %p41
        %p495 = pneg %p65
        %p496 = pneg %p62
        %p497 = pneg %p86
        %p498 = pneg %p83
        %p499 = scmp.lt.s32.totalorder %s28, 1
        %s500 = scalar_select %p499, %s28, 1
        %s501 = smul.addr %s500, 8
        %s502 = smul.addr %s501, 4
        %s503 = scalar_lea.vmem %s3, %s502
        %p504 = pneg %p112
        %p505 = pneg %p109
        %p506 = pneg %p133
        %p507 = pneg %p130
        %p508 = pneg %p154
        %p509 = pneg %p151
        %p510 = pneg %p175
        %p511 = pneg %p172
        %p512 = pneg %p196
        %p513 = pneg %p193
        %p514 = pneg %p217
        %p515 = pneg %p214
        %p516 = pneg %p238
        %p517 = pneg %p235
        %p518 = pneg %p259
        %p519 = pneg %p256
        %p520 = pneg %p280
        %p521 = pneg %p277
        %p522 = pneg %p301
        %p523 = pneg %p298
        %p524 = pneg %p322
        %p525 = pneg %p319
        %p526 = pneg %p343
        %p527 = pneg %p340
        %p528 = pneg %p364
        %p529 = pneg %p361
        %p530 = pneg %p385
        %p531 = pneg %p382
        %p532 = pneg %p411
        %p533 = pneg %p408
        %s534 = sand.u32 %s398, 1
        %s535 = sand.u32 %s398, 1
        %s536 = smul.addr %s535, 96
        %s537 = scalar_lea.vmem [#allocation2], %s536
        %p538 = scmp.lt.s32.totalorder %s28, 1
        %s539 = scalar_select %p538, %s28, 1
        %s540 = smul.addr %s539, 8
        %s541 = smul.addr %s540, 4
        %s542 = scalar_lea.vmem %s3, %s541
        %v544 = vld [vmem:[%s1] sm:$0xff]
        %v545 = vld [vmem:[%s1 + $0x8] sm:$0xff]
        %v546 = vld [vmem:[%s1 + $0x10] sm:$0xff]
        %v547 = vld [vmem:[%s1 + $0x18] sm:$0xff]
        %v548 = vld [vmem:[%s0] sm:$0xff]
        %v549 = vld [vmem:[%s0 + $0x8] sm:$0xff]
        %v550 = vld [vmem:[%s0 + $0x10] sm:$0xff]
        %v551 = vld [vmem:[%s0 + $0x18] sm:$0xff]
        %v552 = vld [vmem:[%s2] sm:$0xff]
        %v553 = vld [vmem:[%s2 + $0x8] sm:$0xff]
        %v554 = vld [vmem:[%s2 + $0x10] sm:$0xff]
        %v555 = vld [vmem:[%s2 + $0x18] sm:$0xff]
        %v556 = vld [vmem:[%s542] sm:$0xf]
        %v557 = vld [vmem:[%s542 + $0x4] sm:$0xf]
        %v558 = vld [vmem:[%s542 + $0x8] sm:$0xf]
        %v559 = vld [vmem:[%s542 + $0xc] sm:$0xf]
        %v560 = vld [vmem:[%s542 + $0x10] sm:$0xf]
        %v561 = vld [vmem:[%s542 + $0x14] sm:$0xf]
        %v562 = vld [vmem:[%s542 + $0x18] sm:$0xf]
        %v563 = vld [vmem:[%s542 + $0x1c] sm:$0xf]
        %v564 = vlaneseq
        %v565 = vand.u32 %v564, 127
        %vm566 = vcmp.eq.s32.totalorder %v565, 8
        %vm567 = vcmp.eq.s32.totalorder %v565, 9
        %vm568 = vcmp.eq.s32.totalorder %v565, 12
        %vm569 = vmor %vm566, %vm567
        %vm570 = vmor %vm569, %vm568
        %v571 = vsel %vm568, 8.0, 1.0
        %v572 = vsel %vm567, 102.4, %v571
        %v573 = vsel %vm566, 102.4, %v572
        %v574 = vsel %vm568, -5.0, 0.0
        %v575 = vsel %vm567, -51.2, %v574
        %v576 = vsel %vm566, -51.2, %v575
        %v577 = vadd.f32 %v548, %v544
        %v578 = vadd.f32 %v549, %v545
        %v579 = vadd.f32 %v550, %v546
        %v580 = vadd.f32 %v551, %v547
        %v581 = vpack.c.bf16 %v578, %v577
        %v582 = vpack.c.bf16 %v580, %v579
        %v591 = vunpack.c.l.b16 %v556
        %v592 = vunpack.c.l.b16 %v557
        %v593 = vunpack.c.l.b16 %v558
        %v594 = vunpack.c.l.b16 %v559
        %v595 = vunpack.c.l.b16 %v560
        %v596 = vunpack.c.l.b16 %v561
        %v597 = vunpack.c.l.b16 %v562
        %v598 = vunpack.c.l.b16 %v563
        %v599 = vpack.c.b16 %v592, %v591
        %v600 = vpack.c.b16 %v594, %v593
        %v601 = vpack.c.b16 %v596, %v595
        %v602 = vpack.c.b16 %v598, %v597
        %607 = vmatprep.subr.bf16.mxu0 0
        %608 = vmatpush1.bf16.xpose.msra.mxu0 0
        %609 = vmatprep.subr.bf16.mxu0 0
        %610 = vmatpush1.bf16.xpose.msra.mxu0 0
        %611 = vmatprep.subr.bf16.mxu0 0
        %612 = vmatpush1.bf16.xpose.msra.mxu0 0
        %613 = vmatprep.subr.bf16.mxu0 0
        %614 = vmatpush1.bf16.xpose.msra.mxu0 0
        %615 = vmatprep.subr.bf16.mxu0 0
        %616 = vmatpush1.bf16.xpose.msra.mxu0 %v602
        %617 = vmatprep.subr.bf16.mxu0 0
        %618 = vmatpush1.bf16.xpose.msra.mxu0 %v601
        %619 = vmatprep.subr.bf16.mxu0 0
        %620 = vmatpush1.bf16.xpose.msra.mxu0 %v600
        %621 = vmatprep.subr.bf16.mxu0 0
        %622 = vmatpush1.bf16.xpose.msra.mxu0 %v599
        %623 = vmatprep.subr.bf16.mxu0 0
        %624 = vmatpush2.bf16.xpose.msra.mxu0 0
        %625 = vmatprep.subr.bf16.mxu0 0
        %626 = vmatpush2.bf16.xpose.msra.mxu0 0
        %627 = vmatprep.subr.bf16.mxu0 0
        %628 = vmatpush2.bf16.xpose.msra.mxu0 0
        %629 = vmatprep.subr.bf16.mxu0 0
        %630 = vmatpush2.bf16.xpose.msra.mxu0 0
        %631 = vmatprep.subr.bf16.mxu0 0
        %632 = vmatpush2.bf16.xpose.msra.mxu0 0
        %633 = vmatprep.subr.bf16.mxu0 0
        %634 = vmatpush2.bf16.xpose.msra.mxu0 0
        %635 = vmatprep.subr.bf16.mxu0 0
        %636 = vmatpush2.bf16.xpose.msra.mxu0 0
        %637 = vmatprep.subr.bf16.mxu0 0
        %638 = vmatpush2.bf16.xpose.msra.mxu0 0
        %639 = vmatprep.mubr.bf16.mxu0 0
        %640 = vmatmul.mubr.bf16.gmra.mxu0 %v581
        %v641 = vpop.f32.mrf.mxu0
        %v642 = vadd.f32 0.0, %v641
        %v643 = vpop.f32.mrf.mxu0
        %v644 = vpop.f32.mrf.mxu0
        %v645 = vadd.f32 0.0, %v644
        %v646 = vpop.f32.mrf.mxu0
        %647 = vmatprep.mubr.bf16.mxu0 0
        %648 = vmatmul.mubr.bf16.gmra.mxu0 %v582
        %v649 = vpop.f32.mrf.mxu0
        %v650 = vadd.f32 0.0, %v649
        %v651 = vpop.f32.mrf.mxu0
        %v652 = vpop.f32.mrf.mxu0
        %v653 = vadd.f32 0.0, %v652
        %v654 = vpop.f32.mrf.mxu0
        %655 = vdwg.mxu0
        %v656 = vmul.f32 %v642, 0.088388346
        %v657 = vmul.f32 %v645, 0.088388346
        %v658 = vmul.f32 %v650, 0.088388346
        %v659 = vmul.f32 %v653, 0.088388346
        %vm660 = vcmask 523264
        %v661 = vsel %vm660, %v656, -inf
        %662 = vmax.xlane.f32.xlu0 %v661
        %v663 = vpop.xlane.xlu0 %662
        %v664 = vsel %vm660, %v657, -inf
        %665 = vmax.xlane.f32.xlu0 %v664
        %v666 = vpop.xlane.xlu0 %665
        %v667 = vsel %vm660, %v658, -inf
        %668 = vmax.xlane.f32.xlu0 %v667
        %v669 = vpop.xlane.xlu0 %668
        %v670 = vsel %vm660, %v659, -inf
        %671 = vmax.xlane.f32.xlu0 %v670
        %v672 = vpop.xlane.xlu0 %671
        %v673 = vsub.f32 %v656, %v663
        %v674 = vsub.f32 %v657, %v666
        %v675 = vsub.f32 %v658, %v669
        %v676 = vsub.f32 %v659, %v672
        %v677 = vmul.f32 %v673, 1.442695
        %v678 = vpow.pop %v677
        %v679 = vmul.f32 %v674, 1.442695
        %v680 = vpow.pop %v679
        %v681 = vmul.f32 %v675, 1.442695
        %v682 = vpow.pop %v681
        %v683 = vmul.f32 %v676, 1.442695
        %v684 = vpow.pop %v683
        %v685 = vsel %vm660, %v678, 0.0
        %686 = vadd.xlane.f32.xlu0 %v685
        %v687 = vpop.xlane.xlu0 %686
        %v688 = vsel %vm660, %v680, 0.0
        %689 = vadd.xlane.f32.xlu0 %v688
        %v690 = vpop.xlane.xlu0 %689
        %v691 = vsel %vm660, %v682, 0.0
        %692 = vadd.xlane.f32.xlu0 %v691
        %v693 = vpop.xlane.xlu0 %692
        %v694 = vsel %vm660, %v684, 0.0
        %695 = vadd.xlane.f32.xlu0 %v694
        %v696 = vpop.xlane.xlu0 %695
        %v697 = vrcp.pop %v687
        %v698 = vrcp.pop %v690
        %v699 = vrcp.pop %v693
        %v700 = vrcp.pop %v696
        %v701 = vmul.f32 %v678, %v697
        %v702 = vmul.f32 %v680, %v698
        %v703 = vmul.f32 %v682, %v699
        %v704 = vmul.f32 %v684, %v700
        %v705 = vpack.c.bf16 %v702, %v701
        %v706 = vpack.c.bf16 %v704, %v703
        %v708 = vsel %vm660, %v705, 0
        %v711 = vsel %vm660, %v706, 0
        %713 = vmatprep.subr.bf16.mxu0 0
        %714 = vmatpush1.bf16.msra.mxu0 0
        %715 = vmatprep.subr.bf16.mxu0 0
        %716 = vmatpush1.bf16.msra.mxu0 0
        %717 = vmatprep.subr.bf16.mxu0 0
        %718 = vmatpush1.bf16.msra.mxu0 0
        %719 = vmatprep.subr.bf16.mxu0 0
        %720 = vmatpush1.bf16.msra.mxu0 0
        %721 = vmatprep.subr.bf16.mxu0 0
        %722 = vmatpush1.bf16.msra.mxu0 %v602
        %723 = vmatprep.subr.bf16.mxu0 0
        %724 = vmatpush1.bf16.msra.mxu0 %v601
        %725 = vmatprep.subr.bf16.mxu0 0
        %726 = vmatpush1.bf16.msra.mxu0 %v600
        %727 = vmatprep.subr.bf16.mxu0 0
        %728 = vmatpush1.bf16.msra.mxu0 %v599
        %729 = vmatprep.subr.bf16.mxu0 0
        %730 = vmatpush2.bf16.msra.mxu0 0
        %731 = vmatprep.subr.bf16.mxu0 0
        %732 = vmatpush2.bf16.msra.mxu0 0
        %733 = vmatprep.subr.bf16.mxu0 0
        %734 = vmatpush2.bf16.msra.mxu0 0
        %735 = vmatprep.subr.bf16.mxu0 0
        %736 = vmatpush2.bf16.msra.mxu0 0
        %737 = vmatprep.subr.bf16.mxu0 0
        %738 = vmatpush2.bf16.msra.mxu0 0
        %739 = vmatprep.subr.bf16.mxu0 0
        %740 = vmatpush2.bf16.msra.mxu0 0
        %741 = vmatprep.subr.bf16.mxu0 0
        %742 = vmatpush2.bf16.msra.mxu0 0
        %743 = vmatprep.subr.bf16.mxu0 0
        %744 = vmatpush2.bf16.msra.mxu0 0
        %745 = vmatprep.mubr.bf16.mxu0 0
        %746 = vmatmul.mubr.bf16.gmra.mxu0 %v708
        %v747 = vpop.f32.mrf.mxu0
        %v748 = vadd.f32 0.0, %v747
        %v749 = vpop.f32.mrf.mxu0
        %v750 = vpop.f32.mrf.mxu0
        %v751 = vadd.f32 0.0, %v750
        %v752 = vpop.f32.mrf.mxu0
        %753 = vmatprep.mubr.bf16.mxu0 0
        %754 = vmatmul.mubr.bf16.gmra.mxu0 %v711
        %v755 = vpop.f32.mrf.mxu0
        %v756 = vadd.f32 0.0, %v755
        %v757 = vpop.f32.mrf.mxu0
        %v758 = vpop.f32.mrf.mxu0
        %v759 = vadd.f32 0.0, %v758
        %v760 = vpop.f32.mrf.mxu0
        %761 = vdwg.mxu0
        %v762 = vadd.f32 %v548, %v748
        %v763 = vadd.f32 %v549, %v751
        %v764 = vadd.f32 %v550, %v756
        %v765 = vadd.f32 %v551, %v759
        %v766 = vld [vmem:[%s4] sm:$0xff]
        %v767 = vld [vmem:[%s4 + $0x8] sm:$0xff]
        %v768 = vld [vmem:[%s4 + $0x10] sm:$0xff]
        %v769 = vld [vmem:[%s4 + $0x18] sm:$0xff]
        %v770 = vld [vmem:[%s4 + $0x20] sm:$0xff]
        %v771 = vld [vmem:[%s4 + $0x28] sm:$0xff]
        %v772 = vld [vmem:[%s4 + $0x30] sm:$0xff]
        %v773 = vld [vmem:[%s4 + $0x38] sm:$0xff]
        %v774 = vld [vmem:[%s4 + $0x40] sm:$0xff]
        %v775 = vld [vmem:[%s4 + $0x48] sm:$0xff]
        %v776 = vld [vmem:[%s4 + $0x50] sm:$0xff]
        %v777 = vld [vmem:[%s4 + $0x58] sm:$0xff]
        %v778 = vld [vmem:[%s4 + $0x60] sm:$0xff]
        %v779 = vld [vmem:[%s4 + $0x68] sm:$0xff]
        %v780 = vld [vmem:[%s4 + $0x70] sm:$0xff]
        %v781 = vld [vmem:[%s4 + $0x78] sm:$0xff]
        %v782 = vpack.c.bf16 %v763, %v762
        %v783 = vpack.c.bf16 %v765, %v764
        %v784 = vld [vmem:[%s5] sm:$0x3]
        %v786 = vlaneseq
        %v787 = vshrl.u32 %v786, 7
        %v788 = vsub.s32 0, %v787
        %v789 = vrot.slane %v784, %v788
        %v790 = vlaneseq
        %v791 = vshrl.u32 %v790, 7
        %v792 = vsub.s32 1, %v791
        %v793 = vrot.slane %v784, %v792
        %v812 = vunpack.c.l.b16 %v766
        %v813 = vunpack.c.h.b16 %v766
        %v814 = vunpack.c.l.b16 %v767
        %v815 = vunpack.c.h.b16 %v767
        %v816 = vunpack.c.l.b16 %v768
        %v817 = vunpack.c.h.b16 %v768
        %v818 = vunpack.c.l.b16 %v769
        %v819 = vunpack.c.h.b16 %v769
        %v820 = vunpack.c.l.b16 %v770
        %v821 = vunpack.c.h.b16 %v770
        %v822 = vunpack.c.l.b16 %v771
        %v823 = vunpack.c.h.b16 %v771
        %v824 = vunpack.c.l.b16 %v772
        %v825 = vunpack.c.h.b16 %v772
        %v826 = vunpack.c.l.b16 %v773
        %v827 = vunpack.c.h.b16 %v773
        %v828 = vunpack.c.l.b16 %v774
        %v829 = vunpack.c.h.b16 %v774
        %v830 = vunpack.c.l.b16 %v775
        %v831 = vunpack.c.h.b16 %v775
        %v832 = vunpack.c.l.b16 %v776
        %v833 = vunpack.c.h.b16 %v776
        %v834 = vunpack.c.l.b16 %v777
        %v835 = vunpack.c.h.b16 %v777
        %v836 = vunpack.c.l.b16 %v778
        %v837 = vunpack.c.h.b16 %v778
        %v838 = vunpack.c.l.b16 %v779
        %v839 = vunpack.c.h.b16 %v779
        %v840 = vunpack.c.l.b16 %v780
        %v841 = vunpack.c.h.b16 %v780
        %v842 = vunpack.c.l.b16 %v781
        %v843 = vunpack.c.h.b16 %v781
        %v844 = vpack.c.b16 %v814, %v812
        %v845 = vpack.c.b16 %v815, %v813
        %v846 = vpack.c.b16 %v818, %v816
        %v847 = vpack.c.b16 %v819, %v817
        %v848 = vpack.c.b16 %v822, %v820
        %v849 = vpack.c.b16 %v823, %v821
        %v850 = vpack.c.b16 %v826, %v824
        %v851 = vpack.c.b16 %v827, %v825
        %v852 = vpack.c.b16 %v830, %v828
        %v853 = vpack.c.b16 %v831, %v829
        %v854 = vpack.c.b16 %v834, %v832
        %v855 = vpack.c.b16 %v835, %v833
        %v856 = vpack.c.b16 %v838, %v836
        %v857 = vpack.c.b16 %v839, %v837
        %v858 = vpack.c.b16 %v842, %v840
        %v859 = vpack.c.b16 %v843, %v841
        %876 = vmatprep.subr.bf16.mxu0 %v859
        %877 = vmatpush1.bf16.msra.mxu0 %v858
        %878 = vmatprep.subr.bf16.mxu0 %v857
        %879 = vmatpush1.bf16.msra.mxu0 %v856
        %880 = vmatprep.subr.bf16.mxu0 %v855
        %881 = vmatpush1.bf16.msra.mxu0 %v854
        %882 = vmatprep.subr.bf16.mxu0 %v853
        %883 = vmatpush1.bf16.msra.mxu0 %v852
        %884 = vmatprep.subr.bf16.mxu0 %v851
        %885 = vmatpush1.bf16.msra.mxu0 %v850
        %886 = vmatprep.subr.bf16.mxu0 %v849
        %887 = vmatpush1.bf16.msra.mxu0 %v848
        %888 = vmatprep.subr.bf16.mxu0 %v847
        %889 = vmatpush1.bf16.msra.mxu0 %v846
        %890 = vmatprep.subr.bf16.mxu0 %v845
        %891 = vmatpush1.bf16.msra.mxu0 %v844
        %892 = vmatprep.subr.bf16.mxu0 0
        %893 = vmatpush2.bf16.msra.mxu0 0
        %894 = vmatprep.subr.bf16.mxu0 0
        %895 = vmatpush2.bf16.msra.mxu0 0
        %896 = vmatprep.subr.bf16.mxu0 0
        %897 = vmatpush2.bf16.msra.mxu0 0
        %898 = vmatprep.subr.bf16.mxu0 0
        %899 = vmatpush2.bf16.msra.mxu0 0
        %900 = vmatprep.subr.bf16.mxu0 0
        %901 = vmatpush2.bf16.msra.mxu0 0
        %902 = vmatprep.subr.bf16.mxu0 0
        %903 = vmatpush2.bf16.msra.mxu0 0
        %904 = vmatprep.subr.bf16.mxu0 0
        %905 = vmatpush2.bf16.msra.mxu0 0
        %906 = vmatprep.subr.bf16.mxu0 0
        %907 = vmatpush2.bf16.msra.mxu0 0
        %908 = vmatprep.mubr.bf16.mxu0 0
        %909 = vmatmul.mubr.bf16.gmra.mxu0 %v782
        %v910 = vpop.f32.mrf.mxu0
        %v911 = vadd.f32 %v789, %v910
        %v912 = vpop.f32.mrf.mxu0
        %v913 = vadd.f32 %v793, %v912
        %v914 = vpop.f32.mrf.mxu0
        %v915 = vadd.f32 %v789, %v914
        %v916 = vpop.f32.mrf.mxu0
        %v917 = vadd.f32 %v793, %v916
        %918 = vmatprep.mubr.bf16.mxu0 0
        %919 = vmatmul.mubr.bf16.gmra.mxu0 %v783
        %v920 = vpop.f32.mrf.mxu0
        %v921 = vadd.f32 %v789, %v920
        %v922 = vpop.f32.mrf.mxu0
        %v923 = vadd.f32 %v793, %v922
        %v924 = vpop.f32.mrf.mxu0
        %v925 = vadd.f32 %v789, %v924
        %v926 = vpop.f32.mrf.mxu0
        %v927 = vadd.f32 %v793, %v926
        %928 = vdwg.mxu0
        %v929 = vmax.f32 %v913, 0.0
        %v930 = vmax.f32 %v917, 0.0
        %v931 = vmax.f32 %v923, 0.0
        %v932 = vmax.f32 %v927, 0.0
        %v933 = vld [vmem:[%s6] sm:$0x1]
        %v934 = vld [vmem:[%s7] sm:$0x1]
        %935 = vadd.xlane.f32.xlu0 %v911
        %v936 = vpop.xlane.xlu0 %935
        %937 = vadd.xlane.f32.xlu0 %v915
        %v938 = vpop.xlane.xlu0 %937
        %939 = vadd.xlane.f32.xlu0 %v921
        %v940 = vpop.xlane.xlu0 %939
        %941 = vadd.xlane.f32.xlu0 %v925
        %v942 = vpop.xlane.xlu0 %941
        %v943 = vrcp.pop 128.0
        %v944 = vmul.f32 %v936, %v943
        %v945 = vmul.f32 %v938, %v943
        %v946 = vmul.f32 %v940, %v943
        %v947 = vmul.f32 %v942, %v943
        %v948 = vmul.f32 %v911, %v911
        %v949 = vmul.f32 %v915, %v915
        %v950 = vmul.f32 %v921, %v921
        %v951 = vmul.f32 %v925, %v925
        %952 = vadd.xlane.f32.xlu0 %v948
        %v953 = vpop.xlane.xlu0 %952
        %954 = vadd.xlane.f32.xlu0 %v949
        %v955 = vpop.xlane.xlu0 %954
        %956 = vadd.xlane.f32.xlu0 %v950
        %v957 = vpop.xlane.xlu0 %956
        %958 = vadd.xlane.f32.xlu0 %v951
        %v959 = vpop.xlane.xlu0 %958
        %v960 = vmul.f32 %v953, %v943
        %v961 = vmul.f32 %v955, %v943
        %v962 = vmul.f32 %v957, %v943
        %v963 = vmul.f32 %v959, %v943
        %v964 = vmul.f32 %v944, %v944
        %v965 = vmul.f32 %v945, %v945
        %v966 = vmul.f32 %v946, %v946
        %v967 = vmul.f32 %v947, %v947
        %v968 = vsub.f32 %v960, %v964
        %v969 = vsub.f32 %v961, %v965
        %v970 = vsub.f32 %v962, %v966
        %v971 = vsub.f32 %v963, %v967
        %v972 = vmax.f32 %v968, 0.0
        %v973 = vmax.f32 %v969, 0.0
        %v974 = vmax.f32 %v970, 0.0
        %v975 = vmax.f32 %v971, 0.0
        %v976 = vsub.f32 %v911, %v944
        %v977 = vsub.f32 %v915, %v945
        %v978 = vsub.f32 %v921, %v946
        %v979 = vsub.f32 %v925, %v947
        %v980 = vadd.f32 %v972, 1e-05
        %v981 = vadd.f32 %v973, 1e-05
        %v982 = vadd.f32 %v974, 1e-05
        %v983 = vadd.f32 %v975, 1e-05
        %v984 = vrsqrt.pop %v980
        %v985 = vrsqrt.pop %v981
        %v986 = vrsqrt.pop %v982
        %v987 = vrsqrt.pop %v983
        %v988 = vmul.f32 %v976, %v984
        %v989 = vmul.f32 %v977, %v985
        %v990 = vmul.f32 %v978, %v986
        %v991 = vmul.f32 %v979, %v987
        %v993 = vlaneseq
        %v994 = vshrl.u32 %v993, 7
        %v995 = vsub.s32 0, %v994
        %v996 = vrot.slane %v933, %v995
        %v998 = vmul.f32 %v988, %v996
        %v999 = vmul.f32 %v989, %v996
        %v1000 = vmul.f32 %v990, %v996
        %v1001 = vmul.f32 %v991, %v996
        %v1003 = vlaneseq
        %v1004 = vshrl.u32 %v1003, 7
        %v1005 = vsub.s32 0, %v1004
        %v1006 = vrot.slane %v934, %v1005
        %v1008 = vadd.f32 %v998, %v1006
        %v1009 = vadd.f32 %v999, %v1006
        %v1010 = vadd.f32 %v1000, %v1006
        %v1011 = vadd.f32 %v1001, %v1006
        %v1012 = vmax.f32 %v1008, 0.0
        %v1013 = vmax.f32 %v1009, 0.0
        %v1014 = vmax.f32 %v1010, 0.0
        %v1015 = vmax.f32 %v1011, 0.0
        %v1016 = vld [vmem:[%s8] sm:$0xf]
        %v1017 = vld [vmem:[%s8 + $0x4] sm:$0xf]
        %v1018 = vld [vmem:[%s8 + $0x8] sm:$0xf]
        %v1019 = vld [vmem:[%s8 + $0xc] sm:$0xf]
        %v1020 = vld [vmem:[%s8 + $0x10] sm:$0xf]
        %v1021 = vld [vmem:[%s8 + $0x14] sm:$0xf]
        %v1022 = vld [vmem:[%s8 + $0x18] sm:$0xf]
        %v1023 = vld [vmem:[%s8 + $0x1c] sm:$0xf]
        %v1024 = vld [vmem:[%s8 + $0x20] sm:$0xf]
        %v1025 = vld [vmem:[%s8 + $0x24] sm:$0xf]
        %v1026 = vld [vmem:[%s8 + $0x28] sm:$0xf]
        %v1027 = vld [vmem:[%s8 + $0x2c] sm:$0xf]
        %v1028 = vld [vmem:[%s8 + $0x30] sm:$0xf]
        %v1029 = vld [vmem:[%s8 + $0x34] sm:$0xf]
        %v1030 = vld [vmem:[%s8 + $0x38] sm:$0xf]
        %v1031 = vld [vmem:[%s8 + $0x3c] sm:$0xf]
        %v1032 = vpack.c.bf16 %v1013, %v1012
        %v1033 = vpack.c.bf16 %v1015, %v1014
        %v1034 = vld [vmem:[%s9] sm:$0x1]
        %v1036 = vlaneseq
        %v1037 = vshrl.u32 %v1036, 7
        %v1038 = vsub.s32 0, %v1037
        %v1039 = vrot.slane %v1034, %v1038
        %v1057 = vunpack.c.l.b16 %v1016
        %v1058 = vunpack.c.l.b16 %v1017
        %v1059 = vunpack.c.l.b16 %v1018
        %v1060 = vunpack.c.l.b16 %v1019
        %v1061 = vunpack.c.l.b16 %v1020
        %v1062 = vunpack.c.l.b16 %v1021
        %v1063 = vunpack.c.l.b16 %v1022
        %v1064 = vunpack.c.l.b16 %v1023
        %v1065 = vunpack.c.l.b16 %v1024
        %v1066 = vunpack.c.l.b16 %v1025
        %v1067 = vunpack.c.l.b16 %v1026
        %v1068 = vunpack.c.l.b16 %v1027
        %v1069 = vunpack.c.l.b16 %v1028
        %v1070 = vunpack.c.l.b16 %v1029
        %v1071 = vunpack.c.l.b16 %v1030
        %v1072 = vunpack.c.l.b16 %v1031
        %v1073 = vpack.c.b16 %v1058, %v1057
        %v1074 = vpack.c.b16 %v1060, %v1059
        %v1075 = vpack.c.b16 %v1062, %v1061
        %v1076 = vpack.c.b16 %v1064, %v1063
        %v1077 = vpack.c.b16 %v1066, %v1065
        %v1078 = vpack.c.b16 %v1068, %v1067
        %v1079 = vpack.c.b16 %v1070, %v1069
        %v1080 = vpack.c.b16 %v1072, %v1071
        %1089 = vmatprep.subr.bf16.mxu0 0
        %1090 = vmatpush1.bf16.msra.mxu0 %v1080
        %1091 = vmatprep.subr.bf16.mxu0 0
        %1092 = vmatpush1.bf16.msra.mxu0 %v1079
        %1093 = vmatprep.subr.bf16.mxu0 0
        %1094 = vmatpush1.bf16.msra.mxu0 %v1078
        %1095 = vmatprep.subr.bf16.mxu0 0
        %1096 = vmatpush1.bf16.msra.mxu0 %v1077
        %1097 = vmatprep.subr.bf16.mxu0 0
        %1098 = vmatpush1.bf16.msra.mxu0 %v1076
        %1099 = vmatprep.subr.bf16.mxu0 0
        %1100 = vmatpush1.bf16.msra.mxu0 %v1075
        %1101 = vmatprep.subr.bf16.mxu0 0
        %1102 = vmatpush1.bf16.msra.mxu0 %v1074
        %1103 = vmatprep.subr.bf16.mxu0 0
        %1104 = vmatpush1.bf16.msra.mxu0 %v1073
        %1105 = vmatprep.subr.bf16.mxu0 0
        %1106 = vmatpush2.bf16.msra.mxu0 0
        %1107 = vmatprep.subr.bf16.mxu0 0
        %1108 = vmatpush2.bf16.msra.mxu0 0
        %1109 = vmatprep.subr.bf16.mxu0 0
        %1110 = vmatpush2.bf16.msra.mxu0 0
        %1111 = vmatprep.subr.bf16.mxu0 0
        %1112 = vmatpush2.bf16.msra.mxu0 0
        %1113 = vmatprep.subr.bf16.mxu0 0
        %1114 = vmatpush2.bf16.msra.mxu0 0
        %1115 = vmatprep.subr.bf16.mxu0 0
        %1116 = vmatpush2.bf16.msra.mxu0 0
        %1117 = vmatprep.subr.bf16.mxu0 0
        %1118 = vmatpush2.bf16.msra.mxu0 0
        %1119 = vmatprep.subr.bf16.mxu0 0
        %1120 = vmatpush2.bf16.msra.mxu0 0
        %1121 = vmatprep.mubr.bf16.mxu0 0
        %1122 = vmatmul.mubr.bf16.gmra.mxu0 %v1032
        %v1123 = vpop.f32.mrf.mxu0
        %v1124 = vadd.f32 %v1039, %v1123
        %v1125 = vpop.f32.mrf.mxu0
        %v1126 = vpop.f32.mrf.mxu0
        %v1127 = vadd.f32 %v1039, %v1126
        %v1128 = vpop.f32.mrf.mxu0
        %1129 = vmatprep.mubr.bf16.mxu0 0
        %1130 = vmatmul.mubr.bf16.gmra.mxu0 %v1033
        %v1131 = vpop.f32.mrf.mxu0
        %v1132 = vadd.f32 %v1039, %v1131
        %v1133 = vpop.f32.mrf.mxu0
        %v1134 = vpop.f32.mrf.mxu0
        %v1135 = vadd.f32 %v1039, %v1134
        %v1136 = vpop.f32.mrf.mxu0
        %1137 = vdwg.mxu0
        %v1138 = vld [vmem:[%s10] sm:$0x1]
        %v1139 = vld [vmem:[%s11] sm:$0x1]
        %1140 = vadd.xlane.f32.xlu0 %v1124
        %v1141 = vpop.xlane.xlu0 %1140
        %1142 = vadd.xlane.f32.xlu0 %v1127
        %v1143 = vpop.xlane.xlu0 %1142
        %1144 = vadd.xlane.f32.xlu0 %v1132
        %v1145 = vpop.xlane.xlu0 %1144
        %1146 = vadd.xlane.f32.xlu0 %v1135
        %v1147 = vpop.xlane.xlu0 %1146
        %v1148 = vmul.f32 %v1141, %v943
        %v1149 = vmul.f32 %v1143, %v943
        %v1150 = vmul.f32 %v1145, %v943
        %v1151 = vmul.f32 %v1147, %v943
        %v1152 = vmul.f32 %v1124, %v1124
        %v1153 = vmul.f32 %v1127, %v1127
        %v1154 = vmul.f32 %v1132, %v1132
        %v1155 = vmul.f32 %v1135, %v1135
        %1156 = vadd.xlane.f32.xlu0 %v1152
        %v1157 = vpop.xlane.xlu0 %1156
        %1158 = vadd.xlane.f32.xlu0 %v1153
        %v1159 = vpop.xlane.xlu0 %1158
        %1160 = vadd.xlane.f32.xlu0 %v1154
        %v1161 = vpop.xlane.xlu0 %1160
        %1162 = vadd.xlane.f32.xlu0 %v1155
        %v1163 = vpop.xlane.xlu0 %1162
        %v1164 = vmul.f32 %v1157, %v943
        %v1165 = vmul.f32 %v1159, %v943
        %v1166 = vmul.f32 %v1161, %v943
        %v1167 = vmul.f32 %v1163, %v943
        %v1168 = vmul.f32 %v1148, %v1148
        %v1169 = vmul.f32 %v1149, %v1149
        %v1170 = vmul.f32 %v1150, %v1150
        %v1171 = vmul.f32 %v1151, %v1151
        %v1172 = vsub.f32 %v1164, %v1168
        %v1173 = vsub.f32 %v1165, %v1169
        %v1174 = vsub.f32 %v1166, %v1170
        %v1175 = vsub.f32 %v1167, %v1171
        %v1176 = vmax.f32 %v1172, 0.0
        %v1177 = vmax.f32 %v1173, 0.0
        %v1178 = vmax.f32 %v1174, 0.0
        %v1179 = vmax.f32 %v1175, 0.0
        %v1180 = vsub.f32 %v1124, %v1148
        %v1181 = vsub.f32 %v1127, %v1149
        %v1182 = vsub.f32 %v1132, %v1150
        %v1183 = vsub.f32 %v1135, %v1151
        %v1184 = vadd.f32 %v1176, 1e-05
        %v1185 = vadd.f32 %v1177, 1e-05
        %v1186 = vadd.f32 %v1178, 1e-05
        %v1187 = vadd.f32 %v1179, 1e-05
        %v1188 = vrsqrt.pop %v1184
        %v1189 = vrsqrt.pop %v1185
        %v1190 = vrsqrt.pop %v1186
        %v1191 = vrsqrt.pop %v1187
        %v1192 = vmul.f32 %v1180, %v1188
        %v1193 = vmul.f32 %v1181, %v1189
        %v1194 = vmul.f32 %v1182, %v1190
        %v1195 = vmul.f32 %v1183, %v1191
        %v1197 = vlaneseq
        %v1198 = vshrl.u32 %v1197, 7
        %v1199 = vsub.s32 0, %v1198
        %v1200 = vrot.slane %v1138, %v1199
        %v1202 = vmul.f32 %v1192, %v1200
        %v1203 = vmul.f32 %v1193, %v1200
        %v1204 = vmul.f32 %v1194, %v1200
        %v1205 = vmul.f32 %v1195, %v1200
        %v1207 = vlaneseq
        %v1208 = vshrl.u32 %v1207, 7
        %v1209 = vsub.s32 0, %v1208
        %v1210 = vrot.slane %v1139, %v1209
        %v1212 = vadd.f32 %v1202, %v1210
        %v1213 = vadd.f32 %v1203, %v1210
        %v1214 = vadd.f32 %v1204, %v1210
        %v1215 = vadd.f32 %v1205, %v1210
        %v1216 = vmax.f32 %v1212, 0.0
        %v1217 = vmax.f32 %v1213, 0.0
        %v1218 = vmax.f32 %v1214, 0.0
        %v1219 = vmax.f32 %v1215, 0.0
        %v1220 = vld [vmem:[%s12] sm:$0xf]
        %v1221 = vld [vmem:[%s12 + $0x4] sm:$0xf]
        %v1222 = vld [vmem:[%s12 + $0x8] sm:$0xf]
        %v1223 = vld [vmem:[%s12 + $0xc] sm:$0xf]
        %v1224 = vld [vmem:[%s12 + $0x10] sm:$0xf]
        %v1225 = vld [vmem:[%s12 + $0x14] sm:$0xf]
        %v1226 = vld [vmem:[%s12 + $0x18] sm:$0xf]
        %v1227 = vld [vmem:[%s12 + $0x1c] sm:$0xf]
        %v1228 = vld [vmem:[%s12 + $0x20] sm:$0xf]
        %v1229 = vld [vmem:[%s12 + $0x24] sm:$0xf]
        %v1230 = vld [vmem:[%s12 + $0x28] sm:$0xf]
        %v1231 = vld [vmem:[%s12 + $0x2c] sm:$0xf]
        %v1232 = vld [vmem:[%s12 + $0x30] sm:$0xf]
        %v1233 = vld [vmem:[%s12 + $0x34] sm:$0xf]
        %v1234 = vld [vmem:[%s12 + $0x38] sm:$0xf]
        %v1235 = vld [vmem:[%s12 + $0x3c] sm:$0xf]
        %v1236 = vpack.c.bf16 %v930, %v929
        %v1237 = vpack.c.bf16 %v932, %v931
        %v1238 = vld [vmem:[%s13] sm:$0x1]
        %v1240 = vlaneseq
        %v1241 = vshrl.u32 %v1240, 7
        %v1242 = vsub.s32 0, %v1241
        %v1243 = vrot.slane %v1238, %v1242
        %v1261 = vunpack.c.l.b16 %v1220
        %v1262 = vunpack.c.l.b16 %v1221
        %v1263 = vunpack.c.l.b16 %v1222
        %v1264 = vunpack.c.l.b16 %v1223
        %v1265 = vunpack.c.l.b16 %v1224
        %v1266 = vunpack.c.l.b16 %v1225
        %v1267 = vunpack.c.l.b16 %v1226
        %v1268 = vunpack.c.l.b16 %v1227
        %v1269 = vunpack.c.l.b16 %v1228
        %v1270 = vunpack.c.l.b16 %v1229
        %v1271 = vunpack.c.l.b16 %v1230
        %v1272 = vunpack.c.l.b16 %v1231
        %v1273 = vunpack.c.l.b16 %v1232
        %v1274 = vunpack.c.l.b16 %v1233
        %v1275 = vunpack.c.l.b16 %v1234
        %v1276 = vunpack.c.l.b16 %v1235
        %v1277 = vpack.c.b16 %v1262, %v1261
        %v1278 = vpack.c.b16 %v1264, %v1263
        %v1279 = vpack.c.b16 %v1266, %v1265
        %v1280 = vpack.c.b16 %v1268, %v1267
        %v1281 = vpack.c.b16 %v1270, %v1269
        %v1282 = vpack.c.b16 %v1272, %v1271
        %v1283 = vpack.c.b16 %v1274, %v1273
        %v1284 = vpack.c.b16 %v1276, %v1275
        %1293 = vmatprep.subr.bf16.mxu0 0
        %1294 = vmatpush1.bf16.msra.mxu0 %v1284
        %1295 = vmatprep.subr.bf16.mxu0 0
        %1296 = vmatpush1.bf16.msra.mxu0 %v1283
        %1297 = vmatprep.subr.bf16.mxu0 0
        %1298 = vmatpush1.bf16.msra.mxu0 %v1282
        %1299 = vmatprep.subr.bf16.mxu0 0
        %1300 = vmatpush1.bf16.msra.mxu0 %v1281
        %1301 = vmatprep.subr.bf16.mxu0 0
        %1302 = vmatpush1.bf16.msra.mxu0 %v1280
        %1303 = vmatprep.subr.bf16.mxu0 0
        %1304 = vmatpush1.bf16.msra.mxu0 %v1279
        %1305 = vmatprep.subr.bf16.mxu0 0
        %1306 = vmatpush1.bf16.msra.mxu0 %v1278
        %1307 = vmatprep.subr.bf16.mxu0 0
        %1308 = vmatpush1.bf16.msra.mxu0 %v1277
        %1309 = vmatprep.subr.bf16.mxu0 0
        %1310 = vmatpush2.bf16.msra.mxu0 0
        %1311 = vmatprep.subr.bf16.mxu0 0
        %1312 = vmatpush2.bf16.msra.mxu0 0
        %1313 = vmatprep.subr.bf16.mxu0 0
        %1314 = vmatpush2.bf16.msra.mxu0 0
        %1315 = vmatprep.subr.bf16.mxu0 0
        %1316 = vmatpush2.bf16.msra.mxu0 0
        %1317 = vmatprep.subr.bf16.mxu0 0
        %1318 = vmatpush2.bf16.msra.mxu0 0
        %1319 = vmatprep.subr.bf16.mxu0 0
        %1320 = vmatpush2.bf16.msra.mxu0 0
        %1321 = vmatprep.subr.bf16.mxu0 0
        %1322 = vmatpush2.bf16.msra.mxu0 0
        %1323 = vmatprep.subr.bf16.mxu0 0
        %1324 = vmatpush2.bf16.msra.mxu0 0
        %1325 = vmatprep.mubr.bf16.mxu0 0
        %1326 = vmatmul.mubr.bf16.gmra.mxu0 %v1236
        %v1327 = vpop.f32.mrf.mxu0
        %v1328 = vadd.f32 %v1243, %v1327
        %v1329 = vpop.f32.mrf.mxu0
        %v1330 = vpop.f32.mrf.mxu0
        %v1331 = vadd.f32 %v1243, %v1330
        %v1332 = vpop.f32.mrf.mxu0
        %1333 = vmatprep.mubr.bf16.mxu0 0
        %1334 = vmatmul.mubr.bf16.gmra.mxu0 %v1237
        %v1335 = vpop.f32.mrf.mxu0
        %v1336 = vadd.f32 %v1243, %v1335
        %v1337 = vpop.f32.mrf.mxu0
        %v1338 = vpop.f32.mrf.mxu0
        %v1339 = vadd.f32 %v1243, %v1338
        %v1340 = vpop.f32.mrf.mxu0
        %1341 = vdwg.mxu0
        %v1342 = vmax.f32 %v1328, 0.0
        %v1343 = vmax.f32 %v1331, 0.0
        %v1344 = vmax.f32 %v1336, 0.0
        %v1345 = vmax.f32 %v1339, 0.0
        %v1346 = vld [vmem:[%s14] sm:$0xf]
        %v1347 = vld [vmem:[%s14 + $0x4] sm:$0xf]
        %v1348 = vld [vmem:[%s14 + $0x8] sm:$0xf]
        %v1349 = vld [vmem:[%s14 + $0xc] sm:$0xf]
        %v1350 = vld [vmem:[%s14 + $0x10] sm:$0xf]
        %v1351 = vld [vmem:[%s14 + $0x14] sm:$0xf]
        %v1352 = vld [vmem:[%s14 + $0x18] sm:$0xf]
        %v1353 = vld [vmem:[%s14 + $0x1c] sm:$0xf]
        %v1354 = vld [vmem:[%s14 + $0x20] sm:$0xf]
        %v1355 = vld [vmem:[%s14 + $0x24] sm:$0xf]
        %v1356 = vld [vmem:[%s14 + $0x28] sm:$0xf]
        %v1357 = vld [vmem:[%s14 + $0x2c] sm:$0xf]
        %v1358 = vld [vmem:[%s14 + $0x30] sm:$0xf]
        %v1359 = vld [vmem:[%s14 + $0x34] sm:$0xf]
        %v1360 = vld [vmem:[%s14 + $0x38] sm:$0xf]
        %v1361 = vld [vmem:[%s14 + $0x3c] sm:$0xf]
        %v1362 = vpack.c.bf16 %v1217, %v1216
        %v1363 = vpack.c.bf16 %v1219, %v1218
        %v1364 = vld [vmem:[%s15] sm:$0xf]
        %v1365 = vld [vmem:[%s15 + $0x4] sm:$0xf]
        %v1366 = vld [vmem:[%s15 + $0x8] sm:$0xf]
        %v1367 = vld [vmem:[%s15 + $0xc] sm:$0xf]
        %v1368 = vld [vmem:[%s15 + $0x10] sm:$0xf]
        %v1369 = vld [vmem:[%s15 + $0x14] sm:$0xf]
        %v1370 = vld [vmem:[%s15 + $0x18] sm:$0xf]
        %v1371 = vld [vmem:[%s15 + $0x1c] sm:$0xf]
        %v1372 = vld [vmem:[%s15 + $0x20] sm:$0xf]
        %v1373 = vld [vmem:[%s15 + $0x24] sm:$0xf]
        %v1374 = vld [vmem:[%s15 + $0x28] sm:$0xf]
        %v1375 = vld [vmem:[%s15 + $0x2c] sm:$0xf]
        %v1376 = vld [vmem:[%s15 + $0x30] sm:$0xf]
        %v1377 = vld [vmem:[%s15 + $0x34] sm:$0xf]
        %v1378 = vld [vmem:[%s15 + $0x38] sm:$0xf]
        %v1379 = vld [vmem:[%s15 + $0x3c] sm:$0xf]
        %v1380 = vpack.c.bf16 %v1343, %v1342
        %v1381 = vpack.c.bf16 %v1345, %v1344
        %v1398 = vunpack.c.l.b16 %v1364
        %v1399 = vunpack.c.l.b16 %v1365
        %v1400 = vunpack.c.l.b16 %v1366
        %v1401 = vunpack.c.l.b16 %v1367
        %v1402 = vunpack.c.l.b16 %v1368
        %v1403 = vunpack.c.l.b16 %v1369
        %v1404 = vunpack.c.l.b16 %v1370
        %v1405 = vunpack.c.l.b16 %v1371
        %v1406 = vunpack.c.l.b16 %v1372
        %v1407 = vunpack.c.l.b16 %v1373
        %v1408 = vunpack.c.l.b16 %v1374
        %v1409 = vunpack.c.l.b16 %v1375
        %v1410 = vunpack.c.l.b16 %v1376
        %v1411 = vunpack.c.l.b16 %v1377
        %v1412 = vunpack.c.l.b16 %v1378
        %v1413 = vunpack.c.l.b16 %v1379
        %v1414 = vpack.c.b16 %v1399, %v1398
        %v1415 = vpack.c.b16 %v1401, %v1400
        %v1416 = vpack.c.b16 %v1403, %v1402
        %v1417 = vpack.c.b16 %v1405, %v1404
        %v1418 = vpack.c.b16 %v1407, %v1406
        %v1419 = vpack.c.b16 %v1409, %v1408
        %v1420 = vpack.c.b16 %v1411, %v1410
        %v1421 = vpack.c.b16 %v1413, %v1412
        %1430 = vmatprep.subr.bf16.mxu0 0
        %1431 = vmatpush1.bf16.msra.mxu0 %v1421
        %1432 = vmatprep.subr.bf16.mxu0 0
        %1433 = vmatpush1.bf16.msra.mxu0 %v1420
        %1434 = vmatprep.subr.bf16.mxu0 0
        %1435 = vmatpush1.bf16.msra.mxu0 %v1419
        %1436 = vmatprep.subr.bf16.mxu0 0
        %1437 = vmatpush1.bf16.msra.mxu0 %v1418
        %1438 = vmatprep.subr.bf16.mxu0 0
        %1439 = vmatpush1.bf16.msra.mxu0 %v1417
        %1440 = vmatprep.subr.bf16.mxu0 0
        %1441 = vmatpush1.bf16.msra.mxu0 %v1416
        %1442 = vmatprep.subr.bf16.mxu0 0
        %1443 = vmatpush1.bf16.msra.mxu0 %v1415
        %1444 = vmatprep.subr.bf16.mxu0 0
        %1445 = vmatpush1.bf16.msra.mxu0 %v1414
        %1446 = vmatprep.subr.bf16.mxu0 0
        %1447 = vmatpush2.bf16.msra.mxu0 0
        %1448 = vmatprep.subr.bf16.mxu0 0
        %1449 = vmatpush2.bf16.msra.mxu0 0
        %1450 = vmatprep.subr.bf16.mxu0 0
        %1451 = vmatpush2.bf16.msra.mxu0 0
        %1452 = vmatprep.subr.bf16.mxu0 0
        %1453 = vmatpush2.bf16.msra.mxu0 0
        %1454 = vmatprep.subr.bf16.mxu0 0
        %1455 = vmatpush2.bf16.msra.mxu0 0
        %1456 = vmatprep.subr.bf16.mxu0 0
        %1457 = vmatpush2.bf16.msra.mxu0 0
        %1458 = vmatprep.subr.bf16.mxu0 0
        %1459 = vmatpush2.bf16.msra.mxu0 0
        %1460 = vmatprep.subr.bf16.mxu0 0
        %1461 = vmatpush2.bf16.msra.mxu0 0
        %1462 = vmatprep.mubr.bf16.mxu0 0
        %1463 = vmatmul.mubr.bf16.gmra.mxu0 %v1380
        %v1464 = vpop.f32.mrf.mxu0
        %v1465 = vadd.f32 0.0, %v1464
        %v1466 = vpop.f32.mrf.mxu0
        %v1467 = vpop.f32.mrf.mxu0
        %v1468 = vadd.f32 0.0, %v1467
        %v1469 = vpop.f32.mrf.mxu0
        %1470 = vmatprep.mubr.bf16.mxu0 0
        %1471 = vmatmul.mubr.bf16.gmra.mxu0 %v1381
        %v1472 = vpop.f32.mrf.mxu0
        %v1473 = vadd.f32 0.0, %v1472
        %v1474 = vpop.f32.mrf.mxu0
        %v1475 = vpop.f32.mrf.mxu0
        %v1476 = vadd.f32 0.0, %v1475
        %v1477 = vpop.f32.mrf.mxu0
        %1478 = vdwg.mxu0
        %v1495 = vunpack.c.l.b16 %v1346
        %v1496 = vunpack.c.l.b16 %v1347
        %v1497 = vunpack.c.l.b16 %v1348
        %v1498 = vunpack.c.l.b16 %v1349
        %v1499 = vunpack.c.l.b16 %v1350
        %v1500 = vunpack.c.l.b16 %v1351
        %v1501 = vunpack.c.l.b16 %v1352
        %v1502 = vunpack.c.l.b16 %v1353
        %v1503 = vunpack.c.l.b16 %v1354
        %v1504 = vunpack.c.l.b16 %v1355
        %v1505 = vunpack.c.l.b16 %v1356
        %v1506 = vunpack.c.l.b16 %v1357
        %v1507 = vunpack.c.l.b16 %v1358
        %v1508 = vunpack.c.l.b16 %v1359
        %v1509 = vunpack.c.l.b16 %v1360
        %v1510 = vunpack.c.l.b16 %v1361
        %v1511 = vpack.c.b16 %v1496, %v1495
        %v1512 = vpack.c.b16 %v1498, %v1497
        %v1513 = vpack.c.b16 %v1500, %v1499
        %v1514 = vpack.c.b16 %v1502, %v1501
        %v1515 = vpack.c.b16 %v1504, %v1503
        %v1516 = vpack.c.b16 %v1506, %v1505
        %v1517 = vpack.c.b16 %v1508, %v1507
        %v1518 = vpack.c.b16 %v1510, %v1509
        %1527 = vmatprep.subr.bf16.mxu0 0
        %1528 = vmatpush1.bf16.msra.mxu0 %v1518
        %1529 = vmatprep.subr.bf16.mxu0 0
        %1530 = vmatpush1.bf16.msra.mxu0 %v1517
        %1531 = vmatprep.subr.bf16.mxu0 0
        %1532 = vmatpush1.bf16.msra.mxu0 %v1516
        %1533 = vmatprep.subr.bf16.mxu0 0
        %1534 = vmatpush1.bf16.msra.mxu0 %v1515
        %1535 = vmatprep.subr.bf16.mxu0 0
        %1536 = vmatpush1.bf16.msra.mxu0 %v1514
        %1537 = vmatprep.subr.bf16.mxu0 0
        %1538 = vmatpush1.bf16.msra.mxu0 %v1513
        %1539 = vmatprep.subr.bf16.mxu0 0
        %1540 = vmatpush1.bf16.msra.mxu0 %v1512
        %1541 = vmatprep.subr.bf16.mxu0 0
        %1542 = vmatpush1.bf16.msra.mxu0 %v1511
        %1543 = vmatprep.subr.bf16.mxu0 0
        %1544 = vmatpush2.bf16.msra.mxu0 0
        %1545 = vmatprep.subr.bf16.mxu0 0
        %1546 = vmatpush2.bf16.msra.mxu0 0
        %1547 = vmatprep.subr.bf16.mxu0 0
        %1548 = vmatpush2.bf16.msra.mxu0 0
        %1549 = vmatprep.subr.bf16.mxu0 0
        %1550 = vmatpush2.bf16.msra.mxu0 0
        %1551 = vmatprep.subr.bf16.mxu0 0
        %1552 = vmatpush2.bf16.msra.mxu0 0
        %1553 = vmatprep.subr.bf16.mxu0 0
        %1554 = vmatpush2.bf16.msra.mxu0 0
        %1555 = vmatprep.subr.bf16.mxu0 0
        %1556 = vmatpush2.bf16.msra.mxu0 0
        %1557 = vmatprep.subr.bf16.mxu0 0
        %1558 = vmatpush2.bf16.msra.mxu0 0
        %1559 = vmatprep.mubr.bf16.mxu0 0
        %1560 = vmatmul.mubr.bf16.gmra.mxu0 %v1362
        %v1561 = vpop.f32.mrf.mxu0
        %v1562 = vadd.f32 %v1465, %v1561
        %v1563 = vpop.f32.mrf.mxu0
        %v1564 = vpop.f32.mrf.mxu0
        %v1565 = vadd.f32 %v1468, %v1564
        %v1566 = vpop.f32.mrf.mxu0
        %1567 = vmatprep.mubr.bf16.mxu0 0
        %1568 = vmatmul.mubr.bf16.gmra.mxu0 %v1363
        %v1569 = vpop.f32.mrf.mxu0
        %v1570 = vadd.f32 %v1473, %v1569
        %v1571 = vpop.f32.mrf.mxu0
        %v1572 = vpop.f32.mrf.mxu0
        %v1573 = vadd.f32 %v1476, %v1572
        %v1574 = vpop.f32.mrf.mxu0
        %1575 = vdwg.mxu0
        %v1576 = vld [vmem:[%s16] sm:$0x1]
        %v1578 = vlaneseq
        %v1579 = vshrl.u32 %v1578, 7
        %v1580 = vsub.s32 0, %v1579
        %v1581 = vrot.slane %v1576, %v1580
        %v1583 = vadd.f32 %v1562, %v1581
        %v1584 = vadd.f32 %v1565, %v1581
        %v1585 = vadd.f32 %v1570, %v1581
        %v1586 = vadd.f32 %v1573, %v1581
        %v1587 = vmax.f32 %v552, 0.0
        %v1588 = vmax.f32 %v553, 0.0
        %v1589 = vmax.f32 %v554, 0.0
        %v1590 = vmax.f32 %v555, 0.0
        %v1591 = vmin.f32 %v1587, 1.0
        %v1592 = vmin.f32 %v1588, 1.0
        %v1593 = vmin.f32 %v1589, 1.0
        %v1594 = vmin.f32 %v1590, 1.0
        %v1595 = vmax.f32 %v1591, 1e-05
        %v1596 = vmax.f32 %v1592, 1e-05
        %v1597 = vmax.f32 %v1593, 1e-05
        %v1598 = vmax.f32 %v1594, 1e-05
        %v1599 = vsub.f32 1.0, %v1591
        %v1600 = vsub.f32 1.0, %v1592
        %v1601 = vsub.f32 1.0, %v1593
        %v1602 = vsub.f32 1.0, %v1594
        %v1603 = vmax.f32 %v1599, 1e-05
        %v1604 = vmax.f32 %v1600, 1e-05
        %v1605 = vmax.f32 %v1601, 1e-05
        %v1606 = vmax.f32 %v1602, 1e-05
        %v1607 = vrcp.pop %v1603
        %v1608 = vmul.f32 %v1595, %v1607
        %v1609 = vrcp.pop %v1604
        %v1610 = vmul.f32 %v1596, %v1609
        %v1611 = vrcp.pop %v1605
        %v1612 = vmul.f32 %v1597, %v1611
        %v1613 = vrcp.pop %v1606
        %v1614 = vmul.f32 %v1598, %v1613
        %v1615 = vlog2.pop %v1608
        %v1616 = vmul.f32 %v1615, 0.6931472
        %v1617 = vlog2.pop %v1610
        %v1618 = vmul.f32 %v1617, 0.6931472
        %v1619 = vlog2.pop %v1612
        %v1620 = vmul.f32 %v1619, 0.6931472
        %v1621 = vlog2.pop %v1614
        %v1622 = vmul.f32 %v1621, 0.6931472
        %v1623 = vsel %vm570, 1, 0
        %vm1624 = vcmp.eq.s32.totalorder %v1623, 1
        %v1625 = vsel %vm1624, %v1616, 0.0
        %v1626 = vsel %vm1624, %v1618, 0.0
        %v1627 = vsel %vm1624, %v1620, 0.0
        %v1628 = vsel %vm1624, %v1622, 0.0
        %v1629 = vadd.f32 %v1583, %v1625
        %v1630 = vadd.f32 %v1584, %v1626
        %v1631 = vadd.f32 %v1585, %v1627
        %v1632 = vadd.f32 %v1586, %v1628
        %v1633 = vsub.f32 0.0, %v1629
        %v1634 = vsub.f32 0.0, %v1630
        %v1635 = vsub.f32 0.0, %v1631
        %v1636 = vsub.f32 0.0, %v1632
        %v1637 = vmul.f32 %v1633, 1.442695
        %v1638 = vpow.pop %v1637
        %v1639 = vmul.f32 %v1634, 1.442695
        %v1640 = vpow.pop %v1639
        %v1641 = vmul.f32 %v1635, 1.442695
        %v1642 = vpow.pop %v1641
        %v1643 = vmul.f32 %v1636, 1.442695
        %v1644 = vpow.pop %v1643
        %v1645 = vadd.f32 %v1638, 1.0
        %v1646 = vadd.f32 %v1640, 1.0
        %v1647 = vadd.f32 %v1642, 1.0
        %v1648 = vadd.f32 %v1644, 1.0
        %v1649 = vrcp.pop %v1645
        %v1650 = vmul.f32 1.0, %v1649
        %v1651 = vrcp.pop %v1646
        %v1652 = vmul.f32 1.0, %v1651
        %v1653 = vrcp.pop %v1647
        %v1654 = vmul.f32 1.0, %v1653
        %v1655 = vrcp.pop %v1648
        %v1656 = vmul.f32 1.0, %v1655
        %v1657 = vsel %vm1624, %v1650, %v1583
        %v1658 = vsel %vm1624, %v1652, %v1584
        %v1659 = vsel %vm1624, %v1654, %v1585
        %v1660 = vsel %vm1624, %v1656, %v1586
        %v1661 = vmul.f32 %v1657, %v573
        %v1662 = vmul.f32 %v1658, %v573
        %v1663 = vmul.f32 %v1659, %v573
        %v1664 = vmul.f32 %v1660, %v573
        %v1665 = vadd.f32 %v1661, %v576
        %v1666 = vadd.f32 %v1662, %v576
        %v1667 = vadd.f32 %v1663, %v576
        %v1668 = vadd.f32 %v1664, %v576
        %1669 = vst [vmem:[%s537] sm:$0xff] %v1665
        %1670 = vst [vmem:[%s537 + $0x8] sm:$0xff] %v1666
        %1671 = vst [vmem:[%s537 + $0x10] sm:$0xff] %v1667
        %1672 = vst [vmem:[%s537 + $0x18] sm:$0xff] %v1668
        %v1673 = vadd.f32 %v762, %v544
        %v1674 = vadd.f32 %v763, %v545
        %v1675 = vadd.f32 %v764, %v546
        %v1676 = vadd.f32 %v765, %v547
        %v1677 = vpack.c.bf16 %v1674, %v1673
        %v1678 = vpack.c.bf16 %v1676, %v1675
        %1679 = vmatprep.subr.bf16.mxu0 0
        %1680 = vmatpush1.bf16.xpose.msra.mxu0 0
        %1681 = vmatprep.subr.bf16.mxu0 0
        %1682 = vmatpush1.bf16.xpose.msra.mxu0 0
        %1683 = vmatprep.subr.bf16.mxu0 0
        %1684 = vmatpush1.bf16.xpose.msra.mxu0 0
        %1685 = vmatprep.subr.bf16.mxu0 0
        %1686 = vmatpush1.bf16.xpose.msra.mxu0 0
        %1687 = vmatprep.subr.bf16.mxu0 0
        %1688 = vmatpush1.bf16.xpose.msra.mxu0 %v602
        %1689 = vmatprep.subr.bf16.mxu0 0
        %1690 = vmatpush1.bf16.xpose.msra.mxu0 %v601
        %1691 = vmatprep.subr.bf16.mxu0 0
        %1692 = vmatpush1.bf16.xpose.msra.mxu0 %v600
        %1693 = vmatprep.subr.bf16.mxu0 0
        %1694 = vmatpush1.bf16.xpose.msra.mxu0 %v599
        %1695 = vmatprep.subr.bf16.mxu0 0
        %1696 = vmatpush2.bf16.xpose.msra.mxu0 0
        %1697 = vmatprep.subr.bf16.mxu0 0
        %1698 = vmatpush2.bf16.xpose.msra.mxu0 0
        %1699 = vmatprep.subr.bf16.mxu0 0
        %1700 = vmatpush2.bf16.xpose.msra.mxu0 0
        %1701 = vmatprep.subr.bf16.mxu0 0
        %1702 = vmatpush2.bf16.xpose.msra.mxu0 0
        %1703 = vmatprep.subr.bf16.mxu0 0
        %1704 = vmatpush2.bf16.xpose.msra.mxu0 0
        %1705 = vmatprep.subr.bf16.mxu0 0
        %1706 = vmatpush2.bf16.xpose.msra.mxu0 0
        %1707 = vmatprep.subr.bf16.mxu0 0
        %1708 = vmatpush2.bf16.xpose.msra.mxu0 0
        %1709 = vmatprep.subr.bf16.mxu0 0
        %1710 = vmatpush2.bf16.xpose.msra.mxu0 0
        %1711 = vmatprep.mubr.bf16.mxu0 0
        %1712 = vmatmul.mubr.bf16.gmra.mxu0 %v1677
        %v1713 = vpop.f32.mrf.mxu0
        %v1714 = vadd.f32 0.0, %v1713
        %v1715 = vpop.f32.mrf.mxu0
        %v1716 = vpop.f32.mrf.mxu0
        %v1717 = vadd.f32 0.0, %v1716
        %v1718 = vpop.f32.mrf.mxu0
        %1719 = vmatprep.mubr.bf16.mxu0 0
        %1720 = vmatmul.mubr.bf16.gmra.mxu0 %v1678
        %v1721 = vpop.f32.mrf.mxu0
        %v1722 = vadd.f32 0.0, %v1721
        %v1723 = vpop.f32.mrf.mxu0
        %v1724 = vpop.f32.mrf.mxu0
        %v1725 = vadd.f32 0.0, %v1724
        %v1726 = vpop.f32.mrf.mxu0
        %1727 = vdwg.mxu0
        %v1728 = vmul.f32 %v1714, 0.088388346
        %v1729 = vmul.f32 %v1717, 0.088388346
        %v1730 = vmul.f32 %v1722, 0.088388346
        %v1731 = vmul.f32 %v1725, 0.088388346
        %v1732 = vsel %vm660, %v1728, -inf
        %1733 = vmax.xlane.f32.xlu0 %v1732
        %v1734 = vpop.xlane.xlu0 %1733
        %v1735 = vsel %vm660, %v1729, -inf
        %1736 = vmax.xlane.f32.xlu0 %v1735
        %v1737 = vpop.xlane.xlu0 %1736
        %v1738 = vsel %vm660, %v1730, -inf
        %1739 = vmax.xlane.f32.xlu0 %v1738
        %v1740 = vpop.xlane.xlu0 %1739
        %v1741 = vsel %vm660, %v1731, -inf
        %1742 = vmax.xlane.f32.xlu0 %v1741
        %v1743 = vpop.xlane.xlu0 %1742
        %v1744 = vsub.f32 %v1728, %v1734
        %v1745 = vsub.f32 %v1729, %v1737
        %v1746 = vsub.f32 %v1730, %v1740
        %v1747 = vsub.f32 %v1731, %v1743
        %v1748 = vmul.f32 %v1744, 1.442695
        %v1749 = vpow.pop %v1748
        %v1750 = vmul.f32 %v1745, 1.442695
        %v1751 = vpow.pop %v1750
        %v1752 = vmul.f32 %v1746, 1.442695
        %v1753 = vpow.pop %v1752
        %v1754 = vmul.f32 %v1747, 1.442695
        %v1755 = vpow.pop %v1754
        %v1756 = vsel %vm660, %v1749, 0.0
        %1757 = vadd.xlane.f32.xlu0 %v1756
        %v1758 = vpop.xlane.xlu0 %1757
        %v1759 = vsel %vm660, %v1751, 0.0
        %1760 = vadd.xlane.f32.xlu0 %v1759
        %v1761 = vpop.xlane.xlu0 %1760
        %v1762 = vsel %vm660, %v1753, 0.0
        %1763 = vadd.xlane.f32.xlu0 %v1762
        %v1764 = vpop.xlane.xlu0 %1763
        %v1765 = vsel %vm660, %v1755, 0.0
        %1766 = vadd.xlane.f32.xlu0 %v1765
        %v1767 = vpop.xlane.xlu0 %1766
        %v1768 = vrcp.pop %v1758
        %v1769 = vrcp.pop %v1761
        %v1770 = vrcp.pop %v1764
        %v1771 = vrcp.pop %v1767
        %v1772 = vmul.f32 %v1749, %v1768
        %v1773 = vmul.f32 %v1751, %v1769
        %v1774 = vmul.f32 %v1753, %v1770
        %v1775 = vmul.f32 %v1755, %v1771
        %v1776 = vpack.c.bf16 %v1773, %v1772
        %v1777 = vpack.c.bf16 %v1775, %v1774
        %v1779 = vsel %vm660, %v1776, 0
        %v1782 = vsel %vm660, %v1777, 0
        %1784 = vmatprep.subr.bf16.mxu0 0
        %1785 = vmatpush1.bf16.msra.mxu0 0
        %1786 = vmatprep.subr.bf16.mxu0 0
        %1787 = vmatpush1.bf16.msra.mxu0 0
        %1788 = vmatprep.subr.bf16.mxu0 0
        %1789 = vmatpush1.bf16.msra.mxu0 0
        %1790 = vmatprep.subr.bf16.mxu0 0
        %1791 = vmatpush1.bf16.msra.mxu0 0
        %1792 = vmatprep.subr.bf16.mxu0 0
        %1793 = vmatpush1.bf16.msra.mxu0 %v602
        %1794 = vmatprep.subr.bf16.mxu0 0
        %1795 = vmatpush1.bf16.msra.mxu0 %v601
        %1796 = vmatprep.subr.bf16.mxu0 0
        %1797 = vmatpush1.bf16.msra.mxu0 %v600
        %1798 = vmatprep.subr.bf16.mxu0 0
        %1799 = vmatpush1.bf16.msra.mxu0 %v599
        %1800 = vmatprep.subr.bf16.mxu0 0
        %1801 = vmatpush2.bf16.msra.mxu0 0
        %1802 = vmatprep.subr.bf16.mxu0 0
        %1803 = vmatpush2.bf16.msra.mxu0 0
        %1804 = vmatprep.subr.bf16.mxu0 0
        %1805 = vmatpush2.bf16.msra.mxu0 0
        %1806 = vmatprep.subr.bf16.mxu0 0
        %1807 = vmatpush2.bf16.msra.mxu0 0
        %1808 = vmatprep.subr.bf16.mxu0 0
        %1809 = vmatpush2.bf16.msra.mxu0 0
        %1810 = vmatprep.subr.bf16.mxu0 0
        %1811 = vmatpush2.bf16.msra.mxu0 0
        %1812 = vmatprep.subr.bf16.mxu0 0
        %1813 = vmatpush2.bf16.msra.mxu0 0
        %1814 = vmatprep.subr.bf16.mxu0 0
        %1815 = vmatpush2.bf16.msra.mxu0 0
        %1816 = vmatprep.mubr.bf16.mxu0 0
        %1817 = vmatmul.mubr.bf16.gmra.mxu0 %v1779
        %v1818 = vpop.f32.mrf.mxu0
        %v1819 = vadd.f32 0.0, %v1818
        %v1820 = vpop.f32.mrf.mxu0
        %v1821 = vpop.f32.mrf.mxu0
        %v1822 = vadd.f32 0.0, %v1821
        %v1823 = vpop.f32.mrf.mxu0
        %1824 = vmatprep.mubr.bf16.mxu0 0
        %1825 = vmatmul.mubr.bf16.gmra.mxu0 %v1782
        %v1826 = vpop.f32.mrf.mxu0
        %v1827 = vadd.f32 0.0, %v1826
        %v1828 = vpop.f32.mrf.mxu0
        %v1829 = vpop.f32.mrf.mxu0
        %v1830 = vadd.f32 0.0, %v1829
        %v1831 = vpop.f32.mrf.mxu0
        %1832 = vdwg.mxu0
        %v1833 = vadd.f32 %v762, %v1819
        %v1834 = vadd.f32 %v763, %v1822
        %v1835 = vadd.f32 %v764, %v1827
        %v1836 = vadd.f32 %v765, %v1830
        %s1837 = scalar_lea.vmem %s4, 128
        %v1838 = vld [vmem:[%s1837] sm:$0xff]
        %v1839 = vld [vmem:[%s1837 + $0x8] sm:$0xff]
        %v1840 = vld [vmem:[%s1837 + $0x10] sm:$0xff]
        %v1841 = vld [vmem:[%s1837 + $0x18] sm:$0xff]
        %v1842 = vld [vmem:[%s1837 + $0x20] sm:$0xff]
        %v1843 = vld [vmem:[%s1837 + $0x28] sm:$0xff]
        %v1844 = vld [vmem:[%s1837 + $0x30] sm:$0xff]
        %v1845 = vld [vmem:[%s1837 + $0x38] sm:$0xff]
        %v1846 = vld [vmem:[%s1837 + $0x40] sm:$0xff]
        %v1847 = vld [vmem:[%s1837 + $0x48] sm:$0xff]
        %v1848 = vld [vmem:[%s1837 + $0x50] sm:$0xff]
        %v1849 = vld [vmem:[%s1837 + $0x58] sm:$0xff]
        %v1850 = vld [vmem:[%s1837 + $0x60] sm:$0xff]
        %v1851 = vld [vmem:[%s1837 + $0x68] sm:$0xff]
        %v1852 = vld [vmem:[%s1837 + $0x70] sm:$0xff]
        %v1853 = vld [vmem:[%s1837 + $0x78] sm:$0xff]
        %v1854 = vpack.c.bf16 %v1834, %v1833
        %v1855 = vpack.c.bf16 %v1836, %v1835
        %s1856 = scalar_lea.vmem %s5, 2
        %v1857 = vld [vmem:[%s1856] sm:$0x3]
        %v1859 = vlaneseq
        %v1860 = vshrl.u32 %v1859, 7
        %v1861 = vsub.s32 0, %v1860
        %v1862 = vrot.slane %v1857, %v1861
        %v1863 = vlaneseq
        %v1864 = vshrl.u32 %v1863, 7
        %v1865 = vsub.s32 1, %v1864
        %v1866 = vrot.slane %v1857, %v1865
        %v1885 = vunpack.c.l.b16 %v1838
        %v1886 = vunpack.c.h.b16 %v1838
        %v1887 = vunpack.c.l.b16 %v1839
        %v1888 = vunpack.c.h.b16 %v1839
        %v1889 = vunpack.c.l.b16 %v1840
        %v1890 = vunpack.c.h.b16 %v1840
        %v1891 = vunpack.c.l.b16 %v1841
        %v1892 = vunpack.c.h.b16 %v1841
        %v1893 = vunpack.c.l.b16 %v1842
        %v1894 = vunpack.c.h.b16 %v1842
        %v1895 = vunpack.c.l.b16 %v1843
        %v1896 = vunpack.c.h.b16 %v1843
        %v1897 = vunpack.c.l.b16 %v1844
        %v1898 = vunpack.c.h.b16 %v1844
        %v1899 = vunpack.c.l.b16 %v1845
        %v1900 = vunpack.c.h.b16 %v1845
        %v1901 = vunpack.c.l.b16 %v1846
        %v1902 = vunpack.c.h.b16 %v1846
        %v1903 = vunpack.c.l.b16 %v1847
        %v1904 = vunpack.c.h.b16 %v1847
        %v1905 = vunpack.c.l.b16 %v1848
        %v1906 = vunpack.c.h.b16 %v1848
        %v1907 = vunpack.c.l.b16 %v1849
        %v1908 = vunpack.c.h.b16 %v1849
        %v1909 = vunpack.c.l.b16 %v1850
        %v1910 = vunpack.c.h.b16 %v1850
        %v1911 = vunpack.c.l.b16 %v1851
        %v1912 = vunpack.c.h.b16 %v1851
        %v1913 = vunpack.c.l.b16 %v1852
        %v1914 = vunpack.c.h.b16 %v1852
        %v1915 = vunpack.c.l.b16 %v1853
        %v1916 = vunpack.c.h.b16 %v1853
        %v1917 = vpack.c.b16 %v1887, %v1885
        %v1918 = vpack.c.b16 %v1888, %v1886
        %v1919 = vpack.c.b16 %v1891, %v1889
        %v1920 = vpack.c.b16 %v1892, %v1890
        %v1921 = vpack.c.b16 %v1895, %v1893
        %v1922 = vpack.c.b16 %v1896, %v1894
        %v1923 = vpack.c.b16 %v1899, %v1897
        %v1924 = vpack.c.b16 %v1900, %v1898
        %v1925 = vpack.c.b16 %v1903, %v1901
        %v1926 = vpack.c.b16 %v1904, %v1902
        %v1927 = vpack.c.b16 %v1907, %v1905
        %v1928 = vpack.c.b16 %v1908, %v1906
        %v1929 = vpack.c.b16 %v1911, %v1909
        %v1930 = vpack.c.b16 %v1912, %v1910
        %v1931 = vpack.c.b16 %v1915, %v1913
        %v1932 = vpack.c.b16 %v1916, %v1914
        %1949 = vmatprep.subr.bf16.mxu0 %v1932
        %1950 = vmatpush1.bf16.msra.mxu0 %v1931
        %1951 = vmatprep.subr.bf16.mxu0 %v1930
        %1952 = vmatpush1.bf16.msra.mxu0 %v1929
        %1953 = vmatprep.subr.bf16.mxu0 %v1928
        %1954 = vmatpush1.bf16.msra.mxu0 %v1927
        %1955 = vmatprep.subr.bf16.mxu0 %v1926
        %1956 = vmatpush1.bf16.msra.mxu0 %v1925
        %1957 = vmatprep.subr.bf16.mxu0 %v1924
        %1958 = vmatpush1.bf16.msra.mxu0 %v1923
        %1959 = vmatprep.subr.bf16.mxu0 %v1922
        %1960 = vmatpush1.bf16.msra.mxu0 %v1921
        %1961 = vmatprep.subr.bf16.mxu0 %v1920
        %1962 = vmatpush1.bf16.msra.mxu0 %v1919
        %1963 = vmatprep.subr.bf16.mxu0 %v1918
        %1964 = vmatpush1.bf16.msra.mxu0 %v1917
        %1965 = vmatprep.subr.bf16.mxu0 0
        %1966 = vmatpush2.bf16.msra.mxu0 0
        %1967 = vmatprep.subr.bf16.mxu0 0
        %1968 = vmatpush2.bf16.msra.mxu0 0
        %1969 = vmatprep.subr.bf16.mxu0 0
        %1970 = vmatpush2.bf16.msra.mxu0 0
        %1971 = vmatprep.subr.bf16.mxu0 0
        %1972 = vmatpush2.bf16.msra.mxu0 0
        %1973 = vmatprep.subr.bf16.mxu0 0
        %1974 = vmatpush2.bf16.msra.mxu0 0
        %1975 = vmatprep.subr.bf16.mxu0 0
        %1976 = vmatpush2.bf16.msra.mxu0 0
        %1977 = vmatprep.subr.bf16.mxu0 0
        %1978 = vmatpush2.bf16.msra.mxu0 0
        %1979 = vmatprep.subr.bf16.mxu0 0
        %1980 = vmatpush2.bf16.msra.mxu0 0
        %1981 = vmatprep.mubr.bf16.mxu0 0
        %1982 = vmatmul.mubr.bf16.gmra.mxu0 %v1854
        %v1983 = vpop.f32.mrf.mxu0
        %v1984 = vadd.f32 %v1862, %v1983
        %v1985 = vpop.f32.mrf.mxu0
        %v1986 = vadd.f32 %v1866, %v1985
        %v1987 = vpop.f32.mrf.mxu0
        %v1988 = vadd.f32 %v1862, %v1987
        %v1989 = vpop.f32.mrf.mxu0
        %v1990 = vadd.f32 %v1866, %v1989
        %1991 = vmatprep.mubr.bf16.mxu0 0
        %1992 = vmatmul.mubr.bf16.gmra.mxu0 %v1855
        %v1993 = vpop.f32.mrf.mxu0
        %v1994 = vadd.f32 %v1862, %v1993
        %v1995 = vpop.f32.mrf.mxu0
        %v1996 = vadd.f32 %v1866, %v1995
        %v1997 = vpop.f32.mrf.mxu0
        %v1998 = vadd.f32 %v1862, %v1997
        %v1999 = vpop.f32.mrf.mxu0
        %v2000 = vadd.f32 %v1866, %v1999
        %2001 = vdwg.mxu0
        %v2002 = vmax.f32 %v1986, 0.0
        %v2003 = vmax.f32 %v1990, 0.0
        %v2004 = vmax.f32 %v1996, 0.0
        %v2005 = vmax.f32 %v2000, 0.0
        %s2006 = scalar_lea.vmem %s6, 1
        %v2007 = vld [vmem:[%s2006] sm:$0x1]
        %s2008 = scalar_lea.vmem %s7, 1
        %v2009 = vld [vmem:[%s2008] sm:$0x1]
        %2010 = vadd.xlane.f32.xlu0 %v1984
        %v2011 = vpop.xlane.xlu0 %2010
        %2012 = vadd.xlane.f32.xlu0 %v1988
        %v2013 = vpop.xlane.xlu0 %2012
        %2014 = vadd.xlane.f32.xlu0 %v1994
        %v2015 = vpop.xlane.xlu0 %2014
        %2016 = vadd.xlane.f32.xlu0 %v1998
        %v2017 = vpop.xlane.xlu0 %2016
        %v2018 = vmul.f32 %v2011, %v943
        %v2019 = vmul.f32 %v2013, %v943
        %v2020 = vmul.f32 %v2015, %v943
        %v2021 = vmul.f32 %v2017, %v943
        %v2022 = vmul.f32 %v1984, %v1984
        %v2023 = vmul.f32 %v1988, %v1988
        %v2024 = vmul.f32 %v1994, %v1994
        %v2025 = vmul.f32 %v1998, %v1998
        %2026 = vadd.xlane.f32.xlu0 %v2022
        %v2027 = vpop.xlane.xlu0 %2026
        %2028 = vadd.xlane.f32.xlu0 %v2023
        %v2029 = vpop.xlane.xlu0 %2028
        %2030 = vadd.xlane.f32.xlu0 %v2024
        %v2031 = vpop.xlane.xlu0 %2030
        %2032 = vadd.xlane.f32.xlu0 %v2025
        %v2033 = vpop.xlane.xlu0 %2032
        %v2034 = vmul.f32 %v2027, %v943
        %v2035 = vmul.f32 %v2029, %v943
        %v2036 = vmul.f32 %v2031, %v943
        %v2037 = vmul.f32 %v2033, %v943
        %v2038 = vmul.f32 %v2018, %v2018
        %v2039 = vmul.f32 %v2019, %v2019
        %v2040 = vmul.f32 %v2020, %v2020
        %v2041 = vmul.f32 %v2021, %v2021
        %v2042 = vsub.f32 %v2034, %v2038
        %v2043 = vsub.f32 %v2035, %v2039
        %v2044 = vsub.f32 %v2036, %v2040
        %v2045 = vsub.f32 %v2037, %v2041
        %v2046 = vmax.f32 %v2042, 0.0
        %v2047 = vmax.f32 %v2043, 0.0
        %v2048 = vmax.f32 %v2044, 0.0
        %v2049 = vmax.f32 %v2045, 0.0
        %v2050 = vsub.f32 %v1984, %v2018
        %v2051 = vsub.f32 %v1988, %v2019
        %v2052 = vsub.f32 %v1994, %v2020
        %v2053 = vsub.f32 %v1998, %v2021
        %v2054 = vadd.f32 %v2046, 1e-05
        %v2055 = vadd.f32 %v2047, 1e-05
        %v2056 = vadd.f32 %v2048, 1e-05
        %v2057 = vadd.f32 %v2049, 1e-05
        %v2058 = vrsqrt.pop %v2054
        %v2059 = vrsqrt.pop %v2055
        %v2060 = vrsqrt.pop %v2056
        %v2061 = vrsqrt.pop %v2057
        %v2062 = vmul.f32 %v2050, %v2058
        %v2063 = vmul.f32 %v2051, %v2059
        %v2064 = vmul.f32 %v2052, %v2060
        %v2065 = vmul.f32 %v2053, %v2061
        %v2067 = vlaneseq
        %v2068 = vshrl.u32 %v2067, 7
        %v2069 = vsub.s32 0, %v2068
        %v2070 = vrot.slane %v2007, %v2069
        %v2072 = vmul.f32 %v2062, %v2070
        %v2073 = vmul.f32 %v2063, %v2070
        %v2074 = vmul.f32 %v2064, %v2070
        %v2075 = vmul.f32 %v2065, %v2070
        %v2077 = vlaneseq
        %v2078 = vshrl.u32 %v2077, 7
        %v2079 = vsub.s32 0, %v2078
        %v2080 = vrot.slane %v2009, %v2079
        %v2082 = vadd.f32 %v2072, %v2080
        %v2083 = vadd.f32 %v2073, %v2080
        %v2084 = vadd.f32 %v2074, %v2080
        %v2085 = vadd.f32 %v2075, %v2080
        %v2086 = vmax.f32 %v2082, 0.0
        %v2087 = vmax.f32 %v2083, 0.0
        %v2088 = vmax.f32 %v2084, 0.0
        %v2089 = vmax.f32 %v2085, 0.0
        %s2090 = scalar_lea.vmem %s8, 64
        %v2091 = vld [vmem:[%s2090] sm:$0xf]
        %v2092 = vld [vmem:[%s2090 + $0x4] sm:$0xf]
        %v2093 = vld [vmem:[%s2090 + $0x8] sm:$0xf]
        %v2094 = vld [vmem:[%s2090 + $0xc] sm:$0xf]
        %v2095 = vld [vmem:[%s2090 + $0x10] sm:$0xf]
        %v2096 = vld [vmem:[%s2090 + $0x14] sm:$0xf]
        %v2097 = vld [vmem:[%s2090 + $0x18] sm:$0xf]
        %v2098 = vld [vmem:[%s2090 + $0x1c] sm:$0xf]
        %v2099 = vld [vmem:[%s2090 + $0x20] sm:$0xf]
        %v2100 = vld [vmem:[%s2090 + $0x24] sm:$0xf]
        %v2101 = vld [vmem:[%s2090 + $0x28] sm:$0xf]
        %v2102 = vld [vmem:[%s2090 + $0x2c] sm:$0xf]
        %v2103 = vld [vmem:[%s2090 + $0x30] sm:$0xf]
        %v2104 = vld [vmem:[%s2090 + $0x34] sm:$0xf]
        %v2105 = vld [vmem:[%s2090 + $0x38] sm:$0xf]
        %v2106 = vld [vmem:[%s2090 + $0x3c] sm:$0xf]
        %v2107 = vpack.c.bf16 %v2087, %v2086
        %v2108 = vpack.c.bf16 %v2089, %v2088
        %s2109 = scalar_lea.vmem %s9, 1
        %v2110 = vld [vmem:[%s2109] sm:$0x1]
        %v2112 = vlaneseq
        %v2113 = vshrl.u32 %v2112, 7
        %v2114 = vsub.s32 0, %v2113
        %v2115 = vrot.slane %v2110, %v2114
        %v2133 = vunpack.c.l.b16 %v2091
        %v2134 = vunpack.c.l.b16 %v2092
        %v2135 = vunpack.c.l.b16 %v2093
        %v2136 = vunpack.c.l.b16 %v2094
        %v2137 = vunpack.c.l.b16 %v2095
        %v2138 = vunpack.c.l.b16 %v2096
        %v2139 = vunpack.c.l.b16 %v2097
        %v2140 = vunpack.c.l.b16 %v2098
        %v2141 = vunpack.c.l.b16 %v2099
        %v2142 = vunpack.c.l.b16 %v2100
        %v2143 = vunpack.c.l.b16 %v2101
        %v2144 = vunpack.c.l.b16 %v2102
        %v2145 = vunpack.c.l.b16 %v2103
        %v2146 = vunpack.c.l.b16 %v2104
        %v2147 = vunpack.c.l.b16 %v2105
        %v2148 = vunpack.c.l.b16 %v2106
        %v2149 = vpack.c.b16 %v2134, %v2133
        %v2150 = vpack.c.b16 %v2136, %v2135
        %v2151 = vpack.c.b16 %v2138, %v2137
        %v2152 = vpack.c.b16 %v2140, %v2139
        %v2153 = vpack.c.b16 %v2142, %v2141
        %v2154 = vpack.c.b16 %v2144, %v2143
        %v2155 = vpack.c.b16 %v2146, %v2145
        %v2156 = vpack.c.b16 %v2148, %v2147
        %2165 = vmatprep.subr.bf16.mxu0 0
        %2166 = vmatpush1.bf16.msra.mxu0 %v2156
        %2167 = vmatprep.subr.bf16.mxu0 0
        %2168 = vmatpush1.bf16.msra.mxu0 %v2155
        %2169 = vmatprep.subr.bf16.mxu0 0
        %2170 = vmatpush1.bf16.msra.mxu0 %v2154
        %2171 = vmatprep.subr.bf16.mxu0 0
        %2172 = vmatpush1.bf16.msra.mxu0 %v2153
        %2173 = vmatprep.subr.bf16.mxu0 0
        %2174 = vmatpush1.bf16.msra.mxu0 %v2152
        %2175 = vmatprep.subr.bf16.mxu0 0
        %2176 = vmatpush1.bf16.msra.mxu0 %v2151
        %2177 = vmatprep.subr.bf16.mxu0 0
        %2178 = vmatpush1.bf16.msra.mxu0 %v2150
        %2179 = vmatprep.subr.bf16.mxu0 0
        %2180 = vmatpush1.bf16.msra.mxu0 %v2149
        %2181 = vmatprep.subr.bf16.mxu0 0
        %2182 = vmatpush2.bf16.msra.mxu0 0
        %2183 = vmatprep.subr.bf16.mxu0 0
        %2184 = vmatpush2.bf16.msra.mxu0 0
        %2185 = vmatprep.subr.bf16.mxu0 0
        %2186 = vmatpush2.bf16.msra.mxu0 0
        %2187 = vmatprep.subr.bf16.mxu0 0
        %2188 = vmatpush2.bf16.msra.mxu0 0
        %2189 = vmatprep.subr.bf16.mxu0 0
        %2190 = vmatpush2.bf16.msra.mxu0 0
        %2191 = vmatprep.subr.bf16.mxu0 0
        %2192 = vmatpush2.bf16.msra.mxu0 0
        %2193 = vmatprep.subr.bf16.mxu0 0
        %2194 = vmatpush2.bf16.msra.mxu0 0
        %2195 = vmatprep.subr.bf16.mxu0 0
        %2196 = vmatpush2.bf16.msra.mxu0 0
        %2197 = vmatprep.mubr.bf16.mxu0 0
        %2198 = vmatmul.mubr.bf16.gmra.mxu0 %v2107
        %v2199 = vpop.f32.mrf.mxu0
        %v2200 = vadd.f32 %v2115, %v2199
        %v2201 = vpop.f32.mrf.mxu0
        %v2202 = vpop.f32.mrf.mxu0
        %v2203 = vadd.f32 %v2115, %v2202
        %v2204 = vpop.f32.mrf.mxu0
        %2205 = vmatprep.mubr.bf16.mxu0 0
        %2206 = vmatmul.mubr.bf16.gmra.mxu0 %v2108
        %v2207 = vpop.f32.mrf.mxu0
        %v2208 = vadd.f32 %v2115, %v2207
        %v2209 = vpop.f32.mrf.mxu0
        %v2210 = vpop.f32.mrf.mxu0
        %v2211 = vadd.f32 %v2115, %v2210
        %v2212 = vpop.f32.mrf.mxu0
        %2213 = vdwg.mxu0
        %s2214 = scalar_lea.vmem %s10, 1
        %v2215 = vld [vmem:[%s2214] sm:$0x1]
        %s2216 = scalar_lea.vmem %s11, 1
        %v2217 = vld [vmem:[%s2216] sm:$0x1]
        %2218 = vadd.xlane.f32.xlu0 %v2200
        %v2219 = vpop.xlane.xlu0 %2218
        %2220 = vadd.xlane.f32.xlu0 %v2203
        %v2221 = vpop.xlane.xlu0 %2220
        %2222 = vadd.xlane.f32.xlu0 %v2208
        %v2223 = vpop.xlane.xlu0 %2222
        %2224 = vadd.xlane.f32.xlu0 %v2211
        %v2225 = vpop.xlane.xlu0 %2224
        %v2226 = vmul.f32 %v2219, %v943
        %v2227 = vmul.f32 %v2221, %v943
        %v2228 = vmul.f32 %v2223, %v943
        %v2229 = vmul.f32 %v2225, %v943
        %v2230 = vmul.f32 %v2200, %v2200
        %v2231 = vmul.f32 %v2203, %v2203
        %v2232 = vmul.f32 %v2208, %v2208
        %v2233 = vmul.f32 %v2211, %v2211
        %2234 = vadd.xlane.f32.xlu0 %v2230
        %v2235 = vpop.xlane.xlu0 %2234
        %2236 = vadd.xlane.f32.xlu0 %v2231
        %v2237 = vpop.xlane.xlu0 %2236
        %2238 = vadd.xlane.f32.xlu0 %v2232
        %v2239 = vpop.xlane.xlu0 %2238
        %2240 = vadd.xlane.f32.xlu0 %v2233
        %v2241 = vpop.xlane.xlu0 %2240
        %v2242 = vmul.f32 %v2235, %v943
        %v2243 = vmul.f32 %v2237, %v943
        %v2244 = vmul.f32 %v2239, %v943
        %v2245 = vmul.f32 %v2241, %v943
        %v2246 = vmul.f32 %v2226, %v2226
        %v2247 = vmul.f32 %v2227, %v2227
        %v2248 = vmul.f32 %v2228, %v2228
        %v2249 = vmul.f32 %v2229, %v2229
        %v2250 = vsub.f32 %v2242, %v2246
        %v2251 = vsub.f32 %v2243, %v2247
        %v2252 = vsub.f32 %v2244, %v2248
        %v2253 = vsub.f32 %v2245, %v2249
        %v2254 = vmax.f32 %v2250, 0.0
        %v2255 = vmax.f32 %v2251, 0.0
        %v2256 = vmax.f32 %v2252, 0.0
        %v2257 = vmax.f32 %v2253, 0.0
        %v2258 = vsub.f32 %v2200, %v2226
        %v2259 = vsub.f32 %v2203, %v2227
        %v2260 = vsub.f32 %v2208, %v2228
        %v2261 = vsub.f32 %v2211, %v2229
        %v2262 = vadd.f32 %v2254, 1e-05
        %v2263 = vadd.f32 %v2255, 1e-05
        %v2264 = vadd.f32 %v2256, 1e-05
        %v2265 = vadd.f32 %v2257, 1e-05
        %v2266 = vrsqrt.pop %v2262
        %v2267 = vrsqrt.pop %v2263
        %v2268 = vrsqrt.pop %v2264
        %v2269 = vrsqrt.pop %v2265
        %v2270 = vmul.f32 %v2258, %v2266
        %v2271 = vmul.f32 %v2259, %v2267
        %v2272 = vmul.f32 %v2260, %v2268
        %v2273 = vmul.f32 %v2261, %v2269
        %v2275 = vlaneseq
        %v2276 = vshrl.u32 %v2275, 7
        %v2277 = vsub.s32 0, %v2276
        %v2278 = vrot.slane %v2215, %v2277
        %v2280 = vmul.f32 %v2270, %v2278
        %v2281 = vmul.f32 %v2271, %v2278
        %v2282 = vmul.f32 %v2272, %v2278
        %v2283 = vmul.f32 %v2273, %v2278
        %v2285 = vlaneseq
        %v2286 = vshrl.u32 %v2285, 7
        %v2287 = vsub.s32 0, %v2286
        %v2288 = vrot.slane %v2217, %v2287
        %v2290 = vadd.f32 %v2280, %v2288
        %v2291 = vadd.f32 %v2281, %v2288
        %v2292 = vadd.f32 %v2282, %v2288
        %v2293 = vadd.f32 %v2283, %v2288
        %v2294 = vmax.f32 %v2290, 0.0
        %v2295 = vmax.f32 %v2291, 0.0
        %v2296 = vmax.f32 %v2292, 0.0
        %v2297 = vmax.f32 %v2293, 0.0
        %s2298 = scalar_lea.vmem %s12, 64
        %v2299 = vld [vmem:[%s2298] sm:$0xf]
        %v2300 = vld [vmem:[%s2298 + $0x4] sm:$0xf]
        %v2301 = vld [vmem:[%s2298 + $0x8] sm:$0xf]
        %v2302 = vld [vmem:[%s2298 + $0xc] sm:$0xf]
        %v2303 = vld [vmem:[%s2298 + $0x10] sm:$0xf]
        %v2304 = vld [vmem:[%s2298 + $0x14] sm:$0xf]
        %v2305 = vld [vmem:[%s2298 + $0x18] sm:$0xf]
        %v2306 = vld [vmem:[%s2298 + $0x1c] sm:$0xf]
        %v2307 = vld [vmem:[%s2298 + $0x20] sm:$0xf]
        %v2308 = vld [vmem:[%s2298 + $0x24] sm:$0xf]
        %v2309 = vld [vmem:[%s2298 + $0x28] sm:$0xf]
        %v2310 = vld [vmem:[%s2298 + $0x2c] sm:$0xf]
        %v2311 = vld [vmem:[%s2298 + $0x30] sm:$0xf]
        %v2312 = vld [vmem:[%s2298 + $0x34] sm:$0xf]
        %v2313 = vld [vmem:[%s2298 + $0x38] sm:$0xf]
        %v2314 = vld [vmem:[%s2298 + $0x3c] sm:$0xf]
        %v2315 = vpack.c.bf16 %v2003, %v2002
        %v2316 = vpack.c.bf16 %v2005, %v2004
        %s2317 = scalar_lea.vmem %s13, 1
        %v2318 = vld [vmem:[%s2317] sm:$0x1]
        %v2320 = vlaneseq
        %v2321 = vshrl.u32 %v2320, 7
        %v2322 = vsub.s32 0, %v2321
        %v2323 = vrot.slane %v2318, %v2322
        %v2341 = vunpack.c.l.b16 %v2299
        %v2342 = vunpack.c.l.b16 %v2300
        %v2343 = vunpack.c.l.b16 %v2301
        %v2344 = vunpack.c.l.b16 %v2302
        %v2345 = vunpack.c.l.b16 %v2303
        %v2346 = vunpack.c.l.b16 %v2304
        %v2347 = vunpack.c.l.b16 %v2305
        %v2348 = vunpack.c.l.b16 %v2306
        %v2349 = vunpack.c.l.b16 %v2307
        %v2350 = vunpack.c.l.b16 %v2308
        %v2351 = vunpack.c.l.b16 %v2309
        %v2352 = vunpack.c.l.b16 %v2310
        %v2353 = vunpack.c.l.b16 %v2311
        %v2354 = vunpack.c.l.b16 %v2312
        %v2355 = vunpack.c.l.b16 %v2313
        %v2356 = vunpack.c.l.b16 %v2314
        %v2357 = vpack.c.b16 %v2342, %v2341
        %v2358 = vpack.c.b16 %v2344, %v2343
        %v2359 = vpack.c.b16 %v2346, %v2345
        %v2360 = vpack.c.b16 %v2348, %v2347
        %v2361 = vpack.c.b16 %v2350, %v2349
        %v2362 = vpack.c.b16 %v2352, %v2351
        %v2363 = vpack.c.b16 %v2354, %v2353
        %v2364 = vpack.c.b16 %v2356, %v2355
        %2373 = vmatprep.subr.bf16.mxu0 0
        %2374 = vmatpush1.bf16.msra.mxu0 %v2364
        %2375 = vmatprep.subr.bf16.mxu0 0
        %2376 = vmatpush1.bf16.msra.mxu0 %v2363
        %2377 = vmatprep.subr.bf16.mxu0 0
        %2378 = vmatpush1.bf16.msra.mxu0 %v2362
        %2379 = vmatprep.subr.bf16.mxu0 0
        %2380 = vmatpush1.bf16.msra.mxu0 %v2361
        %2381 = vmatprep.subr.bf16.mxu0 0
        %2382 = vmatpush1.bf16.msra.mxu0 %v2360
        %2383 = vmatprep.subr.bf16.mxu0 0
        %2384 = vmatpush1.bf16.msra.mxu0 %v2359
        %2385 = vmatprep.subr.bf16.mxu0 0
        %2386 = vmatpush1.bf16.msra.mxu0 %v2358
        %2387 = vmatprep.subr.bf16.mxu0 0
        %2388 = vmatpush1.bf16.msra.mxu0 %v2357
        %2389 = vmatprep.subr.bf16.mxu0 0
        %2390 = vmatpush2.bf16.msra.mxu0 0
        %2391 = vmatprep.subr.bf16.mxu0 0
        %2392 = vmatpush2.bf16.msra.mxu0 0
        %2393 = vmatprep.subr.bf16.mxu0 0
        %2394 = vmatpush2.bf16.msra.mxu0 0
        %2395 = vmatprep.subr.bf16.mxu0 0
        %2396 = vmatpush2.bf16.msra.mxu0 0
        %2397 = vmatprep.subr.bf16.mxu0 0
        %2398 = vmatpush2.bf16.msra.mxu0 0
        %2399 = vmatprep.subr.bf16.mxu0 0
        %2400 = vmatpush2.bf16.msra.mxu0 0
        %2401 = vmatprep.subr.bf16.mxu0 0
        %2402 = vmatpush2.bf16.msra.mxu0 0
        %2403 = vmatprep.subr.bf16.mxu0 0
        %2404 = vmatpush2.bf16.msra.mxu0 0
        %2405 = vmatprep.mubr.bf16.mxu0 0
        %2406 = vmatmul.mubr.bf16.gmra.mxu0 %v2315
        %v2407 = vpop.f32.mrf.mxu0
        %v2408 = vadd.f32 %v2323, %v2407
        %v2409 = vpop.f32.mrf.mxu0
        %v2410 = vpop.f32.mrf.mxu0
        %v2411 = vadd.f32 %v2323, %v2410
        %v2412 = vpop.f32.mrf.mxu0
        %2413 = vmatprep.mubr.bf16.mxu0 0
        %2414 = vmatmul.mubr.bf16.gmra.mxu0 %v2316
        %v2415 = vpop.f32.mrf.mxu0
        %v2416 = vadd.f32 %v2323, %v2415
        %v2417 = vpop.f32.mrf.mxu0
        %v2418 = vpop.f32.mrf.mxu0
        %v2419 = vadd.f32 %v2323, %v2418
        %v2420 = vpop.f32.mrf.mxu0
        %2421 = vdwg.mxu0
        %v2422 = vmax.f32 %v2408, 0.0
        %v2423 = vmax.f32 %v2411, 0.0
        %v2424 = vmax.f32 %v2416, 0.0
        %v2425 = vmax.f32 %v2419, 0.0
        %s2426 = scalar_lea.vmem %s14, 64
        %v2427 = vld [vmem:[%s2426] sm:$0xf]
        %v2428 = vld [vmem:[%s2426 + $0x4] sm:$0xf]
        %v2429 = vld [vmem:[%s2426 + $0x8] sm:$0xf]
        %v2430 = vld [vmem:[%s2426 + $0xc] sm:$0xf]
        %v2431 = vld [vmem:[%s2426 + $0x10] sm:$0xf]
        %v2432 = vld [vmem:[%s2426 + $0x14] sm:$0xf]
        %v2433 = vld [vmem:[%s2426 + $0x18] sm:$0xf]
        %v2434 = vld [vmem:[%s2426 + $0x1c] sm:$0xf]
        %v2435 = vld [vmem:[%s2426 + $0x20] sm:$0xf]
        %v2436 = vld [vmem:[%s2426 + $0x24] sm:$0xf]
        %v2437 = vld [vmem:[%s2426 + $0x28] sm:$0xf]
        %v2438 = vld [vmem:[%s2426 + $0x2c] sm:$0xf]
        %v2439 = vld [vmem:[%s2426 + $0x30] sm:$0xf]
        %v2440 = vld [vmem:[%s2426 + $0x34] sm:$0xf]
        %v2441 = vld [vmem:[%s2426 + $0x38] sm:$0xf]
        %v2442 = vld [vmem:[%s2426 + $0x3c] sm:$0xf]
        %v2443 = vpack.c.bf16 %v2295, %v2294
        %v2444 = vpack.c.bf16 %v2297, %v2296
        %s2445 = scalar_lea.vmem %s15, 64
        %v2446 = vld [vmem:[%s2445] sm:$0xf]
        %v2447 = vld [vmem:[%s2445 + $0x4] sm:$0xf]
        %v2448 = vld [vmem:[%s2445 + $0x8] sm:$0xf]
        %v2449 = vld [vmem:[%s2445 + $0xc] sm:$0xf]
        %v2450 = vld [vmem:[%s2445 + $0x10] sm:$0xf]
        %v2451 = vld [vmem:[%s2445 + $0x14] sm:$0xf]
        %v2452 = vld [vmem:[%s2445 + $0x18] sm:$0xf]
        %v2453 = vld [vmem:[%s2445 + $0x1c] sm:$0xf]
        %v2454 = vld [vmem:[%s2445 + $0x20] sm:$0xf]
        %v2455 = vld [vmem:[%s2445 + $0x24] sm:$0xf]
        %v2456 = vld [vmem:[%s2445 + $0x28] sm:$0xf]
        %v2457 = vld [vmem:[%s2445 + $0x2c] sm:$0xf]
        %v2458 = vld [vmem:[%s2445 + $0x30] sm:$0xf]
        %v2459 = vld [vmem:[%s2445 + $0x34] sm:$0xf]
        %v2460 = vld [vmem:[%s2445 + $0x38] sm:$0xf]
        %v2461 = vld [vmem:[%s2445 + $0x3c] sm:$0xf]
        %v2462 = vpack.c.bf16 %v2423, %v2422
        %v2463 = vpack.c.bf16 %v2425, %v2424
        %v2480 = vunpack.c.l.b16 %v2446
        %v2481 = vunpack.c.l.b16 %v2447
        %v2482 = vunpack.c.l.b16 %v2448
        %v2483 = vunpack.c.l.b16 %v2449
        %v2484 = vunpack.c.l.b16 %v2450
        %v2485 = vunpack.c.l.b16 %v2451
        %v2486 = vunpack.c.l.b16 %v2452
        %v2487 = vunpack.c.l.b16 %v2453
        %v2488 = vunpack.c.l.b16 %v2454
        %v2489 = vunpack.c.l.b16 %v2455
        %v2490 = vunpack.c.l.b16 %v2456
        %v2491 = vunpack.c.l.b16 %v2457
        %v2492 = vunpack.c.l.b16 %v2458
        %v2493 = vunpack.c.l.b16 %v2459
        %v2494 = vunpack.c.l.b16 %v2460
        %v2495 = vunpack.c.l.b16 %v2461
        %v2496 = vpack.c.b16 %v2481, %v2480
        %v2497 = vpack.c.b16 %v2483, %v2482
        %v2498 = vpack.c.b16 %v2485, %v2484
        %v2499 = vpack.c.b16 %v2487, %v2486
        %v2500 = vpack.c.b16 %v2489, %v2488
        %v2501 = vpack.c.b16 %v2491, %v2490
        %v2502 = vpack.c.b16 %v2493, %v2492
        %v2503 = vpack.c.b16 %v2495, %v2494
        %2512 = vmatprep.subr.bf16.mxu0 0
        %2513 = vmatpush1.bf16.msra.mxu0 %v2503
        %2514 = vmatprep.subr.bf16.mxu0 0
        %2515 = vmatpush1.bf16.msra.mxu0 %v2502
        %2516 = vmatprep.subr.bf16.mxu0 0
        %2517 = vmatpush1.bf16.msra.mxu0 %v2501
        %2518 = vmatprep.subr.bf16.mxu0 0
        %2519 = vmatpush1.bf16.msra.mxu0 %v2500
        %2520 = vmatprep.subr.bf16.mxu0 0
        %2521 = vmatpush1.bf16.msra.mxu0 %v2499
        %2522 = vmatprep.subr.bf16.mxu0 0
        %2523 = vmatpush1.bf16.msra.mxu0 %v2498
        %2524 = vmatprep.subr.bf16.mxu0 0
        %2525 = vmatpush1.bf16.msra.mxu0 %v2497
        %2526 = vmatprep.subr.bf16.mxu0 0
        %2527 = vmatpush1.bf16.msra.mxu0 %v2496
        %2528 = vmatprep.subr.bf16.mxu0 0
        %2529 = vmatpush2.bf16.msra.mxu0 0
        %2530 = vmatprep.subr.bf16.mxu0 0
        %2531 = vmatpush2.bf16.msra.mxu0 0
        %2532 = vmatprep.subr.bf16.mxu0 0
        %2533 = vmatpush2.bf16.msra.mxu0 0
        %2534 = vmatprep.subr.bf16.mxu0 0
        %2535 = vmatpush2.bf16.msra.mxu0 0
        %2536 = vmatprep.subr.bf16.mxu0 0
        %2537 = vmatpush2.bf16.msra.mxu0 0
        %2538 = vmatprep.subr.bf16.mxu0 0
        %2539 = vmatpush2.bf16.msra.mxu0 0
        %2540 = vmatprep.subr.bf16.mxu0 0
        %2541 = vmatpush2.bf16.msra.mxu0 0
        %2542 = vmatprep.subr.bf16.mxu0 0
        %2543 = vmatpush2.bf16.msra.mxu0 0
        %2544 = vmatprep.mubr.bf16.mxu0 0
        %2545 = vmatmul.mubr.bf16.gmra.mxu0 %v2462
        %v2546 = vpop.f32.mrf.mxu0
        %v2547 = vadd.f32 0.0, %v2546
        %v2548 = vpop.f32.mrf.mxu0
        %v2549 = vpop.f32.mrf.mxu0
        %v2550 = vadd.f32 0.0, %v2549
        %v2551 = vpop.f32.mrf.mxu0
        %2552 = vmatprep.mubr.bf16.mxu0 0
        %2553 = vmatmul.mubr.bf16.gmra.mxu0 %v2463
        %v2554 = vpop.f32.mrf.mxu0
        %v2555 = vadd.f32 0.0, %v2554
        %v2556 = vpop.f32.mrf.mxu0
        %v2557 = vpop.f32.mrf.mxu0
        %v2558 = vadd.f32 0.0, %v2557
        %v2559 = vpop.f32.mrf.mxu0
        %2560 = vdwg.mxu0
        %v2577 = vunpack.c.l.b16 %v2427
        %v2578 = vunpack.c.l.b16 %v2428
        %v2579 = vunpack.c.l.b16 %v2429
        %v2580 = vunpack.c.l.b16 %v2430
        %v2581 = vunpack.c.l.b16 %v2431
        %v2582 = vunpack.c.l.b16 %v2432
        %v2583 = vunpack.c.l.b16 %v2433
        %v2584 = vunpack.c.l.b16 %v2434
        %v2585 = vunpack.c.l.b16 %v2435
        %v2586 = vunpack.c.l.b16 %v2436
        %v2587 = vunpack.c.l.b16 %v2437
        %v2588 = vunpack.c.l.b16 %v2438
        %v2589 = vunpack.c.l.b16 %v2439
        %v2590 = vunpack.c.l.b16 %v2440
        %v2591 = vunpack.c.l.b16 %v2441
        %v2592 = vunpack.c.l.b16 %v2442
        %v2593 = vpack.c.b16 %v2578, %v2577
        %v2594 = vpack.c.b16 %v2580, %v2579
        %v2595 = vpack.c.b16 %v2582, %v2581
        %v2596 = vpack.c.b16 %v2584, %v2583
        %v2597 = vpack.c.b16 %v2586, %v2585
        %v2598 = vpack.c.b16 %v2588, %v2587
        %v2599 = vpack.c.b16 %v2590, %v2589
        %v2600 = vpack.c.b16 %v2592, %v2591
        %2609 = vmatprep.subr.bf16.mxu0 0
        %2610 = vmatpush1.bf16.msra.mxu0 %v2600
        %2611 = vmatprep.subr.bf16.mxu0 0
        %2612 = vmatpush1.bf16.msra.mxu0 %v2599
        %2613 = vmatprep.subr.bf16.mxu0 0
        %2614 = vmatpush1.bf16.msra.mxu0 %v2598
        %2615 = vmatprep.subr.bf16.mxu0 0
        %2616 = vmatpush1.bf16.msra.mxu0 %v2597
        %2617 = vmatprep.subr.bf16.mxu0 0
        %2618 = vmatpush1.bf16.msra.mxu0 %v2596
        %2619 = vmatprep.subr.bf16.mxu0 0
        %2620 = vmatpush1.bf16.msra.mxu0 %v2595
        %2621 = vmatprep.subr.bf16.mxu0 0
        %2622 = vmatpush1.bf16.msra.mxu0 %v2594
        %2623 = vmatprep.subr.bf16.mxu0 0
        %2624 = vmatpush1.bf16.msra.mxu0 %v2593
        %2625 = vmatprep.subr.bf16.mxu0 0
        %2626 = vmatpush2.bf16.msra.mxu0 0
        %2627 = vmatprep.subr.bf16.mxu0 0
        %2628 = vmatpush2.bf16.msra.mxu0 0
        %2629 = vmatprep.subr.bf16.mxu0 0
        %2630 = vmatpush2.bf16.msra.mxu0 0
        %2631 = vmatprep.subr.bf16.mxu0 0
        %2632 = vmatpush2.bf16.msra.mxu0 0
        %2633 = vmatprep.subr.bf16.mxu0 0
        %2634 = vmatpush2.bf16.msra.mxu0 0
        %2635 = vmatprep.subr.bf16.mxu0 0
        %2636 = vmatpush2.bf16.msra.mxu0 0
        %2637 = vmatprep.subr.bf16.mxu0 0
        %2638 = vmatpush2.bf16.msra.mxu0 0
        %2639 = vmatprep.subr.bf16.mxu0 0
        %2640 = vmatpush2.bf16.msra.mxu0 0
        %2641 = vmatprep.mubr.bf16.mxu0 0
        %2642 = vmatmul.mubr.bf16.gmra.mxu0 %v2443
        %v2643 = vpop.f32.mrf.mxu0
        %v2644 = vadd.f32 %v2547, %v2643
        %v2645 = vpop.f32.mrf.mxu0
        %v2646 = vpop.f32.mrf.mxu0
        %v2647 = vadd.f32 %v2550, %v2646
        %v2648 = vpop.f32.mrf.mxu0
        %2649 = vmatprep.mubr.bf16.mxu0 0
        %2650 = vmatmul.mubr.bf16.gmra.mxu0 %v2444
        %v2651 = vpop.f32.mrf.mxu0
        %v2652 = vadd.f32 %v2555, %v2651
        %v2653 = vpop.f32.mrf.mxu0
        %v2654 = vpop.f32.mrf.mxu0
        %v2655 = vadd.f32 %v2558, %v2654
        %v2656 = vpop.f32.mrf.mxu0
        %2657 = vdwg.mxu0
        %s2658 = scalar_lea.vmem %s16, 1
        %v2659 = vld [vmem:[%s2658] sm:$0x1]
        %v2661 = vlaneseq
        %v2662 = vshrl.u32 %v2661, 7
        %v2663 = vsub.s32 0, %v2662
        %v2664 = vrot.slane %v2659, %v2663
        %v2666 = vadd.f32 %v2644, %v2664
        %v2667 = vadd.f32 %v2647, %v2664
        %v2668 = vadd.f32 %v2652, %v2664
        %v2669 = vadd.f32 %v2655, %v2664
        %v2670 = vmax.f32 %v1657, 0.0
        %v2671 = vmax.f32 %v1658, 0.0
        %v2672 = vmax.f32 %v1659, 0.0
        %v2673 = vmax.f32 %v1660, 0.0
        %v2674 = vmin.f32 %v2670, 1.0
        %v2675 = vmin.f32 %v2671, 1.0
        %v2676 = vmin.f32 %v2672, 1.0
        %v2677 = vmin.f32 %v2673, 1.0
        %v2678 = vmax.f32 %v2674, 1e-05
        %v2679 = vmax.f32 %v2675, 1e-05
        %v2680 = vmax.f32 %v2676, 1e-05
        %v2681 = vmax.f32 %v2677, 1e-05
        %v2682 = vsub.f32 1.0, %v2674
        %v2683 = vsub.f32 1.0, %v2675
        %v2684 = vsub.f32 1.0, %v2676
        %v2685 = vsub.f32 1.0, %v2677
        %v2686 = vmax.f32 %v2682, 1e-05
        %v2687 = vmax.f32 %v2683, 1e-05
        %v2688 = vmax.f32 %v2684, 1e-05
        %v2689 = vmax.f32 %v2685, 1e-05
        %v2690 = vrcp.pop %v2686
        %v2691 = vmul.f32 %v2678, %v2690
        %v2692 = vrcp.pop %v2687
        %v2693 = vmul.f32 %v2679, %v2692
        %v2694 = vrcp.pop %v2688
        %v2695 = vmul.f32 %v2680, %v2694
        %v2696 = vrcp.pop %v2689
        %v2697 = vmul.f32 %v2681, %v2696
        %v2698 = vlog2.pop %v2691
        %v2699 = vmul.f32 %v2698, 0.6931472
        %v2700 = vlog2.pop %v2693
        %v2701 = vmul.f32 %v2700, 0.6931472
        %v2702 = vlog2.pop %v2695
        %v2703 = vmul.f32 %v2702, 0.6931472
        %v2704 = vlog2.pop %v2697
        %v2705 = vmul.f32 %v2704, 0.6931472
        %v2706 = vsel %vm1624, %v2699, 0.0
        %v2707 = vsel %vm1624, %v2701, 0.0
        %v2708 = vsel %vm1624, %v2703, 0.0
        %v2709 = vsel %vm1624, %v2705, 0.0
        %v2710 = vadd.f32 %v2666, %v2706
        %v2711 = vadd.f32 %v2667, %v2707
        %v2712 = vadd.f32 %v2668, %v2708
        %v2713 = vadd.f32 %v2669, %v2709
        %v2714 = vsub.f32 0.0, %v2710
        %v2715 = vsub.f32 0.0, %v2711
        %v2716 = vsub.f32 0.0, %v2712
        %v2717 = vsub.f32 0.0, %v2713
        %v2718 = vmul.f32 %v2714, 1.442695
        %v2719 = vpow.pop %v2718
        %v2720 = vmul.f32 %v2715, 1.442695
        %v2721 = vpow.pop %v2720
        %v2722 = vmul.f32 %v2716, 1.442695
        %v2723 = vpow.pop %v2722
        %v2724 = vmul.f32 %v2717, 1.442695
        %v2725 = vpow.pop %v2724
        %v2726 = vadd.f32 %v2719, 1.0
        %v2727 = vadd.f32 %v2721, 1.0
        %v2728 = vadd.f32 %v2723, 1.0
        %v2729 = vadd.f32 %v2725, 1.0
        %v2730 = vrcp.pop %v2726
        %v2731 = vmul.f32 1.0, %v2730
        %v2732 = vrcp.pop %v2727
        %v2733 = vmul.f32 1.0, %v2732
        %v2734 = vrcp.pop %v2728
        %v2735 = vmul.f32 1.0, %v2734
        %v2736 = vrcp.pop %v2729
        %v2737 = vmul.f32 1.0, %v2736
        %v2738 = vsel %vm1624, %v2731, %v2666
        %v2739 = vsel %vm1624, %v2733, %v2667
        %v2740 = vsel %vm1624, %v2735, %v2668
        %v2741 = vsel %vm1624, %v2737, %v2669
        %v2742 = vmul.f32 %v2738, %v573
        %v2743 = vmul.f32 %v2739, %v573
        %v2744 = vmul.f32 %v2740, %v573
        %v2745 = vmul.f32 %v2741, %v573
        %v2746 = vadd.f32 %v2742, %v576
        %v2747 = vadd.f32 %v2743, %v576
        %v2748 = vadd.f32 %v2744, %v576
        %v2749 = vadd.f32 %v2745, %v576
        %s2750 = scalar_lea.vmem %s537, 32 [#allocation2]
        %2751 = vst [vmem:[%s2750] sm:$0xff] %v2746
        %2752 = vst [vmem:[%s2750 + $0x8] sm:$0xff] %v2747
        %2753 = vst [vmem:[%s2750 + $0x10] sm:$0xff] %v2748
        %2754 = vst [vmem:[%s2750 + $0x18] sm:$0xff] %v2749
        %v2755 = vadd.f32 %v1833, %v544
        %v2756 = vadd.f32 %v1834, %v545
        %v2757 = vadd.f32 %v1835, %v546
        %v2758 = vadd.f32 %v1836, %v547
        %v2759 = vpack.c.bf16 %v2756, %v2755
        %v2760 = vpack.c.bf16 %v2758, %v2757
        %2761 = vmatprep.subr.bf16.mxu0 0
        %2762 = vmatpush1.bf16.xpose.msra.mxu0 0
        %2763 = vmatprep.subr.bf16.mxu0 0
        %2764 = vmatpush1.bf16.xpose.msra.mxu0 0
        %2765 = vmatprep.subr.bf16.mxu0 0
        %2766 = vmatpush1.bf16.xpose.msra.mxu0 0
        %2767 = vmatprep.subr.bf16.mxu0 0
        %2768 = vmatpush1.bf16.xpose.msra.mxu0 0
        %2769 = vmatprep.subr.bf16.mxu0 0
        %2770 = vmatpush1.bf16.xpose.msra.mxu0 %v602
        %2771 = vmatprep.subr.bf16.mxu0 0
        %2772 = vmatpush1.bf16.xpose.msra.mxu0 %v601
        %2773 = vmatprep.subr.bf16.mxu0 0
        %2774 = vmatpush1.bf16.xpose.msra.mxu0 %v600
        %2775 = vmatprep.subr.bf16.mxu0 0
        %2776 = vmatpush1.bf16.xpose.msra.mxu0 %v599
        %2777 = vmatprep.subr.bf16.mxu0 0
        %2778 = vmatpush2.bf16.xpose.msra.mxu0 0
        %2779 = vmatprep.subr.bf16.mxu0 0
        %2780 = vmatpush2.bf16.xpose.msra.mxu0 0
        %2781 = vmatprep.subr.bf16.mxu0 0
        %2782 = vmatpush2.bf16.xpose.msra.mxu0 0
        %2783 = vmatprep.subr.bf16.mxu0 0
        %2784 = vmatpush2.bf16.xpose.msra.mxu0 0
        %2785 = vmatprep.subr.bf16.mxu0 0
        %2786 = vmatpush2.bf16.xpose.msra.mxu0 0
        %2787 = vmatprep.subr.bf16.mxu0 0
        %2788 = vmatpush2.bf16.xpose.msra.mxu0 0
        %2789 = vmatprep.subr.bf16.mxu0 0
        %2790 = vmatpush2.bf16.xpose.msra.mxu0 0
        %2791 = vmatprep.subr.bf16.mxu0 0
        %2792 = vmatpush2.bf16.xpose.msra.mxu0 0
        %2793 = vmatprep.mubr.bf16.mxu0 0
        %2794 = vmatmul.mubr.bf16.gmra.mxu0 %v2759
        %v2795 = vpop.f32.mrf.mxu0
        %v2796 = vadd.f32 0.0, %v2795
        %v2797 = vpop.f32.mrf.mxu0
        %v2798 = vpop.f32.mrf.mxu0
        %v2799 = vadd.f32 0.0, %v2798
        %v2800 = vpop.f32.mrf.mxu0
        %2801 = vmatprep.mubr.bf16.mxu0 0
        %2802 = vmatmul.mubr.bf16.gmra.mxu0 %v2760
        %v2803 = vpop.f32.mrf.mxu0
        %v2804 = vadd.f32 0.0, %v2803
        %v2805 = vpop.f32.mrf.mxu0
        %v2806 = vpop.f32.mrf.mxu0
        %v2807 = vadd.f32 0.0, %v2806
        %v2808 = vpop.f32.mrf.mxu0
        %2809 = vdwg.mxu0
        %v2810 = vmul.f32 %v2796, 0.088388346
        %v2811 = vmul.f32 %v2799, 0.088388346
        %v2812 = vmul.f32 %v2804, 0.088388346
        %v2813 = vmul.f32 %v2807, 0.088388346
        %v2814 = vsel %vm660, %v2810, -inf
        %2815 = vmax.xlane.f32.xlu0 %v2814
        %v2816 = vpop.xlane.xlu0 %2815
        %v2817 = vsel %vm660, %v2811, -inf
        %2818 = vmax.xlane.f32.xlu0 %v2817
        %v2819 = vpop.xlane.xlu0 %2818
        %v2820 = vsel %vm660, %v2812, -inf
        %2821 = vmax.xlane.f32.xlu0 %v2820
        %v2822 = vpop.xlane.xlu0 %2821
        %v2823 = vsel %vm660, %v2813, -inf
        %2824 = vmax.xlane.f32.xlu0 %v2823
        %v2825 = vpop.xlane.xlu0 %2824
        %v2826 = vsub.f32 %v2810, %v2816
        %v2827 = vsub.f32 %v2811, %v2819
        %v2828 = vsub.f32 %v2812, %v2822
        %v2829 = vsub.f32 %v2813, %v2825
        %v2830 = vmul.f32 %v2826, 1.442695
        %v2831 = vpow.pop %v2830
        %v2832 = vmul.f32 %v2827, 1.442695
        %v2833 = vpow.pop %v2832
        %v2834 = vmul.f32 %v2828, 1.442695
        %v2835 = vpow.pop %v2834
        %v2836 = vmul.f32 %v2829, 1.442695
        %v2837 = vpow.pop %v2836
        %v2838 = vsel %vm660, %v2831, 0.0
        %2839 = vadd.xlane.f32.xlu0 %v2838
        %v2840 = vpop.xlane.xlu0 %2839
        %v2841 = vsel %vm660, %v2833, 0.0
        %2842 = vadd.xlane.f32.xlu0 %v2841
        %v2843 = vpop.xlane.xlu0 %2842
        %v2844 = vsel %vm660, %v2835, 0.0
        %2845 = vadd.xlane.f32.xlu0 %v2844
        %v2846 = vpop.xlane.xlu0 %2845
        %v2847 = vsel %vm660, %v2837, 0.0
        %2848 = vadd.xlane.f32.xlu0 %v2847
        %v2849 = vpop.xlane.xlu0 %2848
        %v2850 = vrcp.pop %v2840
        %v2851 = vrcp.pop %v2843
        %v2852 = vrcp.pop %v2846
        %v2853 = vrcp.pop %v2849
        %v2854 = vmul.f32 %v2831, %v2850
        %v2855 = vmul.f32 %v2833, %v2851
        %v2856 = vmul.f32 %v2835, %v2852
        %v2857 = vmul.f32 %v2837, %v2853
        %v2858 = vpack.c.bf16 %v2855, %v2854
        %v2859 = vpack.c.bf16 %v2857, %v2856
        %v2861 = vsel %vm660, %v2858, 0
        %v2864 = vsel %vm660, %v2859, 0
        %2866 = vmatprep.subr.bf16.mxu0 0
        %2867 = vmatpush1.bf16.msra.mxu0 0
        %2868 = vmatprep.subr.bf16.mxu0 0
        %2869 = vmatpush1.bf16.msra.mxu0 0
        %2870 = vmatprep.subr.bf16.mxu0 0
        %2871 = vmatpush1.bf16.msra.mxu0 0
        %2872 = vmatprep.subr.bf16.mxu0 0
        %2873 = vmatpush1.bf16.msra.mxu0 0
        %2874 = vmatprep.subr.bf16.mxu0 0
        %2875 = vmatpush1.bf16.msra.mxu0 %v602
        %2876 = vmatprep.subr.bf16.mxu0 0
        %2877 = vmatpush1.bf16.msra.mxu0 %v601
        %2878 = vmatprep.subr.bf16.mxu0 0
        %2879 = vmatpush1.bf16.msra.mxu0 %v600
        %2880 = vmatprep.subr.bf16.mxu0 0
        %2881 = vmatpush1.bf16.msra.mxu0 %v599
        %2882 = vmatprep.subr.bf16.mxu0 0
        %2883 = vmatpush2.bf16.msra.mxu0 0
        %2884 = vmatprep.subr.bf16.mxu0 0
        %2885 = vmatpush2.bf16.msra.mxu0 0
        %2886 = vmatprep.subr.bf16.mxu0 0
        %2887 = vmatpush2.bf16.msra.mxu0 0
        %2888 = vmatprep.subr.bf16.mxu0 0
        %2889 = vmatpush2.bf16.msra.mxu0 0
        %2890 = vmatprep.subr.bf16.mxu0 0
        %2891 = vmatpush2.bf16.msra.mxu0 0
        %2892 = vmatprep.subr.bf16.mxu0 0
        %2893 = vmatpush2.bf16.msra.mxu0 0
        %2894 = vmatprep.subr.bf16.mxu0 0
        %2895 = vmatpush2.bf16.msra.mxu0 0
        %2896 = vmatprep.subr.bf16.mxu0 0
        %2897 = vmatpush2.bf16.msra.mxu0 0
        %2898 = vmatprep.mubr.bf16.mxu0 0
        %2899 = vmatmul.mubr.bf16.gmra.mxu0 %v2861
        %v2900 = vpop.f32.mrf.mxu0
        %v2901 = vadd.f32 0.0, %v2900
        %v2902 = vpop.f32.mrf.mxu0
        %v2903 = vpop.f32.mrf.mxu0
        %v2904 = vadd.f32 0.0, %v2903
        %v2905 = vpop.f32.mrf.mxu0
        %2906 = vmatprep.mubr.bf16.mxu0 0
        %2907 = vmatmul.mubr.bf16.gmra.mxu0 %v2864
        %v2908 = vpop.f32.mrf.mxu0
        %v2909 = vadd.f32 0.0, %v2908
        %v2910 = vpop.f32.mrf.mxu0
        %v2911 = vpop.f32.mrf.mxu0
        %v2912 = vadd.f32 0.0, %v2911
        %v2913 = vpop.f32.mrf.mxu0
        %2914 = vdwg.mxu0
        %v2915 = vadd.f32 %v1833, %v2901
        %v2916 = vadd.f32 %v1834, %v2904
        %v2917 = vadd.f32 %v1835, %v2909
        %v2918 = vadd.f32 %v1836, %v2912
        %s2919 = scalar_lea.vmem %s4, 256
        %v2920 = vld [vmem:[%s2919] sm:$0xff]
        %v2921 = vld [vmem:[%s2919 + $0x8] sm:$0xff]
        %v2922 = vld [vmem:[%s2919 + $0x10] sm:$0xff]
        %v2923 = vld [vmem:[%s2919 + $0x18] sm:$0xff]
        %v2924 = vld [vmem:[%s2919 + $0x20] sm:$0xff]
        %v2925 = vld [vmem:[%s2919 + $0x28] sm:$0xff]
        %v2926 = vld [vmem:[%s2919 + $0x30] sm:$0xff]
        %v2927 = vld [vmem:[%s2919 + $0x38] sm:$0xff]
        %v2928 = vld [vmem:[%s2919 + $0x40] sm:$0xff]
        %v2929 = vld [vmem:[%s2919 + $0x48] sm:$0xff]
        %v2930 = vld [vmem:[%s2919 + $0x50] sm:$0xff]
        %v2931 = vld [vmem:[%s2919 + $0x58] sm:$0xff]
        %v2932 = vld [vmem:[%s2919 + $0x60] sm:$0xff]
        %v2933 = vld [vmem:[%s2919 + $0x68] sm:$0xff]
        %v2934 = vld [vmem:[%s2919 + $0x70] sm:$0xff]
        %v2935 = vld [vmem:[%s2919 + $0x78] sm:$0xff]
        %v2936 = vpack.c.bf16 %v2916, %v2915
        %v2937 = vpack.c.bf16 %v2918, %v2917
        %s2938 = scalar_lea.vmem %s5, 4
        %v2939 = vld [vmem:[%s2938] sm:$0x3]
        %v2941 = vlaneseq
        %v2942 = vshrl.u32 %v2941, 7
        %v2943 = vsub.s32 0, %v2942
        %v2944 = vrot.slane %v2939, %v2943
        %v2945 = vlaneseq
        %v2946 = vshrl.u32 %v2945, 7
        %v2947 = vsub.s32 1, %v2946
        %v2948 = vrot.slane %v2939, %v2947
        %v2967 = vunpack.c.l.b16 %v2920
        %v2968 = vunpack.c.h.b16 %v2920
        %v2969 = vunpack.c.l.b16 %v2921
        %v2970 = vunpack.c.h.b16 %v2921
        %v2971 = vunpack.c.l.b16 %v2922
        %v2972 = vunpack.c.h.b16 %v2922
        %v2973 = vunpack.c.l.b16 %v2923
        %v2974 = vunpack.c.h.b16 %v2923
        %v2975 = vunpack.c.l.b16 %v2924
        %v2976 = vunpack.c.h.b16 %v2924
        %v2977 = vunpack.c.l.b16 %v2925
        %v2978 = vunpack.c.h.b16 %v2925
        %v2979 = vunpack.c.l.b16 %v2926
        %v2980 = vunpack.c.h.b16 %v2926
        %v2981 = vunpack.c.l.b16 %v2927
        %v2982 = vunpack.c.h.b16 %v2927
        %v2983 = vunpack.c.l.b16 %v2928
        %v2984 = vunpack.c.h.b16 %v2928
        %v2985 = vunpack.c.l.b16 %v2929
        %v2986 = vunpack.c.h.b16 %v2929
        %v2987 = vunpack.c.l.b16 %v2930
        %v2988 = vunpack.c.h.b16 %v2930
        %v2989 = vunpack.c.l.b16 %v2931
        %v2990 = vunpack.c.h.b16 %v2931
        %v2991 = vunpack.c.l.b16 %v2932
        %v2992 = vunpack.c.h.b16 %v2932
        %v2993 = vunpack.c.l.b16 %v2933
        %v2994 = vunpack.c.h.b16 %v2933
        %v2995 = vunpack.c.l.b16 %v2934
        %v2996 = vunpack.c.h.b16 %v2934
        %v2997 = vunpack.c.l.b16 %v2935
        %v2998 = vunpack.c.h.b16 %v2935
        %v2999 = vpack.c.b16 %v2969, %v2967
        %v3000 = vpack.c.b16 %v2970, %v2968
        %v3001 = vpack.c.b16 %v2973, %v2971
        %v3002 = vpack.c.b16 %v2974, %v2972
        %v3003 = vpack.c.b16 %v2977, %v2975
        %v3004 = vpack.c.b16 %v2978, %v2976
        %v3005 = vpack.c.b16 %v2981, %v2979
        %v3006 = vpack.c.b16 %v2982, %v2980
        %v3007 = vpack.c.b16 %v2985, %v2983
        %v3008 = vpack.c.b16 %v2986, %v2984
        %v3009 = vpack.c.b16 %v2989, %v2987
        %v3010 = vpack.c.b16 %v2990, %v2988
        %v3011 = vpack.c.b16 %v2993, %v2991
        %v3012 = vpack.c.b16 %v2994, %v2992
        %v3013 = vpack.c.b16 %v2997, %v2995
        %v3014 = vpack.c.b16 %v2998, %v2996
        %3031 = vmatprep.subr.bf16.mxu0 %v3014
        %3032 = vmatpush1.bf16.msra.mxu0 %v3013
        %3033 = vmatprep.subr.bf16.mxu0 %v3012
        %3034 = vmatpush1.bf16.msra.mxu0 %v3011
        %3035 = vmatprep.subr.bf16.mxu0 %v3010
        %3036 = vmatpush1.bf16.msra.mxu0 %v3009
        %3037 = vmatprep.subr.bf16.mxu0 %v3008
        %3038 = vmatpush1.bf16.msra.mxu0 %v3007
        %3039 = vmatprep.subr.bf16.mxu0 %v3006
        %3040 = vmatpush1.bf16.msra.mxu0 %v3005
        %3041 = vmatprep.subr.bf16.mxu0 %v3004
        %3042 = vmatpush1.bf16.msra.mxu0 %v3003
        %3043 = vmatprep.subr.bf16.mxu0 %v3002
        %3044 = vmatpush1.bf16.msra.mxu0 %v3001
        %3045 = vmatprep.subr.bf16.mxu0 %v3000
        %3046 = vmatpush1.bf16.msra.mxu0 %v2999
        %3047 = vmatprep.subr.bf16.mxu0 0
        %3048 = vmatpush2.bf16.msra.mxu0 0
        %3049 = vmatprep.subr.bf16.mxu0 0
        %3050 = vmatpush2.bf16.msra.mxu0 0
        %3051 = vmatprep.subr.bf16.mxu0 0
        %3052 = vmatpush2.bf16.msra.mxu0 0
        %3053 = vmatprep.subr.bf16.mxu0 0
        %3054 = vmatpush2.bf16.msra.mxu0 0
        %3055 = vmatprep.subr.bf16.mxu0 0
        %3056 = vmatpush2.bf16.msra.mxu0 0
        %3057 = vmatprep.subr.bf16.mxu0 0
        %3058 = vmatpush2.bf16.msra.mxu0 0
        %3059 = vmatprep.subr.bf16.mxu0 0
        %3060 = vmatpush2.bf16.msra.mxu0 0
        %3061 = vmatprep.subr.bf16.mxu0 0
        %3062 = vmatpush2.bf16.msra.mxu0 0
        %3063 = vmatprep.mubr.bf16.mxu0 0
        %3064 = vmatmul.mubr.bf16.gmra.mxu0 %v2936
        %v3065 = vpop.f32.mrf.mxu0
        %v3066 = vadd.f32 %v2944, %v3065
        %v3067 = vpop.f32.mrf.mxu0
        %v3068 = vadd.f32 %v2948, %v3067
        %v3069 = vpop.f32.mrf.mxu0
        %v3070 = vadd.f32 %v2944, %v3069
        %v3071 = vpop.f32.mrf.mxu0
        %v3072 = vadd.f32 %v2948, %v3071
        %3073 = vmatprep.mubr.bf16.mxu0 0
        %3074 = vmatmul.mubr.bf16.gmra.mxu0 %v2937
        %v3075 = vpop.f32.mrf.mxu0
        %v3076 = vadd.f32 %v2944, %v3075
        %v3077 = vpop.f32.mrf.mxu0
        %v3078 = vadd.f32 %v2948, %v3077
        %v3079 = vpop.f32.mrf.mxu0
        %v3080 = vadd.f32 %v2944, %v3079
        %v3081 = vpop.f32.mrf.mxu0
        %v3082 = vadd.f32 %v2948, %v3081
        %3083 = vdwg.mxu0
        %v3084 = vmax.f32 %v3068, 0.0
        %v3085 = vmax.f32 %v3072, 0.0
        %v3086 = vmax.f32 %v3078, 0.0
        %v3087 = vmax.f32 %v3082, 0.0
        %s3088 = scalar_lea.vmem %s6, 2
        %v3089 = vld [vmem:[%s3088] sm:$0x1]
        %s3090 = scalar_lea.vmem %s7, 2
        %v3091 = vld [vmem:[%s3090] sm:$0x1]
        %3092 = vadd.xlane.f32.xlu0 %v3066
        %v3093 = vpop.xlane.xlu0 %3092
        %3094 = vadd.xlane.f32.xlu0 %v3070
        %v3095 = vpop.xlane.xlu0 %3094
        %3096 = vadd.xlane.f32.xlu0 %v3076
        %v3097 = vpop.xlane.xlu0 %3096
        %3098 = vadd.xlane.f32.xlu0 %v3080
        %v3099 = vpop.xlane.xlu0 %3098
        %v3100 = vmul.f32 %v3093, %v943
        %v3101 = vmul.f32 %v3095, %v943
        %v3102 = vmul.f32 %v3097, %v943
        %v3103 = vmul.f32 %v3099, %v943
        %v3104 = vmul.f32 %v3066, %v3066
        %v3105 = vmul.f32 %v3070, %v3070
        %v3106 = vmul.f32 %v3076, %v3076
        %v3107 = vmul.f32 %v3080, %v3080
        %3108 = vadd.xlane.f32.xlu0 %v3104
        %v3109 = vpop.xlane.xlu0 %3108
        %3110 = vadd.xlane.f32.xlu0 %v3105
        %v3111 = vpop.xlane.xlu0 %3110
        %3112 = vadd.xlane.f32.xlu0 %v3106
        %v3113 = vpop.xlane.xlu0 %3112
        %3114 = vadd.xlane.f32.xlu0 %v3107
        %v3115 = vpop.xlane.xlu0 %3114
        %v3116 = vmul.f32 %v3109, %v943
        %v3117 = vmul.f32 %v3111, %v943
        %v3118 = vmul.f32 %v3113, %v943
        %v3119 = vmul.f32 %v3115, %v943
        %v3120 = vmul.f32 %v3100, %v3100
        %v3121 = vmul.f32 %v3101, %v3101
        %v3122 = vmul.f32 %v3102, %v3102
        %v3123 = vmul.f32 %v3103, %v3103
        %v3124 = vsub.f32 %v3116, %v3120
        %v3125 = vsub.f32 %v3117, %v3121
        %v3126 = vsub.f32 %v3118, %v3122
        %v3127 = vsub.f32 %v3119, %v3123
        %v3128 = vmax.f32 %v3124, 0.0
        %v3129 = vmax.f32 %v3125, 0.0
        %v3130 = vmax.f32 %v3126, 0.0
        %v3131 = vmax.f32 %v3127, 0.0
        %v3132 = vsub.f32 %v3066, %v3100
        %v3133 = vsub.f32 %v3070, %v3101
        %v3134 = vsub.f32 %v3076, %v3102
        %v3135 = vsub.f32 %v3080, %v3103
        %v3136 = vadd.f32 %v3128, 1e-05
        %v3137 = vadd.f32 %v3129, 1e-05
        %v3138 = vadd.f32 %v3130, 1e-05
        %v3139 = vadd.f32 %v3131, 1e-05
        %v3140 = vrsqrt.pop %v3136
        %v3141 = vrsqrt.pop %v3137
        %v3142 = vrsqrt.pop %v3138
        %v3143 = vrsqrt.pop %v3139
        %v3144 = vmul.f32 %v3132, %v3140
        %v3145 = vmul.f32 %v3133, %v3141
        %v3146 = vmul.f32 %v3134, %v3142
        %v3147 = vmul.f32 %v3135, %v3143
        %v3149 = vlaneseq
        %v3150 = vshrl.u32 %v3149, 7
        %v3151 = vsub.s32 0, %v3150
        %v3152 = vrot.slane %v3089, %v3151
        %v3154 = vmul.f32 %v3144, %v3152
        %v3155 = vmul.f32 %v3145, %v3152
        %v3156 = vmul.f32 %v3146, %v3152
        %v3157 = vmul.f32 %v3147, %v3152
        %v3159 = vlaneseq
        %v3160 = vshrl.u32 %v3159, 7
        %v3161 = vsub.s32 0, %v3160
        %v3162 = vrot.slane %v3091, %v3161
        %v3164 = vadd.f32 %v3154, %v3162
        %v3165 = vadd.f32 %v3155, %v3162
        %v3166 = vadd.f32 %v3156, %v3162
        %v3167 = vadd.f32 %v3157, %v3162
        %v3168 = vmax.f32 %v3164, 0.0
        %v3169 = vmax.f32 %v3165, 0.0
        %v3170 = vmax.f32 %v3166, 0.0
        %v3171 = vmax.f32 %v3167, 0.0
        %s3172 = scalar_lea.vmem %s8, 128
        %v3173 = vld [vmem:[%s3172] sm:$0xf]
        %v3174 = vld [vmem:[%s3172 + $0x4] sm:$0xf]
        %v3175 = vld [vmem:[%s3172 + $0x8] sm:$0xf]
        %v3176 = vld [vmem:[%s3172 + $0xc] sm:$0xf]
        %v3177 = vld [vmem:[%s3172 + $0x10] sm:$0xf]
        %v3178 = vld [vmem:[%s3172 + $0x14] sm:$0xf]
        %v3179 = vld [vmem:[%s3172 + $0x18] sm:$0xf]
        %v3180 = vld [vmem:[%s3172 + $0x1c] sm:$0xf]
        %v3181 = vld [vmem:[%s3172 + $0x20] sm:$0xf]
        %v3182 = vld [vmem:[%s3172 + $0x24] sm:$0xf]
        %v3183 = vld [vmem:[%s3172 + $0x28] sm:$0xf]
        %v3184 = vld [vmem:[%s3172 + $0x2c] sm:$0xf]
        %v3185 = vld [vmem:[%s3172 + $0x30] sm:$0xf]
        %v3186 = vld [vmem:[%s3172 + $0x34] sm:$0xf]
        %v3187 = vld [vmem:[%s3172 + $0x38] sm:$0xf]
        %v3188 = vld [vmem:[%s3172 + $0x3c] sm:$0xf]
        %v3189 = vpack.c.bf16 %v3169, %v3168
        %v3190 = vpack.c.bf16 %v3171, %v3170
        %s3191 = scalar_lea.vmem %s9, 2
        %v3192 = vld [vmem:[%s3191] sm:$0x1]
        %v3194 = vlaneseq
        %v3195 = vshrl.u32 %v3194, 7
        %v3196 = vsub.s32 0, %v3195
        %v3197 = vrot.slane %v3192, %v3196
        %v3215 = vunpack.c.l.b16 %v3173
        %v3216 = vunpack.c.l.b16 %v3174
        %v3217 = vunpack.c.l.b16 %v3175
        %v3218 = vunpack.c.l.b16 %v3176
        %v3219 = vunpack.c.l.b16 %v3177
        %v3220 = vunpack.c.l.b16 %v3178
        %v3221 = vunpack.c.l.b16 %v3179
        %v3222 = vunpack.c.l.b16 %v3180
        %v3223 = vunpack.c.l.b16 %v3181
        %v3224 = vunpack.c.l.b16 %v3182
        %v3225 = vunpack.c.l.b16 %v3183
        %v3226 = vunpack.c.l.b16 %v3184
        %v3227 = vunpack.c.l.b16 %v3185
        %v3228 = vunpack.c.l.b16 %v3186
        %v3229 = vunpack.c.l.b16 %v3187
        %v3230 = vunpack.c.l.b16 %v3188
        %v3231 = vpack.c.b16 %v3216, %v3215
        %v3232 = vpack.c.b16 %v3218, %v3217
        %v3233 = vpack.c.b16 %v3220, %v3219
        %v3234 = vpack.c.b16 %v3222, %v3221
        %v3235 = vpack.c.b16 %v3224, %v3223
        %v3236 = vpack.c.b16 %v3226, %v3225
        %v3237 = vpack.c.b16 %v3228, %v3227
        %v3238 = vpack.c.b16 %v3230, %v3229
        %3247 = vmatprep.subr.bf16.mxu0 0
        %3248 = vmatpush1.bf16.msra.mxu0 %v3238
        %3249 = vmatprep.subr.bf16.mxu0 0
        %3250 = vmatpush1.bf16.msra.mxu0 %v3237
        %3251 = vmatprep.subr.bf16.mxu0 0
        %3252 = vmatpush1.bf16.msra.mxu0 %v3236
        %3253 = vmatprep.subr.bf16.mxu0 0
        %3254 = vmatpush1.bf16.msra.mxu0 %v3235
        %3255 = vmatprep.subr.bf16.mxu0 0
        %3256 = vmatpush1.bf16.msra.mxu0 %v3234
        %3257 = vmatprep.subr.bf16.mxu0 0
        %3258 = vmatpush1.bf16.msra.mxu0 %v3233
        %3259 = vmatprep.subr.bf16.mxu0 0
        %3260 = vmatpush1.bf16.msra.mxu0 %v3232
        %3261 = vmatprep.subr.bf16.mxu0 0
        %3262 = vmatpush1.bf16.msra.mxu0 %v3231
        %3263 = vmatprep.subr.bf16.mxu0 0
        %3264 = vmatpush2.bf16.msra.mxu0 0
        %3265 = vmatprep.subr.bf16.mxu0 0
        %3266 = vmatpush2.bf16.msra.mxu0 0
        %3267 = vmatprep.subr.bf16.mxu0 0
        %3268 = vmatpush2.bf16.msra.mxu0 0
        %3269 = vmatprep.subr.bf16.mxu0 0
        %3270 = vmatpush2.bf16.msra.mxu0 0
        %3271 = vmatprep.subr.bf16.mxu0 0
        %3272 = vmatpush2.bf16.msra.mxu0 0
        %3273 = vmatprep.subr.bf16.mxu0 0
        %3274 = vmatpush2.bf16.msra.mxu0 0
        %3275 = vmatprep.subr.bf16.mxu0 0
        %3276 = vmatpush2.bf16.msra.mxu0 0
        %3277 = vmatprep.subr.bf16.mxu0 0
        %3278 = vmatpush2.bf16.msra.mxu0 0
        %3279 = vmatprep.mubr.bf16.mxu0 0
        %3280 = vmatmul.mubr.bf16.gmra.mxu0 %v3189
        %v3281 = vpop.f32.mrf.mxu0
        %v3282 = vadd.f32 %v3197, %v3281
        %v3283 = vpop.f32.mrf.mxu0
        %v3284 = vpop.f32.mrf.mxu0
        %v3285 = vadd.f32 %v3197, %v3284
        %v3286 = vpop.f32.mrf.mxu0
        %3287 = vmatprep.mubr.bf16.mxu0 0
        %3288 = vmatmul.mubr.bf16.gmra.mxu0 %v3190
        %v3289 = vpop.f32.mrf.mxu0
        %v3290 = vadd.f32 %v3197, %v3289
        %v3291 = vpop.f32.mrf.mxu0
        %v3292 = vpop.f32.mrf.mxu0
        %v3293 = vadd.f32 %v3197, %v3292
        %v3294 = vpop.f32.mrf.mxu0
        %3295 = vdwg.mxu0
        %s3296 = scalar_lea.vmem %s10, 2
        %v3297 = vld [vmem:[%s3296] sm:$0x1]
        %s3298 = scalar_lea.vmem %s11, 2
        %v3299 = vld [vmem:[%s3298] sm:$0x1]
        %3300 = vadd.xlane.f32.xlu0 %v3282
        %v3301 = vpop.xlane.xlu0 %3300
        %3302 = vadd.xlane.f32.xlu0 %v3285
        %v3303 = vpop.xlane.xlu0 %3302
        %3304 = vadd.xlane.f32.xlu0 %v3290
        %v3305 = vpop.xlane.xlu0 %3304
        %3306 = vadd.xlane.f32.xlu0 %v3293
        %v3307 = vpop.xlane.xlu0 %3306
        %v3308 = vmul.f32 %v3301, %v943
        %v3309 = vmul.f32 %v3303, %v943
        %v3310 = vmul.f32 %v3305, %v943
        %v3311 = vmul.f32 %v3307, %v943
        %v3312 = vmul.f32 %v3282, %v3282
        %v3313 = vmul.f32 %v3285, %v3285
        %v3314 = vmul.f32 %v3290, %v3290
        %v3315 = vmul.f32 %v3293, %v3293
        %3316 = vadd.xlane.f32.xlu0 %v3312
        %v3317 = vpop.xlane.xlu0 %3316
        %3318 = vadd.xlane.f32.xlu0 %v3313
        %v3319 = vpop.xlane.xlu0 %3318
        %3320 = vadd.xlane.f32.xlu0 %v3314
        %v3321 = vpop.xlane.xlu0 %3320
        %3322 = vadd.xlane.f32.xlu0 %v3315
        %v3323 = vpop.xlane.xlu0 %3322
        %v3324 = vmul.f32 %v3317, %v943
        %v3325 = vmul.f32 %v3319, %v943
        %v3326 = vmul.f32 %v3321, %v943
        %v3327 = vmul.f32 %v3323, %v943
        %v3328 = vmul.f32 %v3308, %v3308
        %v3329 = vmul.f32 %v3309, %v3309
        %v3330 = vmul.f32 %v3310, %v3310
        %v3331 = vmul.f32 %v3311, %v3311
        %v3332 = vsub.f32 %v3324, %v3328
        %v3333 = vsub.f32 %v3325, %v3329
        %v3334 = vsub.f32 %v3326, %v3330
        %v3335 = vsub.f32 %v3327, %v3331
        %v3336 = vmax.f32 %v3332, 0.0
        %v3337 = vmax.f32 %v3333, 0.0
        %v3338 = vmax.f32 %v3334, 0.0
        %v3339 = vmax.f32 %v3335, 0.0
        %v3340 = vsub.f32 %v3282, %v3308
        %v3341 = vsub.f32 %v3285, %v3309
        %v3342 = vsub.f32 %v3290, %v3310
        %v3343 = vsub.f32 %v3293, %v3311
        %v3344 = vadd.f32 %v3336, 1e-05
        %v3345 = vadd.f32 %v3337, 1e-05
        %v3346 = vadd.f32 %v3338, 1e-05
        %v3347 = vadd.f32 %v3339, 1e-05
        %v3348 = vrsqrt.pop %v3344
        %v3349 = vrsqrt.pop %v3345
        %v3350 = vrsqrt.pop %v3346
        %v3351 = vrsqrt.pop %v3347
        %v3352 = vmul.f32 %v3340, %v3348
        %v3353 = vmul.f32 %v3341, %v3349
        %v3354 = vmul.f32 %v3342, %v3350
        %v3355 = vmul.f32 %v3343, %v3351
        %v3357 = vlaneseq
        %v3358 = vshrl.u32 %v3357, 7
        %v3359 = vsub.s32 0, %v3358
        %v3360 = vrot.slane %v3297, %v3359
        %v3362 = vmul.f32 %v3352, %v3360
        %v3363 = vmul.f32 %v3353, %v3360
        %v3364 = vmul.f32 %v3354, %v3360
        %v3365 = vmul.f32 %v3355, %v3360
        %v3367 = vlaneseq
        %v3368 = vshrl.u32 %v3367, 7
        %v3369 = vsub.s32 0, %v3368
        %v3370 = vrot.slane %v3299, %v3369
        %v3372 = vadd.f32 %v3362, %v3370
        %v3373 = vadd.f32 %v3363, %v3370
        %v3374 = vadd.f32 %v3364, %v3370
        %v3375 = vadd.f32 %v3365, %v3370
        %v3376 = vmax.f32 %v3372, 0.0
        %v3377 = vmax.f32 %v3373, 0.0
        %v3378 = vmax.f32 %v3374, 0.0
        %v3379 = vmax.f32 %v3375, 0.0
        %s3380 = scalar_lea.vmem %s12, 128
        %v3381 = vld [vmem:[%s3380] sm:$0xf]
        %v3382 = vld [vmem:[%s3380 + $0x4] sm:$0xf]
        %v3383 = vld [vmem:[%s3380 + $0x8] sm:$0xf]
        %v3384 = vld [vmem:[%s3380 + $0xc] sm:$0xf]
        %v3385 = vld [vmem:[%s3380 + $0x10] sm:$0xf]
        %v3386 = vld [vmem:[%s3380 + $0x14] sm:$0xf]
        %v3387 = vld [vmem:[%s3380 + $0x18] sm:$0xf]
        %v3388 = vld [vmem:[%s3380 + $0x1c] sm:$0xf]
        %v3389 = vld [vmem:[%s3380 + $0x20] sm:$0xf]
        %v3390 = vld [vmem:[%s3380 + $0x24] sm:$0xf]
        %v3391 = vld [vmem:[%s3380 + $0x28] sm:$0xf]
        %v3392 = vld [vmem:[%s3380 + $0x2c] sm:$0xf]
        %v3393 = vld [vmem:[%s3380 + $0x30] sm:$0xf]
        %v3394 = vld [vmem:[%s3380 + $0x34] sm:$0xf]
        %v3395 = vld [vmem:[%s3380 + $0x38] sm:$0xf]
        %v3396 = vld [vmem:[%s3380 + $0x3c] sm:$0xf]
        %v3397 = vpack.c.bf16 %v3085, %v3084
        %v3398 = vpack.c.bf16 %v3087, %v3086
        %s3399 = scalar_lea.vmem %s13, 2
        %v3400 = vld [vmem:[%s3399] sm:$0x1]
        %v3402 = vlaneseq
        %v3403 = vshrl.u32 %v3402, 7
        %v3404 = vsub.s32 0, %v3403
        %v3405 = vrot.slane %v3400, %v3404
        %v3423 = vunpack.c.l.b16 %v3381
        %v3424 = vunpack.c.l.b16 %v3382
        %v3425 = vunpack.c.l.b16 %v3383
        %v3426 = vunpack.c.l.b16 %v3384
        %v3427 = vunpack.c.l.b16 %v3385
        %v3428 = vunpack.c.l.b16 %v3386
        %v3429 = vunpack.c.l.b16 %v3387
        %v3430 = vunpack.c.l.b16 %v3388
        %v3431 = vunpack.c.l.b16 %v3389
        %v3432 = vunpack.c.l.b16 %v3390
        %v3433 = vunpack.c.l.b16 %v3391
        %v3434 = vunpack.c.l.b16 %v3392
        %v3435 = vunpack.c.l.b16 %v3393
        %v3436 = vunpack.c.l.b16 %v3394
        %v3437 = vunpack.c.l.b16 %v3395
        %v3438 = vunpack.c.l.b16 %v3396
        %v3439 = vpack.c.b16 %v3424, %v3423
        %v3440 = vpack.c.b16 %v3426, %v3425
        %v3441 = vpack.c.b16 %v3428, %v3427
        %v3442 = vpack.c.b16 %v3430, %v3429
        %v3443 = vpack.c.b16 %v3432, %v3431
        %v3444 = vpack.c.b16 %v3434, %v3433
        %v3445 = vpack.c.b16 %v3436, %v3435
        %v3446 = vpack.c.b16 %v3438, %v3437
        %3455 = vmatprep.subr.bf16.mxu0 0
        %3456 = vmatpush1.bf16.msra.mxu0 %v3446
        %3457 = vmatprep.subr.bf16.mxu0 0
        %3458 = vmatpush1.bf16.msra.mxu0 %v3445
        %3459 = vmatprep.subr.bf16.mxu0 0
        %3460 = vmatpush1.bf16.msra.mxu0 %v3444
        %3461 = vmatprep.subr.bf16.mxu0 0
        %3462 = vmatpush1.bf16.msra.mxu0 %v3443
        %3463 = vmatprep.subr.bf16.mxu0 0
        %3464 = vmatpush1.bf16.msra.mxu0 %v3442
        %3465 = vmatprep.subr.bf16.mxu0 0
        %3466 = vmatpush1.bf16.msra.mxu0 %v3441
        %3467 = vmatprep.subr.bf16.mxu0 0
        %3468 = vmatpush1.bf16.msra.mxu0 %v3440
        %3469 = vmatprep.subr.bf16.mxu0 0
        %3470 = vmatpush1.bf16.msra.mxu0 %v3439
        %3471 = vmatprep.subr.bf16.mxu0 0
        %3472 = vmatpush2.bf16.msra.mxu0 0
        %3473 = vmatprep.subr.bf16.mxu0 0
        %3474 = vmatpush2.bf16.msra.mxu0 0
        %3475 = vmatprep.subr.bf16.mxu0 0
        %3476 = vmatpush2.bf16.msra.mxu0 0
        %3477 = vmatprep.subr.bf16.mxu0 0
        %3478 = vmatpush2.bf16.msra.mxu0 0
        %3479 = vmatprep.subr.bf16.mxu0 0
        %3480 = vmatpush2.bf16.msra.mxu0 0
        %3481 = vmatprep.subr.bf16.mxu0 0
        %3482 = vmatpush2.bf16.msra.mxu0 0
        %3483 = vmatprep.subr.bf16.mxu0 0
        %3484 = vmatpush2.bf16.msra.mxu0 0
        %3485 = vmatprep.subr.bf16.mxu0 0
        %3486 = vmatpush2.bf16.msra.mxu0 0
        %3487 = vmatprep.mubr.bf16.mxu0 0
        %3488 = vmatmul.mubr.bf16.gmra.mxu0 %v3397
        %v3489 = vpop.f32.mrf.mxu0
        %v3490 = vadd.f32 %v3405, %v3489
        %v3491 = vpop.f32.mrf.mxu0
        %v3492 = vpop.f32.mrf.mxu0
        %v3493 = vadd.f32 %v3405, %v3492
        %v3494 = vpop.f32.mrf.mxu0
        %3495 = vmatprep.mubr.bf16.mxu0 0
        %3496 = vmatmul.mubr.bf16.gmra.mxu0 %v3398
        %v3497 = vpop.f32.mrf.mxu0
        %v3498 = vadd.f32 %v3405, %v3497
        %v3499 = vpop.f32.mrf.mxu0
        %v3500 = vpop.f32.mrf.mxu0
        %v3501 = vadd.f32 %v3405, %v3500
        %v3502 = vpop.f32.mrf.mxu0
        %3503 = vdwg.mxu0
        %v3504 = vmax.f32 %v3490, 0.0
        %v3505 = vmax.f32 %v3493, 0.0
        %v3506 = vmax.f32 %v3498, 0.0
        %v3507 = vmax.f32 %v3501, 0.0
        %s3508 = scalar_lea.vmem %s14, 128
        %v3509 = vld [vmem:[%s3508] sm:$0xf]
        %v3510 = vld [vmem:[%s3508 + $0x4] sm:$0xf]
        %v3511 = vld [vmem:[%s3508 + $0x8] sm:$0xf]
        %v3512 = vld [vmem:[%s3508 + $0xc] sm:$0xf]
        %v3513 = vld [vmem:[%s3508 + $0x10] sm:$0xf]
        %v3514 = vld [vmem:[%s3508 + $0x14] sm:$0xf]
        %v3515 = vld [vmem:[%s3508 + $0x18] sm:$0xf]
        %v3516 = vld [vmem:[%s3508 + $0x1c] sm:$0xf]
        %v3517 = vld [vmem:[%s3508 + $0x20] sm:$0xf]
        %v3518 = vld [vmem:[%s3508 + $0x24] sm:$0xf]
        %v3519 = vld [vmem:[%s3508 + $0x28] sm:$0xf]
        %v3520 = vld [vmem:[%s3508 + $0x2c] sm:$0xf]
        %v3521 = vld [vmem:[%s3508 + $0x30] sm:$0xf]
        %v3522 = vld [vmem:[%s3508 + $0x34] sm:$0xf]
        %v3523 = vld [vmem:[%s3508 + $0x38] sm:$0xf]
        %v3524 = vld [vmem:[%s3508 + $0x3c] sm:$0xf]
        %v3525 = vpack.c.bf16 %v3377, %v3376
        %v3526 = vpack.c.bf16 %v3379, %v3378
        %s3527 = scalar_lea.vmem %s15, 128
        %v3528 = vld [vmem:[%s3527] sm:$0xf]
        %v3529 = vld [vmem:[%s3527 + $0x4] sm:$0xf]
        %v3530 = vld [vmem:[%s3527 + $0x8] sm:$0xf]
        %v3531 = vld [vmem:[%s3527 + $0xc] sm:$0xf]
        %v3532 = vld [vmem:[%s3527 + $0x10] sm:$0xf]
        %v3533 = vld [vmem:[%s3527 + $0x14] sm:$0xf]
        %v3534 = vld [vmem:[%s3527 + $0x18] sm:$0xf]
        %v3535 = vld [vmem:[%s3527 + $0x1c] sm:$0xf]
        %v3536 = vld [vmem:[%s3527 + $0x20] sm:$0xf]
        %v3537 = vld [vmem:[%s3527 + $0x24] sm:$0xf]
        %v3538 = vld [vmem:[%s3527 + $0x28] sm:$0xf]
        %v3539 = vld [vmem:[%s3527 + $0x2c] sm:$0xf]
        %v3540 = vld [vmem:[%s3527 + $0x30] sm:$0xf]
        %v3541 = vld [vmem:[%s3527 + $0x34] sm:$0xf]
        %v3542 = vld [vmem:[%s3527 + $0x38] sm:$0xf]
        %v3543 = vld [vmem:[%s3527 + $0x3c] sm:$0xf]
        %v3544 = vpack.c.bf16 %v3505, %v3504
        %v3545 = vpack.c.bf16 %v3507, %v3506
        %v3562 = vunpack.c.l.b16 %v3528
        %v3563 = vunpack.c.l.b16 %v3529
        %v3564 = vunpack.c.l.b16 %v3530
        %v3565 = vunpack.c.l.b16 %v3531
        %v3566 = vunpack.c.l.b16 %v3532
        %v3567 = vunpack.c.l.b16 %v3533
        %v3568 = vunpack.c.l.b16 %v3534
        %v3569 = vunpack.c.l.b16 %v3535
        %v3570 = vunpack.c.l.b16 %v3536
        %v3571 = vunpack.c.l.b16 %v3537
        %v3572 = vunpack.c.l.b16 %v3538
        %v3573 = vunpack.c.l.b16 %v3539
        %v3574 = vunpack.c.l.b16 %v3540
        %v3575 = vunpack.c.l.b16 %v3541
        %v3576 = vunpack.c.l.b16 %v3542
        %v3577 = vunpack.c.l.b16 %v3543
        %v3578 = vpack.c.b16 %v3563, %v3562
        %v3579 = vpack.c.b16 %v3565, %v3564
        %v3580 = vpack.c.b16 %v3567, %v3566
        %v3581 = vpack.c.b16 %v3569, %v3568
        %v3582 = vpack.c.b16 %v3571, %v3570
        %v3583 = vpack.c.b16 %v3573, %v3572
        %v3584 = vpack.c.b16 %v3575, %v3574
        %v3585 = vpack.c.b16 %v3577, %v3576
        %3594 = vmatprep.subr.bf16.mxu0 0
        %3595 = vmatpush1.bf16.msra.mxu0 %v3585
        %3596 = vmatprep.subr.bf16.mxu0 0
        %3597 = vmatpush1.bf16.msra.mxu0 %v3584
        %3598 = vmatprep.subr.bf16.mxu0 0
        %3599 = vmatpush1.bf16.msra.mxu0 %v3583
        %3600 = vmatprep.subr.bf16.mxu0 0
        %3601 = vmatpush1.bf16.msra.mxu0 %v3582
        %3602 = vmatprep.subr.bf16.mxu0 0
        %3603 = vmatpush1.bf16.msra.mxu0 %v3581
        %3604 = vmatprep.subr.bf16.mxu0 0
        %3605 = vmatpush1.bf16.msra.mxu0 %v3580
        %3606 = vmatprep.subr.bf16.mxu0 0
        %3607 = vmatpush1.bf16.msra.mxu0 %v3579
        %3608 = vmatprep.subr.bf16.mxu0 0
        %3609 = vmatpush1.bf16.msra.mxu0 %v3578
        %3610 = vmatprep.subr.bf16.mxu0 0
        %3611 = vmatpush2.bf16.msra.mxu0 0
        %3612 = vmatprep.subr.bf16.mxu0 0
        %3613 = vmatpush2.bf16.msra.mxu0 0
        %3614 = vmatprep.subr.bf16.mxu0 0
        %3615 = vmatpush2.bf16.msra.mxu0 0
        %3616 = vmatprep.subr.bf16.mxu0 0
        %3617 = vmatpush2.bf16.msra.mxu0 0
        %3618 = vmatprep.subr.bf16.mxu0 0
        %3619 = vmatpush2.bf16.msra.mxu0 0
        %3620 = vmatprep.subr.bf16.mxu0 0
        %3621 = vmatpush2.bf16.msra.mxu0 0
        %3622 = vmatprep.subr.bf16.mxu0 0
        %3623 = vmatpush2.bf16.msra.mxu0 0
        %3624 = vmatprep.subr.bf16.mxu0 0
        %3625 = vmatpush2.bf16.msra.mxu0 0
        %3626 = vmatprep.mubr.bf16.mxu0 0
        %3627 = vmatmul.mubr.bf16.gmra.mxu0 %v3544
        %v3628 = vpop.f32.mrf.mxu0
        %v3629 = vadd.f32 0.0, %v3628
        %v3630 = vpop.f32.mrf.mxu0
        %v3631 = vpop.f32.mrf.mxu0
        %v3632 = vadd.f32 0.0, %v3631
        %v3633 = vpop.f32.mrf.mxu0
        %3634 = vmatprep.mubr.bf16.mxu0 0
        %3635 = vmatmul.mubr.bf16.gmra.mxu0 %v3545
        %v3636 = vpop.f32.mrf.mxu0
        %v3637 = vadd.f32 0.0, %v3636
        %v3638 = vpop.f32.mrf.mxu0
        %v3639 = vpop.f32.mrf.mxu0
        %v3640 = vadd.f32 0.0, %v3639
        %v3641 = vpop.f32.mrf.mxu0
        %3642 = vdwg.mxu0
        %v3659 = vunpack.c.l.b16 %v3509
        %v3660 = vunpack.c.l.b16 %v3510
        %v3661 = vunpack.c.l.b16 %v3511
        %v3662 = vunpack.c.l.b16 %v3512
        %v3663 = vunpack.c.l.b16 %v3513
        %v3664 = vunpack.c.l.b16 %v3514
        %v3665 = vunpack.c.l.b16 %v3515
        %v3666 = vunpack.c.l.b16 %v3516
        %v3667 = vunpack.c.l.b16 %v3517
        %v3668 = vunpack.c.l.b16 %v3518
        %v3669 = vunpack.c.l.b16 %v3519
        %v3670 = vunpack.c.l.b16 %v3520
        %v3671 = vunpack.c.l.b16 %v3521
        %v3672 = vunpack.c.l.b16 %v3522
        %v3673 = vunpack.c.l.b16 %v3523
        %v3674 = vunpack.c.l.b16 %v3524
        %v3675 = vpack.c.b16 %v3660, %v3659
        %v3676 = vpack.c.b16 %v3662, %v3661
        %v3677 = vpack.c.b16 %v3664, %v3663
        %v3678 = vpack.c.b16 %v3666, %v3665
        %v3679 = vpack.c.b16 %v3668, %v3667
        %v3680 = vpack.c.b16 %v3670, %v3669
        %v3681 = vpack.c.b16 %v3672, %v3671
        %v3682 = vpack.c.b16 %v3674, %v3673
        %3691 = vmatprep.subr.bf16.mxu0 0
        %3692 = vmatpush1.bf16.msra.mxu0 %v3682
        %3693 = vmatprep.subr.bf16.mxu0 0
        %3694 = vmatpush1.bf16.msra.mxu0 %v3681
        %3695 = vmatprep.subr.bf16.mxu0 0
        %3696 = vmatpush1.bf16.msra.mxu0 %v3680
        %3697 = vmatprep.subr.bf16.mxu0 0
        %3698 = vmatpush1.bf16.msra.mxu0 %v3679
        %3699 = vmatprep.subr.bf16.mxu0 0
        %3700 = vmatpush1.bf16.msra.mxu0 %v3678
        %3701 = vmatprep.subr.bf16.mxu0 0
        %3702 = vmatpush1.bf16.msra.mxu0 %v3677
        %3703 = vmatprep.subr.bf16.mxu0 0
        %3704 = vmatpush1.bf16.msra.mxu0 %v3676
        %3705 = vmatprep.subr.bf16.mxu0 0
        %3706 = vmatpush1.bf16.msra.mxu0 %v3675
        %3707 = vmatprep.subr.bf16.mxu0 0
        %3708 = vmatpush2.bf16.msra.mxu0 0
        %3709 = vmatprep.subr.bf16.mxu0 0
        %3710 = vmatpush2.bf16.msra.mxu0 0
        %3711 = vmatprep.subr.bf16.mxu0 0
        %3712 = vmatpush2.bf16.msra.mxu0 0
        %3713 = vmatprep.subr.bf16.mxu0 0
        %3714 = vmatpush2.bf16.msra.mxu0 0
        %3715 = vmatprep.subr.bf16.mxu0 0
        %3716 = vmatpush2.bf16.msra.mxu0 0
        %3717 = vmatprep.subr.bf16.mxu0 0
        %3718 = vmatpush2.bf16.msra.mxu0 0
        %3719 = vmatprep.subr.bf16.mxu0 0
        %3720 = vmatpush2.bf16.msra.mxu0 0
        %3721 = vmatprep.subr.bf16.mxu0 0
        %3722 = vmatpush2.bf16.msra.mxu0 0
        %3723 = vmatprep.mubr.bf16.mxu0 0
        %3724 = vmatmul.mubr.bf16.gmra.mxu0 %v3525
        %v3725 = vpop.f32.mrf.mxu0
        %v3726 = vadd.f32 %v3629, %v3725
        %v3727 = vpop.f32.mrf.mxu0
        %v3728 = vpop.f32.mrf.mxu0
        %v3729 = vadd.f32 %v3632, %v3728
        %v3730 = vpop.f32.mrf.mxu0
        %3731 = vmatprep.mubr.bf16.mxu0 0
        %3732 = vmatmul.mubr.bf16.gmra.mxu0 %v3526
        %v3733 = vpop.f32.mrf.mxu0
        %v3734 = vadd.f32 %v3637, %v3733
        %v3735 = vpop.f32.mrf.mxu0
        %v3736 = vpop.f32.mrf.mxu0
        %v3737 = vadd.f32 %v3640, %v3736
        %v3738 = vpop.f32.mrf.mxu0
        %3739 = vdwg.mxu0
        %s3740 = scalar_lea.vmem %s16, 2
        %v3741 = vld [vmem:[%s3740] sm:$0x1]
        %v3743 = vlaneseq
        %v3744 = vshrl.u32 %v3743, 7
        %v3745 = vsub.s32 0, %v3744
        %v3746 = vrot.slane %v3741, %v3745
        %v3748 = vadd.f32 %v3726, %v3746
        %v3749 = vadd.f32 %v3729, %v3746
        %v3750 = vadd.f32 %v3734, %v3746
        %v3751 = vadd.f32 %v3737, %v3746
        %v3752 = vmax.f32 %v2738, 0.0
        %v3753 = vmax.f32 %v2739, 0.0
        %v3754 = vmax.f32 %v2740, 0.0
        %v3755 = vmax.f32 %v2741, 0.0
        %v3756 = vmin.f32 %v3752, 1.0
        %v3757 = vmin.f32 %v3753, 1.0
        %v3758 = vmin.f32 %v3754, 1.0
        %v3759 = vmin.f32 %v3755, 1.0
        %v3760 = vmax.f32 %v3756, 1e-05
        %v3761 = vmax.f32 %v3757, 1e-05
        %v3762 = vmax.f32 %v3758, 1e-05
        %v3763 = vmax.f32 %v3759, 1e-05
        %v3764 = vsub.f32 1.0, %v3756
        %v3765 = vsub.f32 1.0, %v3757
        %v3766 = vsub.f32 1.0, %v3758
        %v3767 = vsub.f32 1.0, %v3759
        %v3768 = vmax.f32 %v3764, 1e-05
        %v3769 = vmax.f32 %v3765, 1e-05
        %v3770 = vmax.f32 %v3766, 1e-05
        %v3771 = vmax.f32 %v3767, 1e-05
        %v3772 = vrcp.pop %v3768
        %v3773 = vmul.f32 %v3760, %v3772
        %v3774 = vrcp.pop %v3769
        %v3775 = vmul.f32 %v3761, %v3774
        %v3776 = vrcp.pop %v3770
        %v3777 = vmul.f32 %v3762, %v3776
        %v3778 = vrcp.pop %v3771
        %v3779 = vmul.f32 %v3763, %v3778
        %v3780 = vlog2.pop %v3773
        %v3781 = vmul.f32 %v3780, 0.6931472
        %v3782 = vlog2.pop %v3775
        %v3783 = vmul.f32 %v3782, 0.6931472
        %v3784 = vlog2.pop %v3777
        %v3785 = vmul.f32 %v3784, 0.6931472
        %v3786 = vlog2.pop %v3779
        %v3787 = vmul.f32 %v3786, 0.6931472
        %v3788 = vsel %vm1624, %v3781, 0.0
        %v3789 = vsel %vm1624, %v3783, 0.0
        %v3790 = vsel %vm1624, %v3785, 0.0
        %v3791 = vsel %vm1624, %v3787, 0.0
        %v3792 = vadd.f32 %v3748, %v3788
        %v3793 = vadd.f32 %v3749, %v3789
        %v3794 = vadd.f32 %v3750, %v3790
        %v3795 = vadd.f32 %v3751, %v3791
        %v3796 = vsub.f32 0.0, %v3792
        %v3797 = vsub.f32 0.0, %v3793
        %v3798 = vsub.f32 0.0, %v3794
        %v3799 = vsub.f32 0.0, %v3795
        %v3800 = vmul.f32 %v3796, 1.442695
        %v3801 = vpow.pop %v3800
        %v3802 = vmul.f32 %v3797, 1.442695
        %v3803 = vpow.pop %v3802
        %v3804 = vmul.f32 %v3798, 1.442695
        %v3805 = vpow.pop %v3804
        %v3806 = vmul.f32 %v3799, 1.442695
        %v3807 = vpow.pop %v3806
        %v3808 = vadd.f32 %v3801, 1.0
        %v3809 = vadd.f32 %v3803, 1.0
        %v3810 = vadd.f32 %v3805, 1.0
        %v3811 = vadd.f32 %v3807, 1.0
        %v3812 = vrcp.pop %v3808
        %v3813 = vmul.f32 1.0, %v3812
        %v3814 = vrcp.pop %v3809
        %v3815 = vmul.f32 1.0, %v3814
        %v3816 = vrcp.pop %v3810
        %v3817 = vmul.f32 1.0, %v3816
        %v3818 = vrcp.pop %v3811
        %v3819 = vmul.f32 1.0, %v3818
        %v3820 = vsel %vm1624, %v3813, %v3748
        %v3821 = vsel %vm1624, %v3815, %v3749
        %v3822 = vsel %vm1624, %v3817, %v3750
        %v3823 = vsel %vm1624, %v3819, %v3751
        %v3824 = vmul.f32 %v3820, %v573
        %v3825 = vmul.f32 %v3821, %v573
        %v3826 = vmul.f32 %v3822, %v573
        %v3827 = vmul.f32 %v3823, %v573
        %v3828 = vadd.f32 %v3824, %v576
        %v3829 = vadd.f32 %v3825, %v576
        %v3830 = vadd.f32 %v3826, %v576
        %v3831 = vadd.f32 %v3827, %v576
        %s3832 = scalar_lea.vmem %s537, 64 [#allocation2]
        %3833 = vst [vmem:[%s3832] sm:$0xff] %v3828
        %3834 = vst [vmem:[%s3832 + $0x8] sm:$0xff] %v3829
        %3835 = vst [vmem:[%s3832 + $0x10] sm:$0xff] %v3830
        %3836 = vst [vmem:[%s3832 + $0x18] sm:$0xff] %v3831
        %s3837 = sand.u32 %s398, 1
        %s3838 = sand.u32 %s398, 1
        %s3839 = smul.addr %s3838, 96
        %s3840 = scalar_lea.vmem [#allocation2], %s3839
        // Predicated region
        $region89: #{bevformer_head_forward.1} parent=87 // pred_check
          %p3841 = pneg %p408
        $region90: #{bevformer_head_forward.1} parent=87 // pred_check_branch
          %3843 = sbr.rel (%p3841) target = $region92
        $region91: #{bevformer_head_forward.1} parent=87 // pred_region
          %s3844 = smul.addr %s28, 4
          %s3845 = smul.addr %s3844, 8
          %s3846 = scalar_lea.vmem %s17, %s3845
          // Predicated region
          $region93: #{bevformer_head_forward.1} parent=91 // pred_check
            _
          $region94: #{bevformer_head_forward.1} parent=91 // pred_check_branch
            %3848 = sbr.rel (0) target = $region96
          $region95: #{bevformer_head_forward.1} parent=91 // pred_region
            // Predicated region
            $region97: #{bevformer_head_forward.1} parent=95 // pred_check
              _
            $region98: #{bevformer_head_forward.1} parent=95 // pred_check_branch
              %3850 = sbr.rel (0) target = $region100
            $region99: #{bevformer_head_forward.1} parent=95 // pred_region
              // Predicated region
              $region112: #{bevformer_head_forward.1} parent=99 // pred_check
                _
              $region113: #{bevformer_head_forward.1} parent=99 // pred_check_branch
                %3888 = sbr.rel (0) target = $region115
              $region114: #{bevformer_head_forward.1} parent=99 // pred_region
                loop: start=0, step=1, limit=1
                $region116: #{bevformer_head_forward.1} parent=114 // loop_pre_header
                  _
                $region117: #{bevformer_head_forward.1} parent=114 // loop_header
                  %s3890 = sphi 0, %s3894
                  %p3891 = scmp.ge.s32.totalorder %s3890, 1
                  %s3895 = sphi %s3840, %s3840
                  %s3896 = sphi %s3846, %s3846
                $region118: #{bevformer_head_forward.1} parent=114 // loop_header_branch
                  %3893 = sbr.rel (%p3891) target = $region122
                $region119: #{bevformer_head_forward.1} parent=114 // loop_body
                  %v3897 = vld [vmem:[%s3895] sm:$0xff]
                  %3898 = vst [vmem:[%s3896] sm:$0xff] %v3897
                  %v3899 = vld [vmem:[%s3895 + $0x8] sm:$0xff]
                  %3900 = vst [vmem:[%s3896 + $0x8] sm:$0xff] %v3899
                  %v3901 = vld [vmem:[%s3895 + $0x10] sm:$0xff]
                  %3902 = vst [vmem:[%s3896 + $0x10] sm:$0xff] %v3901
                  %v3903 = vld [vmem:[%s3895 + $0x18] sm:$0xff]
                  %3904 = vst [vmem:[%s3896 + $0x18] sm:$0xff] %v3903
                  %v3905 = vld [vmem:[%s3895 + $0x20] sm:$0xff]
                  %3906 = vst [vmem:[%s3896 + $0x40] sm:$0xff] %v3905
                  %v3907 = vld [vmem:[%s3895 + $0x28] sm:$0xff]
                  %3908 = vst [vmem:[%s3896 + $0x48] sm:$0xff] %v3907
                  %v3909 = vld [vmem:[%s3895 + $0x30] sm:$0xff]
                  %3910 = vst [vmem:[%s3896 + $0x50] sm:$0xff] %v3909
                  %v3911 = vld [vmem:[%s3895 + $0x38] sm:$0xff]
                  %3912 = vst [vmem:[%s3896 + $0x58] sm:$0xff] %v3911
                  %v3913 = vld [vmem:[%s3895 + $0x40] sm:$0xff]
                  %3914 = vst [vmem:[%s3896 + $0x80] sm:$0xff] %v3913
                  %v3915 = vld [vmem:[%s3895 + $0x48] sm:$0xff]
                  %3916 = vst [vmem:[%s3896 + $0x88] sm:$0xff] %v3915
                  %v3917 = vld [vmem:[%s3895 + $0x50] sm:$0xff]
                  %3918 = vst [vmem:[%s3896 + $0x90] sm:$0xff] %v3917
                  %v3919 = vld [vmem:[%s3895 + $0x58] sm:$0xff]
                  %3920 = vst [vmem:[%s3896 + $0x98] sm:$0xff] %v3919
                $region120: #{bevformer_head_forward.1} parent=114 // loop_footer
                  %s3894 = sadd.s32 1, %s3890
                $region121: #{bevformer_head_forward.1} parent=114 // loop_footer_branch
                  %3889 = sbr.rel target = $region117
                $region122: #{bevformer_head_forward.1} parent=114 // loop_exit
                  _
              $region115: #{bevformer_head_forward.1} parent=99 // pred_fallthru
                _
              // Predicated region
              $region123: #{bevformer_head_forward.1} parent=99 // pred_check
                _
              $region124: #{bevformer_head_forward.1} parent=99 // pred_check_branch
                %3922 = sbr.rel target = $region126
              $region125: #{bevformer_head_forward.1} parent=99 // pred_region
                _
              $region126: #{bevformer_head_forward.1} parent=99 // pred_fallthru
                _
            $region100: #{bevformer_head_forward.1} parent=95 // pred_fallthru
              _
            // Predicated region
            $region101: #{bevformer_head_forward.1} parent=95 // pred_check
              _
            $region102: #{bevformer_head_forward.1} parent=95 // pred_check_branch
              %3852 = sbr.rel target = $region104
            $region103: #{bevformer_head_forward.1} parent=95 // pred_region
              %s3854 = ssub.s32 256, 1
              loop: start=0, step=1, limit=1
              $region105: #{bevformer_head_forward.1} parent=103 // loop_pre_header
                _
              $region106: #{bevformer_head_forward.1} parent=103 // loop_header
                %s3856 = sphi 0, %s3860
                %p3857 = scmp.ge.s32.totalorder %s3856, 1
                %s3861 = sphi %s3840, %s3840
                %s3862 = sphi %s3846, %s3846
              $region107: #{bevformer_head_forward.1} parent=103 // loop_header_branch
                %3859 = sbr.rel (%p3857) target = $region111
              $region108: #{bevformer_head_forward.1} parent=103 // loop_body
                %v3863 = vld [vmem:[%s3861] sm:%s3854]
                %3864 = vst [vmem:[%s3862] sm:%s3854] %v3863
                %v3865 = vld [vmem:[%s3861 + $0x8] sm:%s3854]
                %3866 = vst [vmem:[%s3862 + $0x8] sm:%s3854] %v3865
                %v3867 = vld [vmem:[%s3861 + $0x10] sm:%s3854]
                %3868 = vst [vmem:[%s3862 + $0x10] sm:%s3854] %v3867
                %v3869 = vld [vmem:[%s3861 + $0x18] sm:%s3854]
                %3870 = vst [vmem:[%s3862 + $0x18] sm:%s3854] %v3869
                %v3871 = vld [vmem:[%s3861 + $0x20] sm:%s3854]
                %3872 = vst [vmem:[%s3862 + $0x40] sm:%s3854] %v3871
                %v3873 = vld [vmem:[%s3861 + $0x28] sm:%s3854]
                %3874 = vst [vmem:[%s3862 + $0x48] sm:%s3854] %v3873
                %v3875 = vld [vmem:[%s3861 + $0x30] sm:%s3854]
                %3876 = vst [vmem:[%s3862 + $0x50] sm:%s3854] %v3875
                %v3877 = vld [vmem:[%s3861 + $0x38] sm:%s3854]
                %3878 = vst [vmem:[%s3862 + $0x58] sm:%s3854] %v3877
                %v3879 = vld [vmem:[%s3861 + $0x40] sm:%s3854]
                %3880 = vst [vmem:[%s3862 + $0x80] sm:%s3854] %v3879
                %v3881 = vld [vmem:[%s3861 + $0x48] sm:%s3854]
                %3882 = vst [vmem:[%s3862 + $0x88] sm:%s3854] %v3881
                %v3883 = vld [vmem:[%s3861 + $0x50] sm:%s3854]
                %3884 = vst [vmem:[%s3862 + $0x90] sm:%s3854] %v3883
                %v3885 = vld [vmem:[%s3861 + $0x58] sm:%s3854]
                %3886 = vst [vmem:[%s3862 + $0x98] sm:%s3854] %v3885
              $region109: #{bevformer_head_forward.1} parent=103 // loop_footer
                %s3860 = sadd.s32 1, %s3856
              $region110: #{bevformer_head_forward.1} parent=103 // loop_footer_branch
                %3855 = sbr.rel target = $region106
              $region111: #{bevformer_head_forward.1} parent=103 // loop_exit
                _
            $region104: #{bevformer_head_forward.1} parent=95 // pred_fallthru
              _
          $region96: #{bevformer_head_forward.1} parent=91 // pred_fallthru
            _
          %3923 = vnop
        $region92: #{bevformer_head_forward.1} parent=87 // pred_fallthru
          _
      $region88: #{bevformer_head_forward.1} parent=5 // pred_fallthru
        _
      %p3924 = scmp.le.s32.totalorder 2, %s23
      // Predicated region
      $region127: #{bevformer_head_forward.1} parent=5 // pred_check
        %p3925 = pneg %p3924
      $region128: #{bevformer_head_forward.1} parent=5 // pred_check_branch
        %3927 = sbr.rel (%p3925) target = $region130
      $region129: #{bevformer_head_forward.1} parent=5 // pred_region
        %s3928 = ssub.s32 %s23, 2
        // Predicated region
        $region131: #{bevformer_head_forward.1} parent=129 // pred_check
          %p3929 = pneg %p414
        $region132: #{bevformer_head_forward.1} parent=129 // pred_check_branch
          %3931 = sbr.rel (%p3929) target = $region134
        $region133: #{bevformer_head_forward.1} parent=129 // pred_region
          %s3932 = sand.u32 %s399, 1
          %s3933 = sand.u32 %s399, 1
          %s3934 = smul.addr %s3933, 96
          %s3935 = scalar_lea.vmem [#allocation2], %s3934
        $region134: #{bevformer_head_forward.1} parent=129 // pred_fallthru
          _
      $region130: #{bevformer_head_forward.1} parent=5 // pred_fallthru
        _
    $region6: #{bevformer_head_forward.1} parent=1 // loop_footer
      %s27 = sadd.s32 1, %s23
    $region7: #{bevformer_head_forward.1} parent=1 // loop_footer_branch
      %22 = sbr.rel target = $region3
    $region8: #{bevformer_head_forward.1} parent=1 // loop_exit
      _

</llo_original>
